<compile_context>
chip_gen: v7x
topology: tpu7x:2x2x1
jax: 0.10.0
libtpu: 0.0.40
codegen_flags: <defaults>
</compile_context>

<pallas_src>
import math
import numpy as np
import jax
import jax.numpy as jnp
from jax import lax
from jax.experimental import pallas as pl
from jax.experimental.pallas import tpu as pltpu


# ---------------------------------------------------------------------------
# Model / batching configuration (small, consistent with GCN.__init__)
# ---------------------------------------------------------------------------
NUM_NODES = 16            # nodes per graph
INPUT_DIM = 16            # per-node input feature dim
HIDDEN_DIM = 32
NODE_DIM = 8              # concat-pooling per-node dim
NUM_CLASSES = 2
LOGIT_PAD = 128           # lane-dense padded logits width (sliced outside the kernel)
BN_EPS = 1e-5
LEAKY_SLOPE = 0.1         # nn.LeakyReLU(negative_slope=0.1) in the reference module

NUM_GRAPHS = 8            # graphs per forward call (batched to amortize dispatch)
GRAPHS_PER_BLOCK = 4      # graphs handled per grid step
NUM_BLOCKS = NUM_GRAPHS // GRAPHS_PER_BLOCK
N_BLK = GRAPHS_PER_BLOCK * NUM_NODES                 # nodes per grid step (64)
E_BLK = GRAPHS_PER_BLOCK * NUM_NODES * NUM_NODES     # padded edges per step (1024, %128==0)
assert NUM_GRAPHS % GRAPHS_PER_BLOCK == 0
assert E_BLK % 128 == 0

# Row indices inside the packed (10, 128) bias/BN-parameter array.
B_L0, B_BNS0, B_BNB0, B_H1, B_H2, B_BNSH, B_BNBH, B_F1, B_F2, B_F3 = range(10)


def _leaky(x, slope=LEAKY_SLOPE):
    return jnp.where(x > 0, x, slope * x)


# ---------------------------------------------------------------------------
# Fused Pallas kernel (one grid step = GRAPHS_PER_BLOCK graphs):
# adjacency build + normalize, 2 GCN conv blocks, concat pooling, 3-layer fcn head.
# ---------------------------------------------------------------------------
def gcn_fused_kernel(src_ref, dst_ref, ew_ref, x_ref,
                     wg0_ref, wl0_ref, wgh_ref, wh1_ref, wh2_ref,
                     w1e_ref, wf2_ref, wf3_ref, bias_ref, sel_ref,
                     o_ref):
    f32, bf16 = jnp.float32, jnp.bfloat16
    n = x_ref.shape[0]          # nodes in this block (static)
    e = src_ref.shape[-1]       # padded edge count in this block (static, %128==0)

    # ---- Adjacency via one-hot matmul, both one-hots in (N, E) layout ----
    src = src_ref[...]          # (1, E) int32, block-local node ids
    dst = dst_ref[...]          # (1, E) int32
    w = ew_ref[...]             # (1, E) f32; 0.0 on padding, 1.0 on self loops
    node_iota = lax.broadcasted_iota(jnp.int32, (n, e), 0)
    # |w| folded into the destination one-hot (forward does edge_attr = abs(edge_attr))
    dst_oh_w = jnp.where(node_iota == dst, jnp.abs(w), 0.0)          # (N, E) f32
    src_oh = (node_iota == src).astype(f32)                          # (N, E) f32
    # adj[d, s] = sum_e dst_oh_w[d, e] * src_oh[s, e]   (contract over E, RHS transposed)
    adj = lax.dot_general(dst_oh_w, src_oh,
                          dimension_numbers=(((1,), (1,)), ((), ())),
                          preferred_element_type=f32)                # (N, N)

    # Symmetric GCN normalization folded into activations:
    #   A_hat @ y == dinv * (A @ (dinv * y)),  A_hat = D^{-1/2} A D^{-1/2}
    deg = jnp.sum(adj, axis=1, keepdims=True)                        # (N, 1)
    dinv = jnp.where(deg > 0, lax.rsqrt(deg), 0.0)

    # ---- conv block 0: MPGCNConv(weighted_sum) -> Linear -> LeakyReLU -> BN(eval) ----
    xw = jnp.dot(x_ref[...].astype(bf16), wg0_ref[...], preferred_element_type=f32)
    h = dinv * jnp.dot(adj, dinv * xw, preferred_element_type=f32)
    h = jnp.dot(h.astype(bf16), wl0_ref[...], preferred_element_type=f32) \
        + bias_ref[B_L0:B_L0 + 1, :HIDDEN_DIM]
    h = _leaky(h)
    h = h * bias_ref[B_BNS0:B_BNS0 + 1, :HIDDEN_DIM] \
        + bias_ref[B_BNB0:B_BNB0 + 1, :HIDDEN_DIM]                   # (N, H)

    # ---- head conv: MPGCNConv -> Linear(H,16) -> LeakyReLU -> Linear(16,NODE_DIM)
    #                 -> LeakyReLU -> BN(NODE_DIM) (eval) ----
    hw = jnp.dot(h.astype(bf16), wgh_ref[...], preferred_element_type=f32)
    g = dinv * jnp.dot(adj, dinv * hw, preferred_element_type=f32)
    g = _leaky(jnp.dot(g.astype(bf16), wh1_ref[...], preferred_element_type=f32)
               + bias_ref[B_H1:B_H1 + 1, :16])
    g = _leaky(jnp.dot(g.astype(bf16), wh2_ref[...], preferred_element_type=f32)
               + bias_ref[B_H2:B_H2 + 1, :NODE_DIM])
    g = g * bias_ref[B_BNSH:B_BNSH + 1, :NODE_DIM] \
        + bias_ref[B_BNBH:B_BNBH + 1, :NODE_DIM]                     # (N, NODE_DIM)

    # ---- concat pooling + fcn Linear #1:
    #      one (N, NODE_DIM) -> (NODE_DIM, N) transpose + NODE_DIM small MXU matmuls
    #      (sublane-row broadcasts instead of 8 lane-column broadcasts) ----
    gT = jnp.transpose(g)                                            # (NODE_DIM, N)
    sel = sel_ref[...]                                               # (G_BLK, N) 0/1
    acc = jnp.zeros((GRAPHS_PER_BLOCK, HIDDEN_DIM), f32)
    for d in range(NODE_DIM):                                        # static unroll (8)
        p_d = (sel * gT[d:d + 1, :]).astype(bf16)                    # (G_BLK, N)
        acc = acc + jnp.dot(p_d, w1e_ref[d * n:(d + 1) * n, :],
                            preferred_element_type=f32)

    # ---- fcn: Linear -> Linear -> Linear (no activations); lane-dense (.., 128) store ----
    f1 = acc + bias_ref[B_F1:B_F1 + 1, :HIDDEN_DIM]                  # (G_BLK, H)
    f2 = jnp.dot(f1.astype(bf16), wf2_ref[...], preferred_element_type=f32) \
        + bias_ref[B_F2:B_F2 + 1, :32]                               # (G_BLK, 32)
    o_ref[...] = jnp.dot(f2.astype(bf16), wf3_ref[...], preferred_element_type=f32) \
        + bias_ref[B_F3:B_F3 + 1, :]                                 # (G_BLK, 128)


# ---------------------------------------------------------------------------
# Parameters
# ---------------------------------------------------------------------------
def init_params(key):
    """Deterministic synthetic parameters (shapes from the module's __init__)."""
    ks = jax.random.split(key, 12)
    s = 0.1
    p = {}
    # conv block 0: MPGCNConv(INPUT_DIM, HIDDEN) + Linear(HIDDEN, HIDDEN) + BN(HIDDEN)
    p["wg0"] = s * jax.random.normal(ks[0], (INPUT_DIM, HIDDEN_DIM), jnp.float32)
    p["wl0"] = s * jax.random.normal(ks[1], (HIDDEN_DIM, HIDDEN_DIM), jnp.float32)
    p["bl0"] = s * jax.random.normal(ks[2], (1, HIDDEN_DIM), jnp.float32)
    # TODO(synk): plumb trained BatchNorm running stats / affine params into bns*/bnb*.
    p["bns0"] = jnp.full((1, HIDDEN_DIM), 1.0 / math.sqrt(1.0 + BN_EPS), jnp.float32)
    p["bnb0"] = jnp.zeros((1, HIDDEN_DIM), jnp.float32)
    # head conv: MPGCNConv(H,H) + Linear(H,16) + Linear(16, NODE_DIM) + BN(NODE_DIM)
    p["wgh"] = s * jax.random.normal(ks[3], (HIDDEN_DIM, HIDDEN_DIM), jnp.float32)
    p["wh1"] = s * jax.random.normal(ks[4], (HIDDEN_DIM, 16), jnp.float32)
    p["bh1"] = s * jax.random.normal(ks[5], (1, 16), jnp.float32)
    p["wh2"] = s * jax.random.normal(ks[6], (16, NODE_DIM), jnp.float32)
    p["bh2"] = s * jax.random.normal(ks[7], (1, NODE_DIM), jnp.float32)
    p["bnsh"] = jnp.full((1, NODE_DIM), 1.0 / math.sqrt(1.0 + BN_EPS), jnp.float32)
    p["bnbh"] = jnp.zeros((1, NODE_DIM), jnp.float32)
    # fcn: Linear(NODE_DIM*NUM_NODES, HIDDEN) -> Linear(HIDDEN, 32) -> Linear(32, NUM_CLASSES)
    fcn_in = NODE_DIM * NUM_NODES
    p["wf1"] = s * jax.random.normal(ks[8], (fcn_in, HIDDEN_DIM), jnp.float32)
    p["bf1"] = s * jax.random.normal(ks[9], (1, HIDDEN_DIM), jnp.float32)
    p["wf2"] = s * jax.random.normal(ks[10], (HIDDEN_DIM, 32), jnp.float32)
    p["bf2"] = jnp.zeros((1, 32), jnp.float32)
    p["wf3"] = s * jax.random.normal(ks[11], (32, NUM_CLASSES), jnp.float32)
    p["bf3"] = jnp.zeros((1, NUM_CLASSES), jnp.float32)
    return p


def prepare_kernel_params(p):
    """One-time static param folding:
       - dense-layer weights cast to bf16 (MXU-native),
       - wf1 rearranged so concat pooling needs no in-kernel reshape,
       - final fcn layer zero-padded to lane-dense 128 logits,
       - all (1, d) biases / BN params packed into one (10, 128) array,
       - graph-selection matrix precomputed."""
    bf16 = jnp.bfloat16
    kp = {}
    for name in ("wg0", "wl0", "wgh", "wh1", "wh2", "wf2"):
        kp[name] = p[name].astype(bf16)
    # w1e[d*N_BLK + i, :] = wf1[(i % NUM_NODES)*NODE_DIM + d, :]
    node_in_graph = np.arange(N_BLK) % NUM_NODES
    w1e = jnp.concatenate(
        [p["wf1"][node_in_graph * NODE_DIM + d, :] for d in range(NODE_DIM)], axis=0)
    kp["w1e"] = w1e.astype(bf16)
    wf3p = jnp.zeros((p["wf3"].shape[0], LOGIT_PAD), jnp.float32
                     ).at[:, :NUM_CLASSES].set(p["wf3"])
    kp["wf3p"] = wf3p.astype(bf16)
    # packed biases (f32), one row of 128 lanes per parameter
    bias = np.zeros((10, 128), np.float32)

    def put(row, v):
        v = np.asarray(v).reshape(-1)
        bias[row, :v.shape[0]] = v

    put(B_L0, p["bl0"]); put(B_BNS0, p["bns0"]); put(B_BNB0, p["bnb0"])
    put(B_H1, p["bh1"]); put(B_H2, p["bh2"])
    put(B_BNSH, p["bnsh"]); put(B_BNBH, p["bnbh"])
    put(B_F1, p["bf1"]); put(B_F2, p["bf2"]); put(B_F3, p["bf3"])
    kp["bias"] = jnp.asarray(bias)
    # graph selection matrix for one block: sel[g, i] = 1 iff node i belongs to graph g
    sel = (np.arange(N_BLK)[None, :] // NUM_NODES) == np.arange(GRAPHS_PER_BLOCK)[:, None]
    kp["sel"] = jnp.asarray(sel.astype(np.float32))
    return kp


# ---------------------------------------------------------------------------
# Host-side edge preparation: per-block local indices, self loops, zero padding.
# ---------------------------------------------------------------------------
def _prepare_edges(edge_index, edge_attr):
    ei = np.asarray(edge_index)
    ea = np.asarray(edge_attr, dtype=np.float32)
    src_b = np.zeros((NUM_BLOCKS, 1, E_BLK), np.int32)
    dst_b = np.zeros((NUM_BLOCKS, 1, E_BLK), np.int32)
    ew_b = np.zeros((NUM_BLOCKS, 1, E_BLK), np.float32)
    blk = ei[0] // N_BLK
    # TODO(synk): assumes edges never cross graph blocks (standard per-graph batching)
    # and that input graphs carry no pre-existing self loops (gcn_norm fill_value=1.0).
    for b in range(NUM_BLOCKS):
        m = blk == b
        s = (ei[0, m] - b * N_BLK).astype(np.int32)
        d = (ei[1, m] - b * N_BLK).astype(np.int32)
        ne = s.shape[0]
        assert ne + N_BLK <= E_BLK, "edge block overflow"
        src_b[b, 0, :ne] = s
        dst_b[b, 0, :ne] = d
        ew_b[b, 0, :ne] = ea[m]
        sl = np.arange(N_BLK, dtype=np.int32)
        src_b[b, 0, ne:ne + N_BLK] = sl       # self loops, weight 1.0
        dst_b[b, 0, ne:ne + N_BLK] = sl
        ew_b[b, 0, ne:ne + N_BLK] = 1.0       # remaining slots stay zero-weight padding
    return jnp.asarray(src_b), jnp.asarray(dst_b), jnp.asarray(ew_b)


# ---------------------------------------------------------------------------
# Forward pass: one pallas_call, gridded over graph blocks, everything in VMEM.
# ---------------------------------------------------------------------------
def gcn_forward(kp, x, edge_index, edge_attr, batch):
    """Mirrors GCN.forward (pooling='concat', gcn_mp_type='weighted_sum'), eval mode."""
    del batch  # only used for 'sum'/'mean' pooling
    src_b, dst_b, ew_b = _prepare_edges(edge_index, edge_attr)

    args = (src_b, dst_b, ew_b, x.astype(jnp.float32),
            kp["wg0"], kp["wl0"], kp["wgh"], kp["wh1"], kp["wh2"],
            kp["w1e"], kp["wf2"], kp["wf3p"], kp["bias"], kp["sel"])

    edge_spec = pl.BlockSpec((None, 1, E_BLK), lambda b: (b, 0, 0))
    x_spec = pl.BlockSpec((N_BLK, INPUT_DIM), lambda b: (b, 0))

    def full2(a):  # un-tiled 2-D parameter, same block every grid step
        return pl.BlockSpec(a.shape, lambda b: (0, 0))

    in_specs = [edge_spec, edge_spec, edge_spec, x_spec] + [full2(a) for a in args[4:]]

    out_padded = pl.pallas_call(
        gcn_fused_kernel,
        out_shape=jax.ShapeDtypeStruct((NUM_BLOCKS, GRAPHS_PER_BLOCK, LOGIT_PAD),
                                       jnp.float32),
        grid=(NUM_BLOCKS,),
        in_specs=in_specs,
        out_specs=pl.BlockSpec((None, GRAPHS_PER_BLOCK, LOGIT_PAD), lambda b: (b, 0, 0)),
        compiler_params=pltpu.CompilerParams(dimension_semantics=("parallel",)),
    )(*args)
    # Lane-dense (G_BLK, 128) stores inside the kernel; slice the real logits outside.
    return out_padded.reshape(NUM_GRAPHS, LOGIT_PAD)[:, :NUM_CLASSES]


if __name__ == "__main__":
    key = jax.random.PRNGKey(0)
    kx, ke, kparam = jax.random.split(key, 3)

    # Node features: (NUM_GRAPHS * NUM_NODES, INPUT_DIM)
    x = jax.random.normal(kx, (NUM_GRAPHS * NUM_NODES, INPUT_DIM), jnp.float32)

    # Deterministic edges: fully connected (no self loops) within each graph.
    src_list, dst_list = [], []
    for gph in range(NUM_GRAPHS):
        base = gph * NUM_NODES
        for i in range(NUM_NODES):
            for j in range(NUM_NODES):
                if i != j:
                    src_list.append(base + i)
                    dst_list.append(base + j)
    edge_index = jnp.array([src_list, dst_list], dtype=jnp.int32)   # (2, E), E = 1920
    edge_attr = jax.random.normal(ke, (edge_index.shape[1],), jnp.float32)

    # batch vector: node -> graph id (unused for 'concat' pooling)
    batch = jnp.repeat(jnp.arange(NUM_GRAPHS, dtype=jnp.int32), NUM_NODES)

    params = prepare_kernel_params(init_params(kparam))

    out = gcn_forward(params, x, edge_index, edge_attr, batch)
    out = jax.block_until_ready(out)
    assert out.shape == (NUM_GRAPHS, NUM_CLASSES)
    assert bool(jnp.all(jnp.isfinite(out)))
    print("KERNEL_OK")
</pallas_src>

<mosaic_0001>
module attributes {stable_mosaic.version = 11 : i64} {
  func.func @gcn_fused_kernel(%arg0: i32, %arg1: memref<1x1x1024xi32, #tpu.memory_space<vmem>>, %arg2: memref<1x1x1024xi32, #tpu.memory_space<vmem>>, %arg3: memref<1x1x1024xf32, #tpu.memory_space<vmem>>, %arg4: memref<64x16xf32, #tpu.memory_space<vmem>>, %arg5: memref<16x32xbf16, #tpu.memory_space<vmem>>, %arg6: memref<32x32xbf16, #tpu.memory_space<vmem>>, %arg7: memref<32x32xbf16, #tpu.memory_space<vmem>>, %arg8: memref<32x16xbf16, #tpu.memory_space<vmem>>, %arg9: memref<16x8xbf16, #tpu.memory_space<vmem>>, %arg10: memref<512x32xbf16, #tpu.memory_space<vmem>>, %arg11: memref<32x32xbf16, #tpu.memory_space<vmem>>, %arg12: memref<32x128xbf16, #tpu.memory_space<vmem>>, %arg13: memref<10x128xf32, #tpu.memory_space<vmem>>, %arg14: memref<4x64xf32, #tpu.memory_space<vmem>>, %arg15: memref<1x4x128xf32, #tpu.memory_space<vmem>>) attributes {dimension_semantics = [#tpu.dimension_semantics<parallel>], iteration_bounds = array<i64: 2>, scalar_prefetch = 0 : i64, scratch_operands = 0 : i64, tpu.core_type = #tpu.core_type<tc>, window_params = [{transform_indices = @transform_0, window_bounds = array<i64: 1, 1, 1024>}, {transform_indices = @transform_1, window_bounds = array<i64: 1, 1, 1024>}, {transform_indices = @transform_2, window_bounds = array<i64: 1, 1, 1024>}, {transform_indices = @transform_3, window_bounds = array<i64: 64, 16>}, {pipeline_mode = #tpu.pipeline_mode<synchronous>, transform_indices = @transform_4, window_bounds = array<i64: 16, 32>}, {pipeline_mode = #tpu.pipeline_mode<synchronous>, transform_indices = @transform_5, window_bounds = array<i64: 32, 32>}, {pipeline_mode = #tpu.pipeline_mode<synchronous>, transform_indices = @transform_6, window_bounds = array<i64: 32, 32>}, {pipeline_mode = #tpu.pipeline_mode<synchronous>, transform_indices = @transform_7, window_bounds = array<i64: 32, 16>}, {pipeline_mode = #tpu.pipeline_mode<synchronous>, transform_indices = @transform_8, window_bounds = array<i64: 16, 8>}, {pipeline_mode = #tpu.pipeline_mode<synchronous>, transform_indices = @transform_9, window_bounds = array<i64: 512, 32>}, {pipeline_mode = #tpu.pipeline_mode<synchronous>, transform_indices = @transform_10, window_bounds = array<i64: 32, 32>}, {pipeline_mode = #tpu.pipeline_mode<synchronous>, transform_indices = @transform_11, window_bounds = array<i64: 32, 128>}, {pipeline_mode = #tpu.pipeline_mode<synchronous>, transform_indices = @transform_12, window_bounds = array<i64: 10, 128>}, {pipeline_mode = #tpu.pipeline_mode<synchronous>, transform_indices = @transform_13, window_bounds = array<i64: 4, 64>}, {transform_indices = @transform_14, window_bounds = array<i64: 1, 4, 128>}]} {
    %c0 = arith.constant 0 : index
    %c0_0 = arith.constant 0 : index
    %c0_1 = arith.constant 0 : index
    %0 = vector.load %arg1[%c0, %c0_0, %c0_1] : memref<1x1x1024xi32, #tpu.memory_space<vmem>>, vector<1x1x1024xi32>
    %1 = vector.shape_cast %0 : vector<1x1x1024xi32> to vector<1x1024xi32>
    %c0_2 = arith.constant 0 : index
    %c0_3 = arith.constant 0 : index
    %c0_4 = arith.constant 0 : index
    %2 = vector.load %arg2[%c0_2, %c0_3, %c0_4] : memref<1x1x1024xi32, #tpu.memory_space<vmem>>, vector<1x1x1024xi32>
    %3 = vector.shape_cast %2 : vector<1x1x1024xi32> to vector<1x1024xi32>
    %c0_5 = arith.constant 0 : index
    %c0_6 = arith.constant 0 : index
    %c0_7 = arith.constant 0 : index
    %4 = vector.load %arg3[%c0_5, %c0_6, %c0_7] : memref<1x1x1024xf32, #tpu.memory_space<vmem>>, vector<1x1x1024xf32>
    %5 = vector.shape_cast %4 : vector<1x1x1024xf32> to vector<1x1024xf32>
    %6 = tpu.iota {dimensions = array<i32: 0>} : vector<64x1024xi32>
    %7 = vector.broadcast %3 : vector<1x1024xi32> to vector<64x1024xi32>
    %8 = arith.cmpi eq, %6, %7 : vector<64x1024xi32>
    %9 = math.absf %5 : vector<1x1024xf32>
    %cst = arith.constant 0.000000e+00 : f32
    %10 = vector.shape_cast %9 : vector<1x1024xf32> to vector<1x1024xf32>
    %11 = vector.broadcast %10 : vector<1x1024xf32> to vector<64x1024xf32>
    %12 = vector.broadcast %cst : f32 to vector<64x1024xf32>
    %13 = arith.select %8, %11, %12 : vector<64x1024xi1>, vector<64x1024xf32>
    %14 = vector.broadcast %1 : vector<1x1024xi32> to vector<64x1024xi32>
    %15 = arith.cmpi eq, %6, %14 : vector<64x1024xi32>
    %16 = arith.extui %15 : vector<64x1024xi1> to vector<64x1024xi32>
    %17 = arith.sitofp %16 : vector<64x1024xi32> to vector<64x1024xf32>
    %cst_8 = arith.constant dense<0.000000e+00> : vector<64x64xf32>
    %18 = tpu.matmul %13, %17, %cst_8 {dimension_numbers = #tpu.dot_dimension_numbers<[1], [1], [0], [0], [0, 0, 1, 0], [], []>} : vector<64x1024xf32>, vector<64x1024xf32>, vector<64x64xf32> -> vector<64x64xf32>
    %cst_9 = arith.constant dense<0.000000e+00> : vector<64xf32>
    %19 = vector.multi_reduction <add>, %18, %cst_9 [1] : vector<64x64xf32> to vector<64xf32>
    %20 = vector.shape_cast %19 : vector<64xf32> to vector<64x1xf32>
    %cst_10 = arith.constant 0.000000e+00 : f32
    %21 = vector.broadcast %cst_10 : f32 to vector<64x1xf32>
    %22 = arith.cmpf ogt, %20, %21 : vector<64x1xf32>
    %23 = math.rsqrt %20 : vector<64x1xf32>
    %cst_11 = arith.constant 0.000000e+00 : f32
    %24 = vector.broadcast %cst_11 : f32 to vector<64x1xf32>
    %25 = arith.select %22, %23, %24 : vector<64x1xi1>, vector<64x1xf32>
    %c0_12 = arith.constant 0 : index
    %c0_13 = arith.constant 0 : index
    %26 = vector.load %arg4[%c0_12, %c0_13] : memref<64x16xf32, #tpu.memory_space<vmem>>, vector<64x16xf32>
    %27 = arith.truncf %26 : vector<64x16xf32> to vector<64x16xbf16>
    %c0_14 = arith.constant 0 : index
    %c0_15 = arith.constant 0 : index
    %28 = vector.load %arg5[%c0_14, %c0_15] : memref<16x32xbf16, #tpu.memory_space<vmem>>, vector<16x32xbf16>
    %cst_16 = arith.constant dense<0.000000e+00> : vector<64x32xf32>
    %29 = tpu.matmul %27, %28, %cst_16 {dimension_numbers = #tpu.dot_dimension_numbers<[1], [0], [0], [1], [0, 0, 1, 1], [], []>} : vector<64x16xbf16>, vector<16x32xbf16>, vector<64x32xf32> -> vector<64x32xf32>
    %30 = vector.broadcast %25 : vector<64x1xf32> to vector<64x32xf32>
    %31 = arith.mulf %30, %29 : vector<64x32xf32>
    %cst_17 = arith.constant dense<0.000000e+00> : vector<64x32xf32>
    %32 = tpu.matmul %18, %31, %cst_17 {dimension_numbers = #tpu.dot_dimension_numbers<[1], [0], [0], [1], [0, 0, 1, 1], [], []>} : vector<64x64xf32>, vector<64x32xf32>, vector<64x32xf32> -> vector<64x32xf32>
    %33 = vector.broadcast %25 : vector<64x1xf32> to vector<64x32xf32>
    %34 = arith.mulf %33, %32 : vector<64x32xf32>
    %35 = arith.truncf %34 : vector<64x32xf32> to vector<64x32xbf16>
    %c0_18 = arith.constant 0 : index
    %c0_19 = arith.constant 0 : index
    %36 = vector.load %arg6[%c0_18, %c0_19] : memref<32x32xbf16, #tpu.memory_space<vmem>>, vector<32x32xbf16>
    %cst_20 = arith.constant dense<0.000000e+00> : vector<64x32xf32>
    %37 = tpu.matmul %35, %36, %cst_20 {dimension_numbers = #tpu.dot_dimension_numbers<[1], [0], [0], [1], [0, 0, 1, 1], [], []>} : vector<64x32xbf16>, vector<32x32xbf16>, vector<64x32xf32> -> vector<64x32xf32>
    %c0_21 = arith.constant 0 : index
    %c0_22 = arith.constant 0 : index
    %38 = vector.load %arg13[%c0_21, %c0_22] : memref<10x128xf32, #tpu.memory_space<vmem>>, vector<1x32xf32>
    %39 = vector.broadcast %38 : vector<1x32xf32> to vector<64x32xf32>
    %40 = arith.addf %37, %39 : vector<64x32xf32>
    %cst_23 = arith.constant 0.000000e+00 : f32
    %41 = vector.broadcast %cst_23 : f32 to vector<64x32xf32>
    %42 = arith.cmpf ogt, %40, %41 : vector<64x32xf32>
    %cst_24 = arith.constant 1.000000e-01 : f32
    %43 = vector.broadcast %cst_24 : f32 to vector<64x32xf32>
    %44 = arith.mulf %43, %40 : vector<64x32xf32>
    %45 = arith.select %42, %40, %44 : vector<64x32xi1>, vector<64x32xf32>
    %c1 = arith.constant 1 : index
    %c0_25 = arith.constant 0 : index
    %46 = vector.load %arg13[%c1, %c0_25] : memref<10x128xf32, #tpu.memory_space<vmem>>, vector<1x32xf32>
    %47 = vector.broadcast %46 : vector<1x32xf32> to vector<64x32xf32>
    %48 = arith.mulf %45, %47 : vector<64x32xf32>
    %c2 = arith.constant 2 : index
    %c0_26 = arith.constant 0 : index
    %49 = vector.load %arg13[%c2, %c0_26] : memref<10x128xf32, #tpu.memory_space<vmem>>, vector<1x32xf32>
    %50 = vector.broadcast %49 : vector<1x32xf32> to vector<64x32xf32>
    %51 = arith.addf %48, %50 : vector<64x32xf32>
    %52 = arith.truncf %51 : vector<64x32xf32> to vector<64x32xbf16>
    %c0_27 = arith.constant 0 : index
    %c0_28 = arith.constant 0 : index
    %53 = vector.load %arg7[%c0_27, %c0_28] : memref<32x32xbf16, #tpu.memory_space<vmem>>, vector<32x32xbf16>
    %cst_29 = arith.constant dense<0.000000e+00> : vector<64x32xf32>
    %54 = tpu.matmul %52, %53, %cst_29 {dimension_numbers = #tpu.dot_dimension_numbers<[1], [0], [0], [1], [0, 0, 1, 1], [], []>} : vector<64x32xbf16>, vector<32x32xbf16>, vector<64x32xf32> -> vector<64x32xf32>
    %55 = vector.broadcast %25 : vector<64x1xf32> to vector<64x32xf32>
    %56 = arith.mulf %55, %54 : vector<64x32xf32>
    %cst_30 = arith.constant dense<0.000000e+00> : vector<64x32xf32>
    %57 = tpu.matmul %18, %56, %cst_30 {dimension_numbers = #tpu.dot_dimension_numbers<[1], [0], [0], [1], [0, 0, 1, 1], [], []>} : vector<64x64xf32>, vector<64x32xf32>, vector<64x32xf32> -> vector<64x32xf32>
    %58 = vector.broadcast %25 : vector<64x1xf32> to vector<64x32xf32>
    %59 = arith.mulf %58, %57 : vector<64x32xf32>
    %60 = arith.truncf %59 : vector<64x32xf32> to vector<64x32xbf16>
    %c0_31 = arith.constant 0 : index
    %c0_32 = arith.constant 0 : index
    %61 = vector.load %arg8[%c0_31, %c0_32] : memref<32x16xbf16, #tpu.memory_space<vmem>>, vector<32x16xbf16>
    %cst_33 = arith.constant dense<0.000000e+00> : vector<64x16xf32>
    %62 = tpu.matmul %60, %61, %cst_33 {dimension_numbers = #tpu.dot_dimension_numbers<[1], [0], [0], [1], [0, 0, 1, 1], [], []>} : vector<64x32xbf16>, vector<32x16xbf16>, vector<64x16xf32> -> vector<64x16xf32>
    %c3 = arith.constant 3 : index
    %c0_34 = arith.constant 0 : index
    %63 = vector.load %arg13[%c3, %c0_34] : memref<10x128xf32, #tpu.memory_space<vmem>>, vector<1x16xf32>
    %64 = vector.broadcast %63 : vector<1x16xf32> to vector<64x16xf32>
    %65 = arith.addf %62, %64 : vector<64x16xf32>
    %cst_35 = arith.constant 0.000000e+00 : f32
    %66 = vector.broadcast %cst_35 : f32 to vector<64x16xf32>
    %67 = arith.cmpf ogt, %65, %66 : vector<64x16xf32>
    %cst_36 = arith.constant 1.000000e-01 : f32
    %68 = vector.broadcast %cst_36 : f32 to vector<64x16xf32>
    %69 = arith.mulf %68, %65 : vector<64x16xf32>
    %70 = arith.select %67, %65, %69 : vector<64x16xi1>, vector<64x16xf32>
    %71 = arith.truncf %70 : vector<64x16xf32> to vector<64x16xbf16>
    %c0_37 = arith.constant 0 : index
    %c0_38 = arith.constant 0 : index
    %72 = vector.load %arg9[%c0_37, %c0_38] : memref<16x8xbf16, #tpu.memory_space<vmem>>, vector<16x8xbf16>
    %cst_39 = arith.constant dense<0.000000e+00> : vector<64x8xf32>
    %73 = tpu.matmul %71, %72, %cst_39 {dimension_numbers = #tpu.dot_dimension_numbers<[1], [0], [0], [1], [0, 0, 1, 1], [], []>} : vector<64x16xbf16>, vector<16x8xbf16>, vector<64x8xf32> -> vector<64x8xf32>
    %c4 = arith.constant 4 : index
    %c0_40 = arith.constant 0 : index
    %74 = vector.load %arg13[%c4, %c0_40] : memref<10x128xf32, #tpu.memory_space<vmem>>, vector<1x8xf32>
    %75 = vector.broadcast %74 : vector<1x8xf32> to vector<64x8xf32>
    %76 = arith.addf %73, %75 : vector<64x8xf32>
    %cst_41 = arith.constant 0.000000e+00 : f32
    %77 = vector.broadcast %cst_41 : f32 to vector<64x8xf32>
    %78 = arith.cmpf ogt, %76, %77 : vector<64x8xf32>
    %cst_42 = arith.constant 1.000000e-01 : f32
    %79 = vector.broadcast %cst_42 : f32 to vector<64x8xf32>
    %80 = arith.mulf %79, %76 : vector<64x8xf32>
    %81 = arith.select %78, %76, %80 : vector<64x8xi1>, vector<64x8xf32>
    %c5 = arith.constant 5 : index
    %c0_43 = arith.constant 0 : index
    %82 = vector.load %arg13[%c5, %c0_43] : memref<10x128xf32, #tpu.memory_space<vmem>>, vector<1x8xf32>
    %83 = vector.broadcast %82 : vector<1x8xf32> to vector<64x8xf32>
    %84 = arith.mulf %81, %83 : vector<64x8xf32>
    %c6 = arith.constant 6 : index
    %c0_44 = arith.constant 0 : index
    %85 = vector.load %arg13[%c6, %c0_44] : memref<10x128xf32, #tpu.memory_space<vmem>>, vector<1x8xf32>
    %86 = vector.broadcast %85 : vector<1x8xf32> to vector<64x8xf32>
    %87 = arith.addf %84, %86 : vector<64x8xf32>
    %88 = tpu.transpose %87, [1, 0] : vector<64x8xf32> -> vector<8x64xf32>
    %c0_45 = arith.constant 0 : index
    %c0_46 = arith.constant 0 : index
    %89 = vector.load %arg14[%c0_45, %c0_46] : memref<4x64xf32, #tpu.memory_space<vmem>>, vector<4x64xf32>
    %cst_47 = arith.constant 0.000000e+00 : f32
    %90 = vector.broadcast %cst_47 : f32 to vector<4x32xf32>
    %91 = vector.extract_strided_slice %88 {offsets = [0, 0], sizes = [1, 64], strides = [1, 1]} : vector<8x64xf32> to vector<1x64xf32>
    %92 = vector.broadcast %91 : vector<1x64xf32> to vector<4x64xf32>
    %93 = arith.mulf %89, %92 : vector<4x64xf32>
    %94 = arith.truncf %93 : vector<4x64xf32> to vector<4x64xbf16>
    %c0_48 = arith.constant 0 : index
    %c0_49 = arith.constant 0 : index
    %95 = vector.load %arg10[%c0_48, %c0_49] : memref<512x32xbf16, #tpu.memory_space<vmem>>, vector<64x32xbf16>
    %cst_50 = arith.constant dense<0.000000e+00> : vector<4x32xf32>
    %96 = tpu.matmul %94, %95, %cst_50 {dimension_numbers = #tpu.dot_dimension_numbers<[1], [0], [0], [1], [0, 0, 1, 1], [], []>} : vector<4x64xbf16>, vector<64x32xbf16>, vector<4x32xf32> -> vector<4x32xf32>
    %97 = arith.addf %90, %96 : vector<4x32xf32>
    %98 = vector.extract_strided_slice %88 {offsets = [1, 0], sizes = [1, 64], strides = [1, 1]} : vector<8x64xf32> to vector<1x64xf32>
    %99 = vector.broadcast %98 : vector<1x64xf32> to vector<4x64xf32>
    %100 = arith.mulf %89, %99 : vector<4x64xf32>
    %101 = arith.truncf %100 : vector<4x64xf32> to vector<4x64xbf16>
    %c64 = arith.constant 64 : index
    %c0_51 = arith.constant 0 : index
    %102 = vector.load %arg10[%c64, %c0_51] : memref<512x32xbf16, #tpu.memory_space<vmem>>, vector<64x32xbf16>
    %cst_52 = arith.constant dense<0.000000e+00> : vector<4x32xf32>
    %103 = tpu.matmul %101, %102, %cst_52 {dimension_numbers = #tpu.dot_dimension_numbers<[1], [0], [0], [1], [0, 0, 1, 1], [], []>} : vector<4x64xbf16>, vector<64x32xbf16>, vector<4x32xf32> -> vector<4x32xf32>
    %104 = arith.addf %97, %103 : vector<4x32xf32>
    %105 = vector.extract_strided_slice %88 {offsets = [2, 0], sizes = [1, 64], strides = [1, 1]} : vector<8x64xf32> to vector<1x64xf32>
    %106 = vector.broadcast %105 : vector<1x64xf32> to vector<4x64xf32>
    %107 = arith.mulf %89, %106 : vector<4x64xf32>
    %108 = arith.truncf %107 : vector<4x64xf32> to vector<4x64xbf16>
    %c128 = arith.constant 128 : index
    %c0_53 = arith.constant 0 : index
    %109 = vector.load %arg10[%c128, %c0_53] : memref<512x32xbf16, #tpu.memory_space<vmem>>, vector<64x32xbf16>
    %cst_54 = arith.constant dense<0.000000e+00> : vector<4x32xf32>
    %110 = tpu.matmul %108, %109, %cst_54 {dimension_numbers = #tpu.dot_dimension_numbers<[1], [0], [0], [1], [0, 0, 1, 1], [], []>} : vector<4x64xbf16>, vector<64x32xbf16>, vector<4x32xf32> -> vector<4x32xf32>
    %111 = arith.addf %104, %110 : vector<4x32xf32>
    %112 = vector.extract_strided_slice %88 {offsets = [3, 0], sizes = [1, 64], strides = [1, 1]} : vector<8x64xf32> to vector<1x64xf32>
    %113 = vector.broadcast %112 : vector<1x64xf32> to vector<4x64xf32>
    %114 = arith.mulf %89, %113 : vector<4x64xf32>
    %115 = arith.truncf %114 : vector<4x64xf32> to vector<4x64xbf16>
    %c192 = arith.constant 192 : index
    %c0_55 = arith.constant 0 : index
    %116 = vector.load %arg10[%c192, %c0_55] : memref<512x32xbf16, #tpu.memory_space<vmem>>, vector<64x32xbf16>
    %cst_56 = arith.constant dense<0.000000e+00> : vector<4x32xf32>
    %117 = tpu.matmul %115, %116, %cst_56 {dimension_numbers = #tpu.dot_dimension_numbers<[1], [0], [0], [1], [0, 0, 1, 1], [], []>} : vector<4x64xbf16>, vector<64x32xbf16>, vector<4x32xf32> -> vector<4x32xf32>
    %118 = arith.addf %111, %117 : vector<4x32xf32>
    %119 = vector.extract_strided_slice %88 {offsets = [4, 0], sizes = [1, 64], strides = [1, 1]} : vector<8x64xf32> to vector<1x64xf32>
    %120 = vector.broadcast %119 : vector<1x64xf32> to vector<4x64xf32>
    %121 = arith.mulf %89, %120 : vector<4x64xf32>
    %122 = arith.truncf %121 : vector<4x64xf32> to vector<4x64xbf16>
    %c256 = arith.constant 256 : index
    %c0_57 = arith.constant 0 : index
    %123 = vector.load %arg10[%c256, %c0_57] : memref<512x32xbf16, #tpu.memory_space<vmem>>, vector<64x32xbf16>
    %cst_58 = arith.constant dense<0.000000e+00> : vector<4x32xf32>
    %124 = tpu.matmul %122, %123, %cst_58 {dimension_numbers = #tpu.dot_dimension_numbers<[1], [0], [0], [1], [0, 0, 1, 1], [], []>} : vector<4x64xbf16>, vector<64x32xbf16>, vector<4x32xf32> -> vector<4x32xf32>
    %125 = arith.addf %118, %124 : vector<4x32xf32>
    %126 = vector.extract_strided_slice %88 {offsets = [5, 0], sizes = [1, 64], strides = [1, 1]} : vector<8x64xf32> to vector<1x64xf32>
    %127 = vector.broadcast %126 : vector<1x64xf32> to vector<4x64xf32>
    %128 = arith.mulf %89, %127 : vector<4x64xf32>
    %129 = arith.truncf %128 : vector<4x64xf32> to vector<4x64xbf16>
    %c320 = arith.constant 320 : index
    %c0_59 = arith.constant 0 : index
    %130 = vector.load %arg10[%c320, %c0_59] : memref<512x32xbf16, #tpu.memory_space<vmem>>, vector<64x32xbf16>
    %cst_60 = arith.constant dense<0.000000e+00> : vector<4x32xf32>
    %131 = tpu.matmul %129, %130, %cst_60 {dimension_numbers = #tpu.dot_dimension_numbers<[1], [0], [0], [1], [0, 0, 1, 1], [], []>} : vector<4x64xbf16>, vector<64x32xbf16>, vector<4x32xf32> -> vector<4x32xf32>
    %132 = arith.addf %125, %131 : vector<4x32xf32>
    %133 = vector.extract_strided_slice %88 {offsets = [6, 0], sizes = [1, 64], strides = [1, 1]} : vector<8x64xf32> to vector<1x64xf32>
    %134 = vector.broadcast %133 : vector<1x64xf32> to vector<4x64xf32>
    %135 = arith.mulf %89, %134 : vector<4x64xf32>
    %136 = arith.truncf %135 : vector<4x64xf32> to vector<4x64xbf16>
    %c384 = arith.constant 384 : index
    %c0_61 = arith.constant 0 : index
    %137 = vector.load %arg10[%c384, %c0_61] : memref<512x32xbf16, #tpu.memory_space<vmem>>, vector<64x32xbf16>
    %cst_62 = arith.constant dense<0.000000e+00> : vector<4x32xf32>
    %138 = tpu.matmul %136, %137, %cst_62 {dimension_numbers = #tpu.dot_dimension_numbers<[1], [0], [0], [1], [0, 0, 1, 1], [], []>} : vector<4x64xbf16>, vector<64x32xbf16>, vector<4x32xf32> -> vector<4x32xf32>
    %139 = arith.addf %132, %138 : vector<4x32xf32>
    %140 = vector.extract_strided_slice %88 {offsets = [7, 0], sizes = [1, 64], strides = [1, 1]} : vector<8x64xf32> to vector<1x64xf32>
    %141 = vector.broadcast %140 : vector<1x64xf32> to vector<4x64xf32>
    %142 = arith.mulf %89, %141 : vector<4x64xf32>
    %143 = arith.truncf %142 : vector<4x64xf32> to vector<4x64xbf16>
    %c448 = arith.constant 448 : index
    %c0_63 = arith.constant 0 : index
    %144 = vector.load %arg10[%c448, %c0_63] : memref<512x32xbf16, #tpu.memory_space<vmem>>, vector<64x32xbf16>
    %cst_64 = arith.constant dense<0.000000e+00> : vector<4x32xf32>
    %145 = tpu.matmul %143, %144, %cst_64 {dimension_numbers = #tpu.dot_dimension_numbers<[1], [0], [0], [1], [0, 0, 1, 1], [], []>} : vector<4x64xbf16>, vector<64x32xbf16>, vector<4x32xf32> -> vector<4x32xf32>
    %146 = arith.addf %139, %145 : vector<4x32xf32>
    %c7 = arith.constant 7 : index
    %c0_65 = arith.constant 0 : index
    %147 = vector.load %arg13[%c7, %c0_65] : memref<10x128xf32, #tpu.memory_space<vmem>>, vector<1x32xf32>
    %148 = vector.broadcast %147 : vector<1x32xf32> to vector<4x32xf32>
    %149 = arith.addf %146, %148 : vector<4x32xf32>
    %150 = arith.truncf %149 : vector<4x32xf32> to vector<4x32xbf16>
    %c0_66 = arith.constant 0 : index
    %c0_67 = arith.constant 0 : index
    %151 = vector.load %arg11[%c0_66, %c0_67] : memref<32x32xbf16, #tpu.memory_space<vmem>>, vector<32x32xbf16>
    %cst_68 = arith.constant dense<0.000000e+00> : vector<4x32xf32>
    %152 = tpu.matmul %150, %151, %cst_68 {dimension_numbers = #tpu.dot_dimension_numbers<[1], [0], [0], [1], [0, 0, 1, 1], [], []>} : vector<4x32xbf16>, vector<32x32xbf16>, vector<4x32xf32> -> vector<4x32xf32>
    %c8 = arith.constant 8 : index
    %c0_69 = arith.constant 0 : index
    %153 = vector.load %arg13[%c8, %c0_69] : memref<10x128xf32, #tpu.memory_space<vmem>>, vector<1x32xf32>
    %154 = vector.broadcast %153 : vector<1x32xf32> to vector<4x32xf32>
    %155 = arith.addf %152, %154 : vector<4x32xf32>
    %156 = arith.truncf %155 : vector<4x32xf32> to vector<4x32xbf16>
    %c0_70 = arith.constant 0 : index
    %c0_71 = arith.constant 0 : index
    %157 = vector.load %arg12[%c0_70, %c0_71] : memref<32x128xbf16, #tpu.memory_space<vmem>>, vector<32x128xbf16>
    %cst_72 = arith.constant dense<0.000000e+00> : vector<4x128xf32>
    %158 = tpu.matmul %156, %157, %cst_72 {dimension_numbers = #tpu.dot_dimension_numbers<[1], [0], [0], [1], [0, 0, 1, 1], [], []>} : vector<4x32xbf16>, vector<32x128xbf16>, vector<4x128xf32> -> vector<4x128xf32>
    %c9 = arith.constant 9 : index
    %c0_73 = arith.constant 0 : index
    %159 = vector.load %arg13[%c9, %c0_73] : memref<10x128xf32, #tpu.memory_space<vmem>>, vector<1x128xf32>
    %160 = vector.broadcast %159 : vector<1x128xf32> to vector<4x128xf32>
    %161 = arith.addf %158, %160 : vector<4x128xf32>
    %c0_74 = arith.constant 0 : index
    %c0_75 = arith.constant 0 : index
    %c0_76 = arith.constant 0 : index
    %162 = vector.load %arg15[%c0_74, %c0_75, %c0_76] : memref<1x4x128xf32, #tpu.memory_space<vmem>>, vector<1x4x128xf32>
    %163 = vector.shape_cast %162 : vector<1x4x128xf32> to vector<4x128xf32>
    %164 = vector.shape_cast %161 : vector<4x128xf32> to vector<1x4x128xf32>
    tpu.vector_store %arg15[%c0_74, %c0_75, %c0_76], %164 {strides = array<i32>} : memref<1x4x128xf32, #tpu.memory_space<vmem>>, vector<1x4x128xf32>,
    return
  }
  func.func @transform_0(%arg0: i32) -> (i32, i32, i32) {
    %c0_i32 = arith.constant 0 : i32
    %c0_i32_0 = arith.constant 0 : i32
    %c0_i32_1 = arith.constant 0 : i32
    return %arg0, %c0_i32, %c0_i32_0 : i32, i32, i32
  }
  func.func @transform_1(%arg0: i32) -> (i32, i32, i32) {
    %c0_i32 = arith.constant 0 : i32
    %c0_i32_0 = arith.constant 0 : i32
    %c0_i32_1 = arith.constant 0 : i32
    return %arg0, %c0_i32, %c0_i32_0 : i32, i32, i32
  }
  func.func @transform_2(%arg0: i32) -> (i32, i32, i32) {
    %c0_i32 = arith.constant 0 : i32
    %c0_i32_0 = arith.constant 0 : i32
    %c0_i32_1 = arith.constant 0 : i32
    return %arg0, %c0_i32, %c0_i32_0 : i32, i32, i32
  }
  func.func @transform_3(%arg0: i32) -> (i32, i32) {
    %c0_i32 = arith.constant 0 : i32
    %c0_i32_0 = arith.constant 0 : i32
    return %arg0, %c0_i32 : i32, i32
  }
  func.func @transform_4(%arg0: i32) -> (i32, i32) {
    %c0_i32 = arith.constant 0 : i32
    %c0_i32_0 = arith.constant 0 : i32
    %c0_i32_1 = arith.constant 0 : i32
    return %c0_i32, %c0_i32_0 : i32, i32
  }
  func.func @transform_5(%arg0: i32) -> (i32, i32) {
    %c0_i32 = arith.constant 0 : i32
    %c0_i32_0 = arith.constant 0 : i32
    %c0_i32_1 = arith.constant 0 : i32
    return %c0_i32, %c0_i32_0 : i32, i32
  }
  func.func @transform_6(%arg0: i32) -> (i32, i32) {
    %c0_i32 = arith.constant 0 : i32
    %c0_i32_0 = arith.constant 0 : i32
    %c0_i32_1 = arith.constant 0 : i32
    return %c0_i32, %c0_i32_0 : i32, i32
  }
  func.func @transform_7(%arg0: i32) -> (i32, i32) {
    %c0_i32 = arith.constant 0 : i32
    %c0_i32_0 = arith.constant 0 : i32
    %c0_i32_1 = arith.constant 0 : i32
    return %c0_i32, %c0_i32_0 : i32, i32
  }
  func.func @transform_8(%arg0: i32) -> (i32, i32) {
    %c0_i32 = arith.constant 0 : i32
    %c0_i32_0 = arith.constant 0 : i32
    %c0_i32_1 = arith.constant 0 : i32
    return %c0_i32, %c0_i32_0 : i32, i32
  }
  func.func @transform_9(%arg0: i32) -> (i32, i32) {
    %c0_i32 = arith.constant 0 : i32
    %c0_i32_0 = arith.constant 0 : i32
    %c0_i32_1 = arith.constant 0 : i32
    return %c0_i32, %c0_i32_0 : i32, i32
  }
  func.func @transform_10(%arg0: i32) -> (i32, i32) {
    %c0_i32 = arith.constant 0 : i32
    %c0_i32_0 = arith.constant 0 : i32
    %c0_i32_1 = arith.constant 0 : i32
    return %c0_i32, %c0_i32_0 : i32, i32
  }
  func.func @transform_11(%arg0: i32) -> (i32, i32) {
    %c0_i32 = arith.constant 0 : i32
    %c0_i32_0 = arith.constant 0 : i32
    %c0_i32_1 = arith.constant 0 : i32
    return %c0_i32, %c0_i32_0 : i32, i32
  }
  func.func @transform_12(%arg0: i32) -> (i32, i32) {
    %c0_i32 = arith.constant 0 : i32
    %c0_i32_0 = arith.constant 0 : i32
    %c0_i32_1 = arith.constant 0 : i32
    return %c0_i32, %c0_i32_0 : i32, i32
  }
  func.func @transform_13(%arg0: i32) -> (i32, i32) {
    %c0_i32 = arith.constant 0 : i32
    %c0_i32_0 = arith.constant 0 : i32
    %c0_i32_1 = arith.constant 0 : i32
    return %c0_i32, %c0_i32_0 : i32, i32
  }
  func.func @transform_14(%arg0: i32) -> (i32, i32, i32) {
    %c0_i32 = arith.constant 0 : i32
    %c0_i32_0 = arith.constant 0 : i32
    %c0_i32_1 = arith.constant 0 : i32
    return %arg0, %c0_i32, %c0_i32_0 : i32, i32, i32
  }
}

</mosaic_0001>

<llo_original>
// kernel: tpu_custom_call.1
$region0: #{tpu_custom_call.1}
  #allocation0 [shape = 'u32[]', space=smem, size = 0x4, offset = 0x4, fixed_abs, tag = 'smem constant byte address 0x4 - core index']
  #allocation1 [shape = 'u32[144,128]{1,0:T(1,128)}', space=vmem, size = 0x12000, scoped, tag = 'internal scratch']
  %s0 = inlined_call_operand.vmem [shape: s32[2,1,1024], index: 0, kind: input, shape index: {}]
  %s1 = inlined_call_operand.vmem [shape: s32[2,1,1024], index: 1, kind: input, shape index: {}]
  %s2 = inlined_call_operand.vmem [shape: f32[2,1,1024], index: 2, kind: input, shape index: {}]
  %s3 = inlined_call_operand.vmem [shape: f32[128,16], index: 3, kind: input, shape index: {}]
  %s4 = inlined_call_operand.vmem [shape: bf16[16,32], index: 4, kind: input, shape index: {}]
  %s5 = inlined_call_operand.vmem [shape: bf16[32,32], index: 5, kind: input, shape index: {}]
  %s6 = inlined_call_operand.vmem [shape: bf16[32,32], index: 6, kind: input, shape index: {}]
  %s7 = inlined_call_operand.vmem [shape: bf16[32,16], index: 7, kind: input, shape index: {}]
  %s8 = inlined_call_operand.vmem [shape: bf16[16,8], index: 8, kind: input, shape index: {}]
  %s9 = inlined_call_operand.vmem [shape: bf16[512,32], index: 9, kind: input, shape index: {}]
  %s10 = inlined_call_operand.vmem [shape: bf16[32,32], index: 10, kind: input, shape index: {}]
  %s11 = inlined_call_operand.vmem [shape: bf16[32,128], index: 11, kind: input, shape index: {}]
  %s12 = inlined_call_operand.vmem [shape: f32[10,128], index: 12, kind: input, shape index: {}]
  %s13 = inlined_call_operand.vmem [shape: f32[4,64], index: 13, kind: input, shape index: {}]
  %s14 = inlined_call_operand.hbm [shape: f32[2,4,128], index: 14, kind: output, shape index: {}]
  %s15 = sld [smem:[#allocation0]]
  $region89: #{tpu_custom_call.1} parent=0
    _
  %s17 = ssub.s32 1, %s15
  %s18 = scalar_select 0, %s17, %s15
  $region1: #{tpu_custom_call.1} parent=0
    #allocation2 [shape = 'u8[4096]{0}', space=vmem, size = 0x1000, scoped, tag = 'output window, operand 0']
    #allocation3 [shape = 's32[2]{0}', space=sflag, size = 0x8, scoped, tag = 'scoped memory for tpu_custom_call.1']
    %19 = vsyncpa [#allocation3], 0
    %s20 = scalar_lea.sflag [#allocation3], 1
    %21 = vsyncpa %s20, 0
    loop: start=0, step=1, limit=4
    $region2: #{tpu_custom_call.1} parent=1 // loop_pre_header
      _
    $region3: #{tpu_custom_call.1} parent=1 // loop_header
      %s23 = sphi 0, %s27
      %p24 = scmp.ge.s32.totalorder %s23, 4
      %s33 = sphi 0, %s35
      %s36 = sphi 0, %s33
      %s37 = sphi 0, %s36
      %s53 = sphi 0, %s37
      %s59 = sphi 0, %s61
      %s62 = sphi 0, %s59
      %s63 = sphi 0, %s62
      %s79 = sphi 0, %s63
      %s85 = sphi 0, %s87
      %s88 = sphi 0, %s85
      %s89 = sphi 0, %s88
      %s105 = sphi 0, %s89
      %s111 = sphi 0, %s113
      %s114 = sphi 0, %s111
      %s115 = sphi 0, %s114
      %s131 = sphi 0, %s115
      %s135 = sphi 0, %s135
      %s137 = sphi 0, %s135
      %s138 = sphi 0, %s137
      %s152 = sphi 0, %s138
      %s156 = sphi 0, %s156
      %s158 = sphi 0, %s156
      %s159 = sphi 0, %s158
      %s173 = sphi 0, %s159
      %s177 = sphi 0, %s177
      %s179 = sphi 0, %s177
      %s180 = sphi 0, %s179
      %s194 = sphi 0, %s180
      %s198 = sphi 0, %s198
      %s200 = sphi 0, %s198
      %s201 = sphi 0, %s200
      %s215 = sphi 0, %s201
      %s219 = sphi 0, %s219
      %s221 = sphi 0, %s219
      %s222 = sphi 0, %s221
      %s236 = sphi 0, %s222
      %s240 = sphi 0, %s240
      %s242 = sphi 0, %s240
      %s243 = sphi 0, %s242
      %s257 = sphi 0, %s243
      %s261 = sphi 0, %s261
      %s263 = sphi 0, %s261
      %s264 = sphi 0, %s263
      %s278 = sphi 0, %s264
      %s282 = sphi 0, %s282
      %s284 = sphi 0, %s282
      %s285 = sphi 0, %s284
      %s299 = sphi 0, %s285
      %s303 = sphi 0, %s303
      %s305 = sphi 0, %s303
      %s306 = sphi 0, %s305
      %s320 = sphi 0, %s306
      %s324 = sphi 0, %s324
      %s326 = sphi 0, %s324
      %s327 = sphi 0, %s326
      %s341 = sphi 0, %s327
      %s347 = sphi 0, %s349
      %s350 = sphi 0, %s347
      %s351 = sphi 0, %s350
      %s367 = sphi 0, %s351
    $region4: #{tpu_custom_call.1} parent=1 // loop_header_branch
      %26 = sbr.rel (%p24) target = $region8
    $region5: #{tpu_custom_call.1} parent=1 // loop_body
      %s28 = ssub.s32 %s23, 1
      %s29 = ssub.s32 %s23, 2
      %s30 = sadd.s32 %s23, 1
      %s31 = ssub.s32 %s23, %s30
      %p32 = scmp.eq.s32.totalorder %s31, 0
      %s34 = sadd.s32 %s33, 1
      %s35 = scalar_select %p32, %s33, %s34
      %p38 = pneg %p32
      %p39 = scmp.eq.s32.totalorder %s23, 1
      %p40 = por %p38, %p39
      %p41 = scmp.ne.s32.totalorder %s33, %s36
      %p42 = scmp.eq.s32.totalorder %s23, 0
      %p43 = por %p41, %p42
      %p44 = scmp.ne.s32.totalorder %s33, %s36
      %p45 = scmp.eq.s32.totalorder %s28, 1
      %p46 = por %p44, %p45
      %p47 = scmp.ne.s32.totalorder %s36, %s37
      %p48 = scmp.eq.s32.totalorder %s28, 0
      %p49 = por %p47, %p48
      %p50 = scmp.ne.s32.totalorder %s36, %s37
      %p51 = scmp.eq.s32.totalorder %s29, 1
      %p52 = por %p50, %p51
      %p54 = scmp.ne.s32.totalorder %s37, %s53
      %p55 = scmp.eq.s32.totalorder %s29, 0
      %p56 = por %p54, %p55
      %s57 = ssub.s32 %s23, %s30
      %p58 = scmp.eq.s32.totalorder %s57, 0
      %s60 = sadd.s32 %s59, 1
      %s61 = scalar_select %p58, %s59, %s60
      %p64 = pneg %p58
      %p65 = scmp.eq.s32.totalorder %s23, 1
      %p66 = por %p64, %p65
      %p67 = scmp.ne.s32.totalorder %s59, %s62
      %p68 = scmp.eq.s32.totalorder %s23, 0
      %p69 = por %p67, %p68
      %p70 = scmp.ne.s32.totalorder %s59, %s62
      %p71 = scmp.eq.s32.totalorder %s28, 1
      %p72 = por %p70, %p71
      %p73 = scmp.ne.s32.totalorder %s62, %s63
      %p74 = scmp.eq.s32.totalorder %s28, 0
      %p75 = por %p73, %p74
      %p76 = scmp.ne.s32.totalorder %s62, %s63
      %p77 = scmp.eq.s32.totalorder %s29, 1
      %p78 = por %p76, %p77
      %p80 = scmp.ne.s32.totalorder %s63, %s79
      %p81 = scmp.eq.s32.totalorder %s29, 0
      %p82 = por %p80, %p81
      %s83 = ssub.s32 %s23, %s30
      %p84 = scmp.eq.s32.totalorder %s83, 0
      %s86 = sadd.s32 %s85, 1
      %s87 = scalar_select %p84, %s85, %s86
      %p90 = pneg %p84
      %p91 = scmp.eq.s32.totalorder %s23, 1
      %p92 = por %p90, %p91
      %p93 = scmp.ne.s32.totalorder %s85, %s88
      %p94 = scmp.eq.s32.totalorder %s23, 0
      %p95 = por %p93, %p94
      %p96 = scmp.ne.s32.totalorder %s85, %s88
      %p97 = scmp.eq.s32.totalorder %s28, 1
      %p98 = por %p96, %p97
      %p99 = scmp.ne.s32.totalorder %s88, %s89
      %p100 = scmp.eq.s32.totalorder %s28, 0
      %p101 = por %p99, %p100
      %p102 = scmp.ne.s32.totalorder %s88, %s89
      %p103 = scmp.eq.s32.totalorder %s29, 1
      %p104 = por %p102, %p103
      %p106 = scmp.ne.s32.totalorder %s89, %s105
      %p107 = scmp.eq.s32.totalorder %s29, 0
      %p108 = por %p106, %p107
      %s109 = ssub.s32 %s23, %s30
      %p110 = scmp.eq.s32.totalorder %s109, 0
      %s112 = sadd.s32 %s111, 1
      %s113 = scalar_select %p110, %s111, %s112
      %p116 = pneg %p110
      %p117 = scmp.eq.s32.totalorder %s23, 1
      %p118 = por %p116, %p117
      %p119 = scmp.ne.s32.totalorder %s111, %s114
      %p120 = scmp.eq.s32.totalorder %s23, 0
      %p121 = por %p119, %p120
      %p122 = scmp.ne.s32.totalorder %s111, %s114
      %p123 = scmp.eq.s32.totalorder %s28, 1
      %p124 = por %p122, %p123
      %p125 = scmp.ne.s32.totalorder %s114, %s115
      %p126 = scmp.eq.s32.totalorder %s28, 0
      %p127 = por %p125, %p126
      %p128 = scmp.ne.s32.totalorder %s114, %s115
      %p129 = scmp.eq.s32.totalorder %s29, 1
      %p130 = por %p128, %p129
      %p132 = scmp.ne.s32.totalorder %s115, %s131
      %p133 = scmp.eq.s32.totalorder %s29, 0
      %p134 = por %p132, %p133
      %s136 = sadd.s32 %s135, 1
      %p139 = scmp.eq.s32.totalorder %s23, 1
      %p140 = scmp.ne.s32.totalorder %s135, %s137
      %p141 = scmp.eq.s32.totalorder %s23, 0
      %p142 = por %p140, %p141
      %p143 = scmp.ne.s32.totalorder %s135, %s137
      %p144 = scmp.eq.s32.totalorder %s28, 1
      %p145 = por %p143, %p144
      %p146 = scmp.ne.s32.totalorder %s137, %s138
      %p147 = scmp.eq.s32.totalorder %s28, 0
      %p148 = por %p146, %p147
      %p149 = scmp.ne.s32.totalorder %s137, %s138
      %p150 = scmp.eq.s32.totalorder %s29, 1
      %p151 = por %p149, %p150
      %p153 = scmp.ne.s32.totalorder %s138, %s152
      %p154 = scmp.eq.s32.totalorder %s29, 0
      %p155 = por %p153, %p154
      %s157 = sadd.s32 %s156, 1
      %p160 = scmp.eq.s32.totalorder %s23, 1
      %p161 = scmp.ne.s32.totalorder %s156, %s158
      %p162 = scmp.eq.s32.totalorder %s23, 0
      %p163 = por %p161, %p162
      %p164 = scmp.ne.s32.totalorder %s156, %s158
      %p165 = scmp.eq.s32.totalorder %s28, 1
      %p166 = por %p164, %p165
      %p167 = scmp.ne.s32.totalorder %s158, %s159
      %p168 = scmp.eq.s32.totalorder %s28, 0
      %p169 = por %p167, %p168
      %p170 = scmp.ne.s32.totalorder %s158, %s159
      %p171 = scmp.eq.s32.totalorder %s29, 1
      %p172 = por %p170, %p171
      %p174 = scmp.ne.s32.totalorder %s159, %s173
      %p175 = scmp.eq.s32.totalorder %s29, 0
      %p176 = por %p174, %p175
      %s178 = sadd.s32 %s177, 1
      %p181 = scmp.eq.s32.totalorder %s23, 1
      %p182 = scmp.ne.s32.totalorder %s177, %s179
      %p183 = scmp.eq.s32.totalorder %s23, 0
      %p184 = por %p182, %p183
      %p185 = scmp.ne.s32.totalorder %s177, %s179
      %p186 = scmp.eq.s32.totalorder %s28, 1
      %p187 = por %p185, %p186
      %p188 = scmp.ne.s32.totalorder %s179, %s180
      %p189 = scmp.eq.s32.totalorder %s28, 0
      %p190 = por %p188, %p189
      %p191 = scmp.ne.s32.totalorder %s179, %s180
      %p192 = scmp.eq.s32.totalorder %s29, 1
      %p193 = por %p191, %p192
      %p195 = scmp.ne.s32.totalorder %s180, %s194
      %p196 = scmp.eq.s32.totalorder %s29, 0
      %p197 = por %p195, %p196
      %s199 = sadd.s32 %s198, 1
      %p202 = scmp.eq.s32.totalorder %s23, 1
      %p203 = scmp.ne.s32.totalorder %s198, %s200
      %p204 = scmp.eq.s32.totalorder %s23, 0
      %p205 = por %p203, %p204
      %p206 = scmp.ne.s32.totalorder %s198, %s200
      %p207 = scmp.eq.s32.totalorder %s28, 1
      %p208 = por %p206, %p207
      %p209 = scmp.ne.s32.totalorder %s200, %s201
      %p210 = scmp.eq.s32.totalorder %s28, 0
      %p211 = por %p209, %p210
      %p212 = scmp.ne.s32.totalorder %s200, %s201
      %p213 = scmp.eq.s32.totalorder %s29, 1
      %p214 = por %p212, %p213
      %p216 = scmp.ne.s32.totalorder %s201, %s215
      %p217 = scmp.eq.s32.totalorder %s29, 0
      %p218 = por %p216, %p217
      %s220 = sadd.s32 %s219, 1
      %p223 = scmp.eq.s32.totalorder %s23, 1
      %p224 = scmp.ne.s32.totalorder %s219, %s221
      %p225 = scmp.eq.s32.totalorder %s23, 0
      %p226 = por %p224, %p225
      %p227 = scmp.ne.s32.totalorder %s219, %s221
      %p228 = scmp.eq.s32.totalorder %s28, 1
      %p229 = por %p227, %p228
      %p230 = scmp.ne.s32.totalorder %s221, %s222
      %p231 = scmp.eq.s32.totalorder %s28, 0
      %p232 = por %p230, %p231
      %p233 = scmp.ne.s32.totalorder %s221, %s222
      %p234 = scmp.eq.s32.totalorder %s29, 1
      %p235 = por %p233, %p234
      %p237 = scmp.ne.s32.totalorder %s222, %s236
      %p238 = scmp.eq.s32.totalorder %s29, 0
      %p239 = por %p237, %p238
      %s241 = sadd.s32 %s240, 1
      %p244 = scmp.eq.s32.totalorder %s23, 1
      %p245 = scmp.ne.s32.totalorder %s240, %s242
      %p246 = scmp.eq.s32.totalorder %s23, 0
      %p247 = por %p245, %p246
      %p248 = scmp.ne.s32.totalorder %s240, %s242
      %p249 = scmp.eq.s32.totalorder %s28, 1
      %p250 = por %p248, %p249
      %p251 = scmp.ne.s32.totalorder %s242, %s243
      %p252 = scmp.eq.s32.totalorder %s28, 0
      %p253 = por %p251, %p252
      %p254 = scmp.ne.s32.totalorder %s242, %s243
      %p255 = scmp.eq.s32.totalorder %s29, 1
      %p256 = por %p254, %p255
      %p258 = scmp.ne.s32.totalorder %s243, %s257
      %p259 = scmp.eq.s32.totalorder %s29, 0
      %p260 = por %p258, %p259
      %s262 = sadd.s32 %s261, 1
      %p265 = scmp.eq.s32.totalorder %s23, 1
      %p266 = scmp.ne.s32.totalorder %s261, %s263
      %p267 = scmp.eq.s32.totalorder %s23, 0
      %p268 = por %p266, %p267
      %p269 = scmp.ne.s32.totalorder %s261, %s263
      %p270 = scmp.eq.s32.totalorder %s28, 1
      %p271 = por %p269, %p270
      %p272 = scmp.ne.s32.totalorder %s263, %s264
      %p273 = scmp.eq.s32.totalorder %s28, 0
      %p274 = por %p272, %p273
      %p275 = scmp.ne.s32.totalorder %s263, %s264
      %p276 = scmp.eq.s32.totalorder %s29, 1
      %p277 = por %p275, %p276
      %p279 = scmp.ne.s32.totalorder %s264, %s278
      %p280 = scmp.eq.s32.totalorder %s29, 0
      %p281 = por %p279, %p280
      %s283 = sadd.s32 %s282, 1
      %p286 = scmp.eq.s32.totalorder %s23, 1
      %p287 = scmp.ne.s32.totalorder %s282, %s284
      %p288 = scmp.eq.s32.totalorder %s23, 0
      %p289 = por %p287, %p288
      %p290 = scmp.ne.s32.totalorder %s282, %s284
      %p291 = scmp.eq.s32.totalorder %s28, 1
      %p292 = por %p290, %p291
      %p293 = scmp.ne.s32.totalorder %s284, %s285
      %p294 = scmp.eq.s32.totalorder %s28, 0
      %p295 = por %p293, %p294
      %p296 = scmp.ne.s32.totalorder %s284, %s285
      %p297 = scmp.eq.s32.totalorder %s29, 1
      %p298 = por %p296, %p297
      %p300 = scmp.ne.s32.totalorder %s285, %s299
      %p301 = scmp.eq.s32.totalorder %s29, 0
      %p302 = por %p300, %p301
      %s304 = sadd.s32 %s303, 1
      %p307 = scmp.eq.s32.totalorder %s23, 1
      %p308 = scmp.ne.s32.totalorder %s303, %s305
      %p309 = scmp.eq.s32.totalorder %s23, 0
      %p310 = por %p308, %p309
      %p311 = scmp.ne.s32.totalorder %s303, %s305
      %p312 = scmp.eq.s32.totalorder %s28, 1
      %p313 = por %p311, %p312
      %p314 = scmp.ne.s32.totalorder %s305, %s306
      %p315 = scmp.eq.s32.totalorder %s28, 0
      %p316 = por %p314, %p315
      %p317 = scmp.ne.s32.totalorder %s305, %s306
      %p318 = scmp.eq.s32.totalorder %s29, 1
      %p319 = por %p317, %p318
      %p321 = scmp.ne.s32.totalorder %s306, %s320
      %p322 = scmp.eq.s32.totalorder %s29, 0
      %p323 = por %p321, %p322
      %s325 = sadd.s32 %s324, 1
      %p328 = scmp.eq.s32.totalorder %s23, 1
      %p329 = scmp.ne.s32.totalorder %s324, %s326
      %p330 = scmp.eq.s32.totalorder %s23, 0
      %p331 = por %p329, %p330
      %p332 = scmp.ne.s32.totalorder %s324, %s326
      %p333 = scmp.eq.s32.totalorder %s28, 1
      %p334 = por %p332, %p333
      %p335 = scmp.ne.s32.totalorder %s326, %s327
      %p336 = scmp.eq.s32.totalorder %s28, 0
      %p337 = por %p335, %p336
      %p338 = scmp.ne.s32.totalorder %s326, %s327
      %p339 = scmp.eq.s32.totalorder %s29, 1
      %p340 = por %p338, %p339
      %p342 = scmp.ne.s32.totalorder %s327, %s341
      %p343 = scmp.eq.s32.totalorder %s29, 0
      %p344 = por %p342, %p343
      %s345 = ssub.s32 %s23, %s30
      %p346 = scmp.eq.s32.totalorder %s345, 0
      %s348 = sadd.s32 %s347, 1
      %s349 = scalar_select %p346, %s347, %s348
      %p352 = pneg %p346
      %p353 = scmp.eq.s32.totalorder %s23, 1
      %p354 = por %p352, %p353
      %p355 = scmp.ne.s32.totalorder %s347, %s350
      %p356 = scmp.eq.s32.totalorder %s23, 0
      %p357 = por %p355, %p356
      %p358 = scmp.ne.s32.totalorder %s347, %s350
      %p359 = scmp.eq.s32.totalorder %s28, 1
      %p360 = por %p358, %p359
      %p361 = scmp.ne.s32.totalorder %s350, %s351
      %p362 = scmp.eq.s32.totalorder %s28, 0
      %p363 = por %p361, %p362
      %p364 = scmp.ne.s32.totalorder %s350, %s351
      %p365 = scmp.eq.s32.totalorder %s29, 1
      %p366 = por %p364, %p365
      %p368 = scmp.ne.s32.totalorder %s351, %s367
      %p369 = scmp.eq.s32.totalorder %s29, 0
      %p370 = por %p368, %p369
      %p371 = scmp.le.s32.totalorder 1, %s23
      %p372 = scmp.lt.s32.totalorder %s23, 3
      %p373 = pnand %p371, %p372
      %p374 = pneg %p373
      // Predicated region
      $region9: #{tpu_custom_call.1} parent=5 // pred_check
        _
      $region10: #{tpu_custom_call.1} parent=5 // pred_check_branch
        %376 = sbr.rel (%p373) target = $region12
      $region11: #{tpu_custom_call.1} parent=5 // pred_region
        %s377 = ssub.s32 %s23, 1
        // Predicated region
        $region13: #{tpu_custom_call.1} parent=11 // pred_check
          %p378 = pneg %p148
        $region14: #{tpu_custom_call.1} parent=11 // pred_check_branch
          %380 = sbr.rel (%p378) target = $region16
        $region15: #{tpu_custom_call.1} parent=11 // pred_region
          _
        $region16: #{tpu_custom_call.1} parent=11 // pred_fallthru
          _
        // Predicated region
        $region17: #{tpu_custom_call.1} parent=11 // pred_check
          %p381 = pneg %p169
        $region18: #{tpu_custom_call.1} parent=11 // pred_check_branch
          %383 = sbr.rel (%p381) target = $region20
        $region19: #{tpu_custom_call.1} parent=11 // pred_region
          _
        $region20: #{tpu_custom_call.1} parent=11 // pred_fallthru
          _
        // Predicated region
        $region21: #{tpu_custom_call.1} parent=11 // pred_check
          %p384 = pneg %p190
        $region22: #{tpu_custom_call.1} parent=11 // pred_check_branch
          %386 = sbr.rel (%p384) target = $region24
        $region23: #{tpu_custom_call.1} parent=11 // pred_region
          _
        $region24: #{tpu_custom_call.1} parent=11 // pred_fallthru
          _
        // Predicated region
        $region25: #{tpu_custom_call.1} parent=11 // pred_check
          %p387 = pneg %p211
        $region26: #{tpu_custom_call.1} parent=11 // pred_check_branch
          %389 = sbr.rel (%p387) target = $region28
        $region27: #{tpu_custom_call.1} parent=11 // pred_region
          _
        $region28: #{tpu_custom_call.1} parent=11 // pred_fallthru
          _
        // Predicated region
        $region29: #{tpu_custom_call.1} parent=11 // pred_check
          %p390 = pneg %p232
        $region30: #{tpu_custom_call.1} parent=11 // pred_check_branch
          %392 = sbr.rel (%p390) target = $region32
        $region31: #{tpu_custom_call.1} parent=11 // pred_region
          _
        $region32: #{tpu_custom_call.1} parent=11 // pred_fallthru
          _
        // Predicated region
        $region33: #{tpu_custom_call.1} parent=11 // pred_check
          %p393 = pneg %p253
        $region34: #{tpu_custom_call.1} parent=11 // pred_check_branch
          %395 = sbr.rel (%p393) target = $region36
        $region35: #{tpu_custom_call.1} parent=11 // pred_region
          _
        $region36: #{tpu_custom_call.1} parent=11 // pred_fallthru
          _
        // Predicated region
        $region37: #{tpu_custom_call.1} parent=11 // pred_check
          %p396 = pneg %p274
        $region38: #{tpu_custom_call.1} parent=11 // pred_check_branch
          %398 = sbr.rel (%p396) target = $region40
        $region39: #{tpu_custom_call.1} parent=11 // pred_region
          _
        $region40: #{tpu_custom_call.1} parent=11 // pred_fallthru
          _
        // Predicated region
        $region41: #{tpu_custom_call.1} parent=11 // pred_check
          %p399 = pneg %p295
        $region42: #{tpu_custom_call.1} parent=11 // pred_check_branch
          %401 = sbr.rel (%p399) target = $region44
        $region43: #{tpu_custom_call.1} parent=11 // pred_region
          _
        $region44: #{tpu_custom_call.1} parent=11 // pred_fallthru
          _
        // Predicated region
        $region45: #{tpu_custom_call.1} parent=11 // pred_check
          %p402 = pneg %p316
        $region46: #{tpu_custom_call.1} parent=11 // pred_check_branch
          %404 = sbr.rel (%p402) target = $region48
        $region47: #{tpu_custom_call.1} parent=11 // pred_region
          _
        $region48: #{tpu_custom_call.1} parent=11 // pred_fallthru
          _
        // Predicated region
        $region49: #{tpu_custom_call.1} parent=11 // pred_check
          %p405 = pneg %p337
        $region50: #{tpu_custom_call.1} parent=11 // pred_check_branch
          %407 = sbr.rel (%p405) target = $region52
        $region51: #{tpu_custom_call.1} parent=11 // pred_region
          _
        $region52: #{tpu_custom_call.1} parent=11 // pred_fallthru
          _
      $region12: #{tpu_custom_call.1} parent=5 // pred_fallthru
        _
      %p408 = scmp.lt.s32.totalorder %s23, 2
      // Predicated region
      $region53: #{tpu_custom_call.1} parent=5 // pred_check
        %p409 = pneg %p408
      $region54: #{tpu_custom_call.1} parent=5 // pred_check_branch
        %411 = sbr.rel (%p409) target = $region56
      $region55: #{tpu_custom_call.1} parent=5 // pred_region
        // Predicated region
        $region57: #{tpu_custom_call.1} parent=55 // pred_check
          %p412 = pneg %p43
        $region58: #{tpu_custom_call.1} parent=55 // pred_check_branch
          %414 = sbr.rel (%p412) target = $region60
        $region59: #{tpu_custom_call.1} parent=55 // pred_region
          %p415 = scmp.lt.s32.totalorder %s23, 1
          %s416 = scalar_select %p415, %s23, 1
          %s417 = smul.addr %s416, 8
          %s418 = scalar_lea.vmem %s0, %s417
        $region60: #{tpu_custom_call.1} parent=55 // pred_fallthru
          _
        // Predicated region
        $region61: #{tpu_custom_call.1} parent=55 // pred_check
          %p419 = pneg %p69
        $region62: #{tpu_custom_call.1} parent=55 // pred_check_branch
          %421 = sbr.rel (%p419) target = $region64
        $region63: #{tpu_custom_call.1} parent=55 // pred_region
          %p422 = scmp.lt.s32.totalorder %s23, 1
          %s423 = scalar_select %p422, %s23, 1
          %s424 = smul.addr %s423, 8
          %s425 = scalar_lea.vmem %s1, %s424
        $region64: #{tpu_custom_call.1} parent=55 // pred_fallthru
          _
        // Predicated region
        $region65: #{tpu_custom_call.1} parent=55 // pred_check
          %p426 = pneg %p95
        $region66: #{tpu_custom_call.1} parent=55 // pred_check_branch
          %428 = sbr.rel (%p426) target = $region68
        $region67: #{tpu_custom_call.1} parent=55 // pred_region
          %p429 = scmp.lt.s32.totalorder %s23, 1
          %s430 = scalar_select %p429, %s23, 1
          %s431 = smul.addr %s430, 8
          %s432 = scalar_lea.vmem %s2, %s431
        $region68: #{tpu_custom_call.1} parent=55 // pred_fallthru
          _
        // Predicated region
        $region69: #{tpu_custom_call.1} parent=55 // pred_check
          %p433 = pneg %p121
        $region70: #{tpu_custom_call.1} parent=55 // pred_check_branch
          %435 = sbr.rel (%p433) target = $region72
        $region71: #{tpu_custom_call.1} parent=55 // pred_region
          %s436 = smul.u32 8, %s23
          %p437 = scmp.lt.s32.totalorder %s436, 15
          %s438 = scalar_select %p437, %s436, 15
          %s439 = smul.addr %s438, 8
          %s440 = scalar_lea.vmem %s3, %s439
          %s441 = smul.u32 8, %s23
        $region72: #{tpu_custom_call.1} parent=55 // pred_fallthru
          _
      $region56: #{tpu_custom_call.1} parent=5 // pred_fallthru
        _
      %p442 = scmp.le.s32.totalorder 1, %s23
      %p443 = scmp.lt.s32.totalorder %s23, 3
      %p444 = pnand %p442, %p443
      %p445 = pneg %p444
      // Predicated region
      $region73: #{tpu_custom_call.1} parent=5 // pred_check
        _
      $region74: #{tpu_custom_call.1} parent=5 // pred_check_branch
        %447 = sbr.rel (%p444) target = $region76
      $region75: #{tpu_custom_call.1} parent=5 // pred_region
        %s448 = ssub.s32 %s23, 1
        %p449 = scmp.lt.s32.totalorder %s28, 1
        %s450 = scalar_select %p449, %s28, 1
        %s451 = smul.addr %s450, 8
        %s452 = scalar_lea.vmem %s0, %s451
        %p453 = pneg %p49
        %p454 = pneg %p46
        %p455 = scmp.lt.s32.totalorder %s28, 1
        %s456 = scalar_select %p455, %s28, 1
        %s457 = smul.addr %s456, 8
        %s458 = scalar_lea.vmem %s1, %s457
        %p459 = pneg %p75
        %p460 = pneg %p72
        %p461 = scmp.lt.s32.totalorder %s28, 1
        %s462 = scalar_select %p461, %s28, 1
        %s463 = smul.addr %s462, 8
        %s464 = scalar_lea.vmem %s2, %s463
        %p465 = pneg %p101
        %p466 = pneg %p98
        %s467 = smul.u32 8, %s28
        %p468 = scmp.lt.s32.totalorder %s467, 15
        %s469 = scalar_select %p468, %s467, 15
        %s470 = smul.addr %s469, 8
        %s471 = scalar_lea.vmem %s3, %s470
        %p472 = pneg %p127
        %p473 = pneg %p124
        %p474 = pneg %p148
        %p475 = pneg %p145
        %p476 = pneg %p169
        %p477 = pneg %p166
        %p478 = pneg %p190
        %p479 = pneg %p187
        %p480 = pneg %p211
        %p481 = pneg %p208
        %p482 = pneg %p232
        %p483 = pneg %p229
        %p484 = pneg %p253
        %p485 = pneg %p250
        %p486 = pneg %p274
        %p487 = pneg %p271
        %p488 = pneg %p295
        %p489 = pneg %p292
        %p490 = pneg %p316
        %p491 = pneg %p313
        %p492 = pneg %p337
        %p493 = pneg %p334
        %p494 = pneg %p363
        %p495 = pneg %p360
        %s496 = sand.u32 %s350, 1
        %s497 = scalar_lea.sflag [#allocation3], %s496
        %s498 = sand.u32 %s350, 1
        %s499 = smul.addr %s498, 4
        %s500 = scalar_lea.vmem [#allocation2], %s499
        %p501 = scmp.lt.s32.totalorder %s28, 1
        %s502 = scalar_select %p501, %s28, 1
        %s503 = smul.addr %s502, 8
        %s504 = scalar_lea.vmem %s0, %s503
        %p505 = scmp.lt.s32.totalorder %s28, 1
        %s506 = scalar_select %p505, %s28, 1
        %s507 = smul.addr %s506, 8
        %s508 = scalar_lea.vmem %s1, %s507
        %p509 = scmp.lt.s32.totalorder %s28, 1
        %s510 = scalar_select %p509, %s28, 1
        %s511 = smul.addr %s510, 8
        %s512 = scalar_lea.vmem %s2, %s511
        %s513 = smul.u32 8, %s28
        %p514 = scmp.lt.s32.totalorder %s513, 15
        %s515 = scalar_select %p514, %s513, 15
        %s516 = smul.addr %s515, 8
        %s517 = scalar_lea.vmem %s3, %s516
        %s518 = smul.u32 8, %s28
        %v520 = vld [vmem:[%s504] sm:$0xff]
        %v521 = vld [vmem:[%s508] sm:$0xff]
        %v522 = vld [vmem:[%s512] sm:$0xff]
        %v523 = vlaneseq
        %v524 = vshrl.u32 %v523, 7
        %v525 = vadd.s32 %v524, 8
        %v526 = vadd.s32 %v524, 16
        %v527 = vadd.s32 %v524, 24
        %v528 = vadd.s32 %v524, 32
        %v529 = vadd.s32 %v524, 40
        %v530 = vadd.s32 %v524, 48
        %v531 = vadd.s32 %v524, 56
        %v532 = vlaneseq
        %v533 = vshrl.u32 %v532, 7
        %v534 = vsub.s32 0, %v533
        %v535 = vrot.slane %v521, %v534
        %v536 = vlaneseq
        %v537 = vshrl.u32 %v536, 7
        %v538 = vsub.s32 1, %v537
        %v539 = vrot.slane %v521, %v538
        %v540 = vlaneseq
        %v541 = vshrl.u32 %v540, 7
        %v542 = vsub.s32 2, %v541
        %v543 = vrot.slane %v521, %v542
        %v544 = vlaneseq
        %v545 = vshrl.u32 %v544, 7
        %v546 = vsub.s32 3, %v545
        %v547 = vrot.slane %v521, %v546
        %v548 = vlaneseq
        %v549 = vshrl.u32 %v548, 7
        %v550 = vsub.s32 4, %v549
        %v551 = vrot.slane %v521, %v550
        %v552 = vlaneseq
        %v553 = vshrl.u32 %v552, 7
        %v554 = vsub.s32 5, %v553
        %v555 = vrot.slane %v521, %v554
        %v556 = vlaneseq
        %v557 = vshrl.u32 %v556, 7
        %v558 = vsub.s32 6, %v557
        %v559 = vrot.slane %v521, %v558
        %v560 = vlaneseq
        %v561 = vshrl.u32 %v560, 7
        %v562 = vsub.s32 7, %v561
        %v563 = vrot.slane %v521, %v562
        %vm564 = vcmp.eq.s32.totalorder %v524, %v535
        %vm565 = vcmp.eq.s32.totalorder %v524, %v539
        %vm566 = vcmp.eq.s32.totalorder %v524, %v543
        %vm567 = vcmp.eq.s32.totalorder %v524, %v547
        %vm568 = vcmp.eq.s32.totalorder %v524, %v551
        %vm569 = vcmp.eq.s32.totalorder %v524, %v555
        %vm570 = vcmp.eq.s32.totalorder %v524, %v559
        %vm571 = vcmp.eq.s32.totalorder %v524, %v563
        %vm572 = vcmp.eq.s32.totalorder %v525, %v535
        %vm573 = vcmp.eq.s32.totalorder %v525, %v539
        %vm574 = vcmp.eq.s32.totalorder %v525, %v543
        %vm575 = vcmp.eq.s32.totalorder %v525, %v547
        %vm576 = vcmp.eq.s32.totalorder %v525, %v551
        %vm577 = vcmp.eq.s32.totalorder %v525, %v555
        %vm578 = vcmp.eq.s32.totalorder %v525, %v559
        %vm579 = vcmp.eq.s32.totalorder %v525, %v563
        %vm580 = vcmp.eq.s32.totalorder %v526, %v535
        %vm581 = vcmp.eq.s32.totalorder %v526, %v539
        %vm582 = vcmp.eq.s32.totalorder %v526, %v543
        %vm583 = vcmp.eq.s32.totalorder %v526, %v547
        %vm584 = vcmp.eq.s32.totalorder %v526, %v551
        %vm585 = vcmp.eq.s32.totalorder %v526, %v555
        %vm586 = vcmp.eq.s32.totalorder %v526, %v559
        %vm587 = vcmp.eq.s32.totalorder %v526, %v563
        %vm588 = vcmp.eq.s32.totalorder %v527, %v535
        %vm589 = vcmp.eq.s32.totalorder %v527, %v539
        %vm590 = vcmp.eq.s32.totalorder %v527, %v543
        %vm591 = vcmp.eq.s32.totalorder %v527, %v547
        %vm592 = vcmp.eq.s32.totalorder %v527, %v551
        %vm593 = vcmp.eq.s32.totalorder %v527, %v555
        %vm594 = vcmp.eq.s32.totalorder %v527, %v559
        %vm595 = vcmp.eq.s32.totalorder %v527, %v563
        %vm596 = vcmp.eq.s32.totalorder %v528, %v535
        %vm597 = vcmp.eq.s32.totalorder %v528, %v539
        %vm598 = vcmp.eq.s32.totalorder %v528, %v543
        %vm599 = vcmp.eq.s32.totalorder %v528, %v547
        %vm600 = vcmp.eq.s32.totalorder %v528, %v551
        %vm601 = vcmp.eq.s32.totalorder %v528, %v555
        %vm602 = vcmp.eq.s32.totalorder %v528, %v559
        %vm603 = vcmp.eq.s32.totalorder %v528, %v563
        %vm604 = vcmp.eq.s32.totalorder %v529, %v535
        %vm605 = vcmp.eq.s32.totalorder %v529, %v539
        %vm606 = vcmp.eq.s32.totalorder %v529, %v543
        %vm607 = vcmp.eq.s32.totalorder %v529, %v547
        %vm608 = vcmp.eq.s32.totalorder %v529, %v551
        %vm609 = vcmp.eq.s32.totalorder %v529, %v555
        %vm610 = vcmp.eq.s32.totalorder %v529, %v559
        %vm611 = vcmp.eq.s32.totalorder %v529, %v563
        %vm612 = vcmp.eq.s32.totalorder %v530, %v535
        %vm613 = vcmp.eq.s32.totalorder %v530, %v539
        %vm614 = vcmp.eq.s32.totalorder %v530, %v543
        %vm615 = vcmp.eq.s32.totalorder %v530, %v547
        %vm616 = vcmp.eq.s32.totalorder %v530, %v551
        %vm617 = vcmp.eq.s32.totalorder %v530, %v555
        %vm618 = vcmp.eq.s32.totalorder %v530, %v559
        %vm619 = vcmp.eq.s32.totalorder %v530, %v563
        %vm620 = vcmp.eq.s32.totalorder %v531, %v535
        %vm621 = vcmp.eq.s32.totalorder %v531, %v539
        %vm622 = vcmp.eq.s32.totalorder %v531, %v543
        %vm623 = vcmp.eq.s32.totalorder %v531, %v547
        %vm624 = vcmp.eq.s32.totalorder %v531, %v551
        %vm625 = vcmp.eq.s32.totalorder %v531, %v555
        %vm626 = vcmp.eq.s32.totalorder %v531, %v559
        %vm627 = vcmp.eq.s32.totalorder %v531, %v563
        %v628 = vand.u32 2147483647, %v522
        %v630 = vlaneseq
        %v631 = vshrl.u32 %v630, 7
        %v632 = vsub.s32 0, %v631
        %v633 = vrot.slane %v628, %v632
        %v634 = vlaneseq
        %v635 = vshrl.u32 %v634, 7
        %v636 = vsub.s32 1, %v635
        %v637 = vrot.slane %v628, %v636
        %v638 = vlaneseq
        %v639 = vshrl.u32 %v638, 7
        %v640 = vsub.s32 2, %v639
        %v641 = vrot.slane %v628, %v640
        %v642 = vlaneseq
        %v643 = vshrl.u32 %v642, 7
        %v644 = vsub.s32 3, %v643
        %v645 = vrot.slane %v628, %v644
        %v646 = vlaneseq
        %v647 = vshrl.u32 %v646, 7
        %v648 = vsub.s32 4, %v647
        %v649 = vrot.slane %v628, %v648
        %v650 = vlaneseq
        %v651 = vshrl.u32 %v650, 7
        %v652 = vsub.s32 5, %v651
        %v653 = vrot.slane %v628, %v652
        %v654 = vlaneseq
        %v655 = vshrl.u32 %v654, 7
        %v656 = vsub.s32 6, %v655
        %v657 = vrot.slane %v628, %v656
        %v658 = vlaneseq
        %v659 = vshrl.u32 %v658, 7
        %v660 = vsub.s32 7, %v659
        %v661 = vrot.slane %v628, %v660
        %v670 = vsel %vm564, %v633, 0.0
        %v671 = vsel %vm565, %v637, 0.0
        %v672 = vsel %vm566, %v641, 0.0
        %v673 = vsel %vm567, %v645, 0.0
        %v674 = vsel %vm568, %v649, 0.0
        %v675 = vsel %vm569, %v653, 0.0
        %v676 = vsel %vm570, %v657, 0.0
        %v677 = vsel %vm571, %v661, 0.0
        %v678 = vsel %vm572, %v633, 0.0
        %v679 = vsel %vm573, %v637, 0.0
        %v680 = vsel %vm574, %v641, 0.0
        %v681 = vsel %vm575, %v645, 0.0
        %v682 = vsel %vm576, %v649, 0.0
        %v683 = vsel %vm577, %v653, 0.0
        %v684 = vsel %vm578, %v657, 0.0
        %v685 = vsel %vm579, %v661, 0.0
        %v686 = vsel %vm580, %v633, 0.0
        %v687 = vsel %vm581, %v637, 0.0
        %v688 = vsel %vm582, %v641, 0.0
        %v689 = vsel %vm583, %v645, 0.0
        %v690 = vsel %vm584, %v649, 0.0
        %v691 = vsel %vm585, %v653, 0.0
        %v692 = vsel %vm586, %v657, 0.0
        %v693 = vsel %vm587, %v661, 0.0
        %v694 = vsel %vm588, %v633, 0.0
        %v695 = vsel %vm589, %v637, 0.0
        %v696 = vsel %vm590, %v641, 0.0
        %v697 = vsel %vm591, %v645, 0.0
        %v698 = vsel %vm592, %v649, 0.0
        %v699 = vsel %vm593, %v653, 0.0
        %v700 = vsel %vm594, %v657, 0.0
        %v701 = vsel %vm595, %v661, 0.0
        %v702 = vsel %vm596, %v633, 0.0
        %v703 = vsel %vm597, %v637, 0.0
        %v704 = vsel %vm598, %v641, 0.0
        %v705 = vsel %vm599, %v645, 0.0
        %v706 = vsel %vm600, %v649, 0.0
        %v707 = vsel %vm601, %v653, 0.0
        %v708 = vsel %vm602, %v657, 0.0
        %v709 = vsel %vm603, %v661, 0.0
        %v710 = vsel %vm604, %v633, 0.0
        %v711 = vsel %vm605, %v637, 0.0
        %v712 = vsel %vm606, %v641, 0.0
        %v713 = vsel %vm607, %v645, 0.0
        %v714 = vsel %vm608, %v649, 0.0
        %v715 = vsel %vm609, %v653, 0.0
        %v716 = vsel %vm610, %v657, 0.0
        %v717 = vsel %vm611, %v661, 0.0
        %v718 = vsel %vm612, %v633, 0.0
        %v719 = vsel %vm613, %v637, 0.0
        %v720 = vsel %vm614, %v641, 0.0
        %v721 = vsel %vm615, %v645, 0.0
        %v722 = vsel %vm616, %v649, 0.0
        %v723 = vsel %vm617, %v653, 0.0
        %v724 = vsel %vm618, %v657, 0.0
        %v725 = vsel %vm619, %v661, 0.0
        %v726 = vsel %vm620, %v633, 0.0
        %v727 = vsel %vm621, %v637, 0.0
        %v728 = vsel %vm622, %v641, 0.0
        %v729 = vsel %vm623, %v645, 0.0
        %v730 = vsel %vm624, %v649, 0.0
        %v731 = vsel %vm625, %v653, 0.0
        %v732 = vsel %vm626, %v657, 0.0
        %v733 = vsel %vm627, %v661, 0.0
        %v734 = vlaneseq
        %v735 = vshrl.u32 %v734, 7
        %v736 = vsub.s32 0, %v735
        %v737 = vrot.slane %v520, %v736
        %v738 = vlaneseq
        %v739 = vshrl.u32 %v738, 7
        %v740 = vsub.s32 1, %v739
        %v741 = vrot.slane %v520, %v740
        %v742 = vlaneseq
        %v743 = vshrl.u32 %v742, 7
        %v744 = vsub.s32 2, %v743
        %v745 = vrot.slane %v520, %v744
        %v746 = vlaneseq
        %v747 = vshrl.u32 %v746, 7
        %v748 = vsub.s32 3, %v747
        %v749 = vrot.slane %v520, %v748
        %v750 = vlaneseq
        %v751 = vshrl.u32 %v750, 7
        %v752 = vsub.s32 4, %v751
        %v753 = vrot.slane %v520, %v752
        %v754 = vlaneseq
        %v755 = vshrl.u32 %v754, 7
        %v756 = vsub.s32 5, %v755
        %v757 = vrot.slane %v520, %v756
        %v758 = vlaneseq
        %v759 = vshrl.u32 %v758, 7
        %v760 = vsub.s32 6, %v759
        %v761 = vrot.slane %v520, %v760
        %v762 = vlaneseq
        %v763 = vshrl.u32 %v762, 7
        %v764 = vsub.s32 7, %v763
        %v765 = vrot.slane %v520, %v764
        %vm766 = vcmp.eq.s32.totalorder %v524, %v737
        %vm767 = vcmp.eq.s32.totalorder %v524, %v741
        %vm768 = vcmp.eq.s32.totalorder %v524, %v745
        %vm769 = vcmp.eq.s32.totalorder %v524, %v749
        %vm770 = vcmp.eq.s32.totalorder %v524, %v753
        %vm771 = vcmp.eq.s32.totalorder %v524, %v757
        %vm772 = vcmp.eq.s32.totalorder %v524, %v761
        %vm773 = vcmp.eq.s32.totalorder %v524, %v765
        %vm774 = vcmp.eq.s32.totalorder %v525, %v737
        %vm775 = vcmp.eq.s32.totalorder %v525, %v741
        %vm776 = vcmp.eq.s32.totalorder %v525, %v745
        %vm777 = vcmp.eq.s32.totalorder %v525, %v749
        %vm778 = vcmp.eq.s32.totalorder %v525, %v753
        %vm779 = vcmp.eq.s32.totalorder %v525, %v757
        %vm780 = vcmp.eq.s32.totalorder %v525, %v761
        %vm781 = vcmp.eq.s32.totalorder %v525, %v765
        %vm782 = vcmp.eq.s32.totalorder %v526, %v737
        %vm783 = vcmp.eq.s32.totalorder %v526, %v741
        %vm784 = vcmp.eq.s32.totalorder %v526, %v745
        %vm785 = vcmp.eq.s32.totalorder %v526, %v749
        %vm786 = vcmp.eq.s32.totalorder %v526, %v753
        %vm787 = vcmp.eq.s32.totalorder %v526, %v757
        %vm788 = vcmp.eq.s32.totalorder %v526, %v761
        %vm789 = vcmp.eq.s32.totalorder %v526, %v765
        %vm790 = vcmp.eq.s32.totalorder %v527, %v737
        %vm791 = vcmp.eq.s32.totalorder %v527, %v741
        %vm792 = vcmp.eq.s32.totalorder %v527, %v745
        %vm793 = vcmp.eq.s32.totalorder %v527, %v749
        %vm794 = vcmp.eq.s32.totalorder %v527, %v753
        %vm795 = vcmp.eq.s32.totalorder %v527, %v757
        %vm796 = vcmp.eq.s32.totalorder %v527, %v761
        %vm797 = vcmp.eq.s32.totalorder %v527, %v765
        %vm798 = vcmp.eq.s32.totalorder %v528, %v737
        %vm799 = vcmp.eq.s32.totalorder %v528, %v741
        %vm800 = vcmp.eq.s32.totalorder %v528, %v745
        %vm801 = vcmp.eq.s32.totalorder %v528, %v749
        %vm802 = vcmp.eq.s32.totalorder %v528, %v753
        %vm803 = vcmp.eq.s32.totalorder %v528, %v757
        %vm804 = vcmp.eq.s32.totalorder %v528, %v761
        %vm805 = vcmp.eq.s32.totalorder %v528, %v765
        %vm806 = vcmp.eq.s32.totalorder %v529, %v737
        %vm807 = vcmp.eq.s32.totalorder %v529, %v741
        %vm808 = vcmp.eq.s32.totalorder %v529, %v745
        %vm809 = vcmp.eq.s32.totalorder %v529, %v749
        %vm810 = vcmp.eq.s32.totalorder %v529, %v753
        %vm811 = vcmp.eq.s32.totalorder %v529, %v757
        %vm812 = vcmp.eq.s32.totalorder %v529, %v761
        %vm813 = vcmp.eq.s32.totalorder %v529, %v765
        %vm814 = vcmp.eq.s32.totalorder %v530, %v737
        %vm815 = vcmp.eq.s32.totalorder %v530, %v741
        %vm816 = vcmp.eq.s32.totalorder %v530, %v745
        %vm817 = vcmp.eq.s32.totalorder %v530, %v749
        %vm818 = vcmp.eq.s32.totalorder %v530, %v753
        %vm819 = vcmp.eq.s32.totalorder %v530, %v757
        %vm820 = vcmp.eq.s32.totalorder %v530, %v761
        %vm821 = vcmp.eq.s32.totalorder %v530, %v765
        %vm822 = vcmp.eq.s32.totalorder %v531, %v737
        %vm823 = vcmp.eq.s32.totalorder %v531, %v741
        %vm824 = vcmp.eq.s32.totalorder %v531, %v745
        %vm825 = vcmp.eq.s32.totalorder %v531, %v749
        %vm826 = vcmp.eq.s32.totalorder %v531, %v753
        %vm827 = vcmp.eq.s32.totalorder %v531, %v757
        %vm828 = vcmp.eq.s32.totalorder %v531, %v761
        %vm829 = vcmp.eq.s32.totalorder %v531, %v765
        %v830 = vsel %vm766, 1, 0
        %v831 = vsel %vm767, 1, 0
        %v832 = vsel %vm768, 1, 0
        %v833 = vsel %vm769, 1, 0
        %v834 = vsel %vm770, 1, 0
        %v835 = vsel %vm771, 1, 0
        %v836 = vsel %vm772, 1, 0
        %v837 = vsel %vm773, 1, 0
        %v838 = vsel %vm774, 1, 0
        %v839 = vsel %vm775, 1, 0
        %v840 = vsel %vm776, 1, 0
        %v841 = vsel %vm777, 1, 0
        %v842 = vsel %vm778, 1, 0
        %v843 = vsel %vm779, 1, 0
        %v844 = vsel %vm780, 1, 0
        %v845 = vsel %vm781, 1, 0
        %v846 = vsel %vm782, 1, 0
        %v847 = vsel %vm783, 1, 0
        %v848 = vsel %vm784, 1, 0
        %v849 = vsel %vm785, 1, 0
        %v850 = vsel %vm786, 1, 0
        %v851 = vsel %vm787, 1, 0
        %v852 = vsel %vm788, 1, 0
        %v853 = vsel %vm789, 1, 0
        %v854 = vsel %vm790, 1, 0
        %v855 = vsel %vm791, 1, 0
        %v856 = vsel %vm792, 1, 0
        %v857 = vsel %vm793, 1, 0
        %v858 = vsel %vm794, 1, 0
        %v859 = vsel %vm795, 1, 0
        %v860 = vsel %vm796, 1, 0
        %v861 = vsel %vm797, 1, 0
        %v862 = vsel %vm798, 1, 0
        %v863 = vsel %vm799, 1, 0
        %v864 = vsel %vm800, 1, 0
        %v865 = vsel %vm801, 1, 0
        %v866 = vsel %vm802, 1, 0
        %v867 = vsel %vm803, 1, 0
        %v868 = vsel %vm804, 1, 0
        %v869 = vsel %vm805, 1, 0
        %v870 = vsel %vm806, 1, 0
        %v871 = vsel %vm807, 1, 0
        %v872 = vsel %vm808, 1, 0
        %v873 = vsel %vm809, 1, 0
        %v874 = vsel %vm810, 1, 0
        %v875 = vsel %vm811, 1, 0
        %v876 = vsel %vm812, 1, 0
        %v877 = vsel %vm813, 1, 0
        %v878 = vsel %vm814, 1, 0
        %v879 = vsel %vm815, 1, 0
        %v880 = vsel %vm816, 1, 0
        %v881 = vsel %vm817, 1, 0
        %v882 = vsel %vm818, 1, 0
        %v883 = vsel %vm819, 1, 0
        %v884 = vsel %vm820, 1, 0
        %v885 = vsel %vm821, 1, 0
        %v886 = vsel %vm822, 1, 0
        %v887 = vsel %vm823, 1, 0
        %v888 = vsel %vm824, 1, 0
        %v889 = vsel %vm825, 1, 0
        %v890 = vsel %vm826, 1, 0
        %v891 = vsel %vm827, 1, 0
        %v892 = vsel %vm828, 1, 0
        %v893 = vsel %vm829, 1, 0
        %v894 = vcvt.s32.f32 %v830
        %v895 = vcvt.s32.f32 %v831
        %v896 = vcvt.s32.f32 %v832
        %v897 = vcvt.s32.f32 %v833
        %v898 = vcvt.s32.f32 %v834
        %v899 = vcvt.s32.f32 %v835
        %v900 = vcvt.s32.f32 %v836
        %v901 = vcvt.s32.f32 %v837
        %v902 = vcvt.s32.f32 %v838
        %v903 = vcvt.s32.f32 %v839
        %v904 = vcvt.s32.f32 %v840
        %v905 = vcvt.s32.f32 %v841
        %v906 = vcvt.s32.f32 %v842
        %v907 = vcvt.s32.f32 %v843
        %v908 = vcvt.s32.f32 %v844
        %v909 = vcvt.s32.f32 %v845
        %v910 = vcvt.s32.f32 %v846
        %v911 = vcvt.s32.f32 %v847
        %v912 = vcvt.s32.f32 %v848
        %v913 = vcvt.s32.f32 %v849
        %v914 = vcvt.s32.f32 %v850
        %v915 = vcvt.s32.f32 %v851
        %v916 = vcvt.s32.f32 %v852
        %v917 = vcvt.s32.f32 %v853
        %v918 = vcvt.s32.f32 %v854
        %v919 = vcvt.s32.f32 %v855
        %v920 = vcvt.s32.f32 %v856
        %v921 = vcvt.s32.f32 %v857
        %v922 = vcvt.s32.f32 %v858
        %v923 = vcvt.s32.f32 %v859
        %v924 = vcvt.s32.f32 %v860
        %v925 = vcvt.s32.f32 %v861
        %v926 = vcvt.s32.f32 %v862
        %v927 = vcvt.s32.f32 %v863
        %v928 = vcvt.s32.f32 %v864
        %v929 = vcvt.s32.f32 %v865
        %v930 = vcvt.s32.f32 %v866
        %v931 = vcvt.s32.f32 %v867
        %v932 = vcvt.s32.f32 %v868
        %v933 = vcvt.s32.f32 %v869
        %v934 = vcvt.s32.f32 %v870
        %v935 = vcvt.s32.f32 %v871
        %v936 = vcvt.s32.f32 %v872
        %v937 = vcvt.s32.f32 %v873
        %v938 = vcvt.s32.f32 %v874
        %v939 = vcvt.s32.f32 %v875
        %v940 = vcvt.s32.f32 %v876
        %v941 = vcvt.s32.f32 %v877
        %v942 = vcvt.s32.f32 %v878
        %v943 = vcvt.s32.f32 %v879
        %v944 = vcvt.s32.f32 %v880
        %v945 = vcvt.s32.f32 %v881
        %v946 = vcvt.s32.f32 %v882
        %v947 = vcvt.s32.f32 %v883
        %v948 = vcvt.s32.f32 %v884
        %v949 = vcvt.s32.f32 %v885
        %v950 = vcvt.s32.f32 %v886
        %v951 = vcvt.s32.f32 %v887
        %v952 = vcvt.s32.f32 %v888
        %v953 = vcvt.s32.f32 %v889
        %v954 = vcvt.s32.f32 %v890
        %v955 = vcvt.s32.f32 %v891
        %v956 = vcvt.s32.f32 %v892
        %v957 = vcvt.s32.f32 %v893
        %958 = vmatprep.subr.mxu0 %v895
        %959 = vmatpush1.xpose.msra.mxu0 %v894
        %960 = vmatprep.subr.mxu0 %v903
        %961 = vmatpush1.xpose.msra.mxu0 %v902
        %962 = vmatprep.subr.mxu0 %v911
        %963 = vmatpush1.xpose.msra.mxu0 %v910
        %964 = vmatprep.subr.mxu0 %v919
        %965 = vmatpush1.xpose.msra.mxu0 %v918
        %966 = vmatprep.subr.mxu0 %v927
        %967 = vmatpush1.xpose.msra.mxu0 %v926
        %968 = vmatprep.subr.mxu0 %v935
        %969 = vmatpush1.xpose.msra.mxu0 %v934
        %970 = vmatprep.subr.mxu0 %v943
        %971 = vmatpush1.xpose.msra.mxu0 %v942
        %972 = vmatprep.subr.mxu0 %v951
        %973 = vmatpush1.xpose.msra.mxu0 %v950
        %974 = vmatprep.subr.mxu0 0.0
        %975 = vmatpush1.xpose.msra.mxu0 0.0
        %976 = vmatprep.subr.mxu0 0.0
        %977 = vmatpush1.xpose.msra.mxu0 0.0
        %978 = vmatprep.subr.mxu0 0.0
        %979 = vmatpush1.xpose.msra.mxu0 0.0
        %980 = vmatprep.subr.mxu0 0.0
        %981 = vmatpush1.xpose.msra.mxu0 0.0
        %982 = vmatprep.subr.mxu0 0.0
        %983 = vmatpush1.xpose.msra.mxu0 0.0
        %984 = vmatprep.subr.mxu0 0.0
        %985 = vmatpush1.xpose.msra.mxu0 0.0
        %986 = vmatprep.subr.mxu0 0.0
        %987 = vmatpush1.xpose.msra.mxu0 0.0
        %988 = vmatprep.subr.mxu0 0.0
        %989 = vmatpush1.xpose.msra.mxu0 0.0
        %990 = vmatprep.subr.mxu0 0.0
        %991 = vmatpush1.xpose.msra.mxu0 0.0
        %992 = vmatprep.subr.mxu0 0.0
        %993 = vmatpush1.xpose.msra.mxu0 0.0
        %994 = vmatprep.subr.mxu0 0.0
        %995 = vmatpush1.xpose.msra.mxu0 0.0
        %996 = vmatprep.subr.mxu0 0.0
        %997 = vmatpush1.xpose.msra.mxu0 0.0
        %998 = vmatprep.subr.mxu0 0.0
        %999 = vmatpush1.xpose.msra.mxu0 0.0
        %1000 = vmatprep.subr.mxu0 0.0
        %1001 = vmatpush1.xpose.msra.mxu0 0.0
        %1002 = vmatprep.subr.mxu0 0.0
        %1003 = vmatpush1.xpose.msra.mxu0 0.0
        %1004 = vmatprep.subr.mxu0 0.0
        %1005 = vmatpush1.xpose.msra.mxu0 0.0
        %1006 = vmatprep.subr.mxu0 0.0
        %1007 = vmatpush1.xpose.msra.mxu0 0.0
        %1008 = vmatprep.subr.mxu0 0.0
        %1009 = vmatpush1.xpose.msra.mxu0 0.0
        %1010 = vmatprep.subr.mxu0 0.0
        %1011 = vmatpush1.xpose.msra.mxu0 0.0
        %1012 = vmatprep.subr.mxu0 0.0
        %1013 = vmatpush1.xpose.msra.mxu0 0.0
        %1014 = vmatprep.subr.mxu0 0.0
        %1015 = vmatpush1.xpose.msra.mxu0 0.0
        %1016 = vmatprep.subr.mxu0 0.0
        %1017 = vmatpush1.xpose.msra.mxu0 0.0
        %1018 = vmatprep.subr.mxu0 0.0
        %1019 = vmatpush1.xpose.msra.mxu0 0.0
        %1020 = vmatprep.subr.mxu0 0.0
        %1021 = vmatpush1.xpose.msra.mxu0 0.0
        %1022 = vmatprep.mubr.f32.mxu0 %v671
        %1023 = vmatmul.mubr.f32.gmra.mrb[0].mxu0 %v670
        %v1024 = vpop.f32.mrb[0].mxu0
        %v1025 = vadd.f32 0.0, %v1024
        %v1026 = vpop.f32.mrb[0].mxu0
        %1027 = vmatprep.mubr.f32.mxu0 %v679
        %1028 = vmatmul.mubr.f32.gmra.mrb[0].mxu0 %v678
        %v1029 = vpop.f32.mrb[0].mxu0
        %v1030 = vadd.f32 0.0, %v1029
        %v1031 = vpop.f32.mrb[0].mxu0
        %1032 = vmatprep.mubr.f32.mxu0 %v687
        %1033 = vmatmul.mubr.f32.gmra.mrb[0].mxu0 %v686
        %v1034 = vpop.f32.mrb[0].mxu0
        %v1035 = vadd.f32 0.0, %v1034
        %v1036 = vpop.f32.mrb[0].mxu0
        %1037 = vmatprep.mubr.f32.mxu0 %v695
        %1038 = vmatmul.mubr.f32.gmra.mrb[0].mxu0 %v694
        %v1039 = vpop.f32.mrb[0].mxu0
        %v1040 = vadd.f32 0.0, %v1039
        %v1041 = vpop.f32.mrb[0].mxu0
        %1042 = vmatprep.mubr.f32.mxu0 %v703
        %1043 = vmatmul.mubr.f32.gmra.mrb[0].mxu0 %v702
        %v1044 = vpop.f32.mrb[0].mxu0
        %v1045 = vadd.f32 0.0, %v1044
        %v1046 = vpop.f32.mrb[0].mxu0
        %1047 = vmatprep.mubr.f32.mxu0 %v711
        %1048 = vmatmul.mubr.f32.gmra.mrb[0].mxu0 %v710
        %v1049 = vpop.f32.mrb[0].mxu0
        %v1050 = vadd.f32 0.0, %v1049
        %v1051 = vpop.f32.mrb[0].mxu0
        %1052 = vmatprep.mubr.f32.mxu0 %v719
        %1053 = vmatmul.mubr.f32.gmra.mrb[0].mxu0 %v718
        %v1054 = vpop.f32.mrb[0].mxu0
        %v1055 = vadd.f32 0.0, %v1054
        %v1056 = vpop.f32.mrb[0].mxu0
        %1057 = vmatprep.mubr.f32.mxu0 %v727
        %1058 = vmatmul.mubr.f32.gmra.mrb[0].mxu0 %v726
        %v1059 = vpop.f32.mrb[0].mxu0
        %v1060 = vadd.f32 0.0, %v1059
        %v1061 = vpop.f32.mrb[0].mxu0
        %1062 = vdwg.mxu0
        %1063 = vmatprep.subr.mxu0 %v897
        %1064 = vmatpush1.xpose.msra.mxu0 %v896
        %1065 = vmatprep.subr.mxu0 %v905
        %1066 = vmatpush1.xpose.msra.mxu0 %v904
        %1067 = vmatprep.subr.mxu0 %v913
        %1068 = vmatpush1.xpose.msra.mxu0 %v912
        %1069 = vmatprep.subr.mxu0 %v921
        %1070 = vmatpush1.xpose.msra.mxu0 %v920
        %1071 = vmatprep.subr.mxu0 %v929
        %1072 = vmatpush1.xpose.msra.mxu0 %v928
        %1073 = vmatprep.subr.mxu0 %v937
        %1074 = vmatpush1.xpose.msra.mxu0 %v936
        %1075 = vmatprep.subr.mxu0 %v945
        %1076 = vmatpush1.xpose.msra.mxu0 %v944
        %1077 = vmatprep.subr.mxu0 %v953
        %1078 = vmatpush1.xpose.msra.mxu0 %v952
        %1079 = vmatprep.subr.mxu0 0.0
        %1080 = vmatpush1.xpose.msra.mxu0 0.0
        %1081 = vmatprep.subr.mxu0 0.0
        %1082 = vmatpush1.xpose.msra.mxu0 0.0
        %1083 = vmatprep.subr.mxu0 0.0
        %1084 = vmatpush1.xpose.msra.mxu0 0.0
        %1085 = vmatprep.subr.mxu0 0.0
        %1086 = vmatpush1.xpose.msra.mxu0 0.0
        %1087 = vmatprep.subr.mxu0 0.0
        %1088 = vmatpush1.xpose.msra.mxu0 0.0
        %1089 = vmatprep.subr.mxu0 0.0
        %1090 = vmatpush1.xpose.msra.mxu0 0.0
        %1091 = vmatprep.subr.mxu0 0.0
        %1092 = vmatpush1.xpose.msra.mxu0 0.0
        %1093 = vmatprep.subr.mxu0 0.0
        %1094 = vmatpush1.xpose.msra.mxu0 0.0
        %1095 = vmatprep.subr.mxu0 0.0
        %1096 = vmatpush1.xpose.msra.mxu0 0.0
        %1097 = vmatprep.subr.mxu0 0.0
        %1098 = vmatpush1.xpose.msra.mxu0 0.0
        %1099 = vmatprep.subr.mxu0 0.0
        %1100 = vmatpush1.xpose.msra.mxu0 0.0
        %1101 = vmatprep.subr.mxu0 0.0
        %1102 = vmatpush1.xpose.msra.mxu0 0.0
        %1103 = vmatprep.subr.mxu0 0.0
        %1104 = vmatpush1.xpose.msra.mxu0 0.0
        %1105 = vmatprep.subr.mxu0 0.0
        %1106 = vmatpush1.xpose.msra.mxu0 0.0
        %1107 = vmatprep.subr.mxu0 0.0
        %1108 = vmatpush1.xpose.msra.mxu0 0.0
        %1109 = vmatprep.subr.mxu0 0.0
        %1110 = vmatpush1.xpose.msra.mxu0 0.0
        %1111 = vmatprep.subr.mxu0 0.0
        %1112 = vmatpush1.xpose.msra.mxu0 0.0
        %1113 = vmatprep.subr.mxu0 0.0
        %1114 = vmatpush1.xpose.msra.mxu0 0.0
        %1115 = vmatprep.subr.mxu0 0.0
        %1116 = vmatpush1.xpose.msra.mxu0 0.0
        %1117 = vmatprep.subr.mxu0 0.0
        %1118 = vmatpush1.xpose.msra.mxu0 0.0
        %1119 = vmatprep.subr.mxu0 0.0
        %1120 = vmatpush1.xpose.msra.mxu0 0.0
        %1121 = vmatprep.subr.mxu0 0.0
        %1122 = vmatpush1.xpose.msra.mxu0 0.0
        %1123 = vmatprep.subr.mxu0 0.0
        %1124 = vmatpush1.xpose.msra.mxu0 0.0
        %1125 = vmatprep.subr.mxu0 0.0
        %1126 = vmatpush1.xpose.msra.mxu0 0.0
        %1127 = vmatprep.mubr.f32.mxu0 %v673
        %1128 = vmatmul.mubr.f32.gmra.mrb[0].mxu0 %v672
        %v1129 = vpop.f32.mrb[0].mxu0
        %v1130 = vadd.f32 %v1025, %v1129
        %v1131 = vpop.f32.mrb[0].mxu0
        %1132 = vmatprep.mubr.f32.mxu0 %v681
        %1133 = vmatmul.mubr.f32.gmra.mrb[0].mxu0 %v680
        %v1134 = vpop.f32.mrb[0].mxu0
        %v1135 = vadd.f32 %v1030, %v1134
        %v1136 = vpop.f32.mrb[0].mxu0
        %1137 = vmatprep.mubr.f32.mxu0 %v689
        %1138 = vmatmul.mubr.f32.gmra.mrb[0].mxu0 %v688
        %v1139 = vpop.f32.mrb[0].mxu0
        %v1140 = vadd.f32 %v1035, %v1139
        %v1141 = vpop.f32.mrb[0].mxu0
        %1142 = vmatprep.mubr.f32.mxu0 %v697
        %1143 = vmatmul.mubr.f32.gmra.mrb[0].mxu0 %v696
        %v1144 = vpop.f32.mrb[0].mxu0
        %v1145 = vadd.f32 %v1040, %v1144
        %v1146 = vpop.f32.mrb[0].mxu0
        %1147 = vmatprep.mubr.f32.mxu0 %v705
        %1148 = vmatmul.mubr.f32.gmra.mrb[0].mxu0 %v704
        %v1149 = vpop.f32.mrb[0].mxu0
        %v1150 = vadd.f32 %v1045, %v1149
        %v1151 = vpop.f32.mrb[0].mxu0
        %1152 = vmatprep.mubr.f32.mxu0 %v713
        %1153 = vmatmul.mubr.f32.gmra.mrb[0].mxu0 %v712
        %v1154 = vpop.f32.mrb[0].mxu0
        %v1155 = vadd.f32 %v1050, %v1154
        %v1156 = vpop.f32.mrb[0].mxu0
        %1157 = vmatprep.mubr.f32.mxu0 %v721
        %1158 = vmatmul.mubr.f32.gmra.mrb[0].mxu0 %v720
        %v1159 = vpop.f32.mrb[0].mxu0
        %v1160 = vadd.f32 %v1055, %v1159
        %v1161 = vpop.f32.mrb[0].mxu0
        %1162 = vmatprep.mubr.f32.mxu0 %v729
        %1163 = vmatmul.mubr.f32.gmra.mrb[0].mxu0 %v728
        %v1164 = vpop.f32.mrb[0].mxu0
        %v1165 = vadd.f32 %v1060, %v1164
        %v1166 = vpop.f32.mrb[0].mxu0
        %1167 = vdwg.mxu0
        %1168 = vmatprep.subr.mxu0 %v899
        %1169 = vmatpush1.xpose.msra.mxu0 %v898
        %1170 = vmatprep.subr.mxu0 %v907
        %1171 = vmatpush1.xpose.msra.mxu0 %v906
        %1172 = vmatprep.subr.mxu0 %v915
        %1173 = vmatpush1.xpose.msra.mxu0 %v914
        %1174 = vmatprep.subr.mxu0 %v923
        %1175 = vmatpush1.xpose.msra.mxu0 %v922
        %1176 = vmatprep.subr.mxu0 %v931
        %1177 = vmatpush1.xpose.msra.mxu0 %v930
        %1178 = vmatprep.subr.mxu0 %v939
        %1179 = vmatpush1.xpose.msra.mxu0 %v938
        %1180 = vmatprep.subr.mxu0 %v947
        %1181 = vmatpush1.xpose.msra.mxu0 %v946
        %1182 = vmatprep.subr.mxu0 %v955
        %1183 = vmatpush1.xpose.msra.mxu0 %v954
        %1184 = vmatprep.subr.mxu0 0.0
        %1185 = vmatpush1.xpose.msra.mxu0 0.0
        %1186 = vmatprep.subr.mxu0 0.0
        %1187 = vmatpush1.xpose.msra.mxu0 0.0
        %1188 = vmatprep.subr.mxu0 0.0
        %1189 = vmatpush1.xpose.msra.mxu0 0.0
        %1190 = vmatprep.subr.mxu0 0.0
        %1191 = vmatpush1.xpose.msra.mxu0 0.0
        %1192 = vmatprep.subr.mxu0 0.0
        %1193 = vmatpush1.xpose.msra.mxu0 0.0
        %1194 = vmatprep.subr.mxu0 0.0
        %1195 = vmatpush1.xpose.msra.mxu0 0.0
        %1196 = vmatprep.subr.mxu0 0.0
        %1197 = vmatpush1.xpose.msra.mxu0 0.0
        %1198 = vmatprep.subr.mxu0 0.0
        %1199 = vmatpush1.xpose.msra.mxu0 0.0
        %1200 = vmatprep.subr.mxu0 0.0
        %1201 = vmatpush1.xpose.msra.mxu0 0.0
        %1202 = vmatprep.subr.mxu0 0.0
        %1203 = vmatpush1.xpose.msra.mxu0 0.0
        %1204 = vmatprep.subr.mxu0 0.0
        %1205 = vmatpush1.xpose.msra.mxu0 0.0
        %1206 = vmatprep.subr.mxu0 0.0
        %1207 = vmatpush1.xpose.msra.mxu0 0.0
        %1208 = vmatprep.subr.mxu0 0.0
        %1209 = vmatpush1.xpose.msra.mxu0 0.0
        %1210 = vmatprep.subr.mxu0 0.0
        %1211 = vmatpush1.xpose.msra.mxu0 0.0
        %1212 = vmatprep.subr.mxu0 0.0
        %1213 = vmatpush1.xpose.msra.mxu0 0.0
        %1214 = vmatprep.subr.mxu0 0.0
        %1215 = vmatpush1.xpose.msra.mxu0 0.0
        %1216 = vmatprep.subr.mxu0 0.0
        %1217 = vmatpush1.xpose.msra.mxu0 0.0
        %1218 = vmatprep.subr.mxu0 0.0
        %1219 = vmatpush1.xpose.msra.mxu0 0.0
        %1220 = vmatprep.subr.mxu0 0.0
        %1221 = vmatpush1.xpose.msra.mxu0 0.0
        %1222 = vmatprep.subr.mxu0 0.0
        %1223 = vmatpush1.xpose.msra.mxu0 0.0
        %1224 = vmatprep.subr.mxu0 0.0
        %1225 = vmatpush1.xpose.msra.mxu0 0.0
        %1226 = vmatprep.subr.mxu0 0.0
        %1227 = vmatpush1.xpose.msra.mxu0 0.0
        %1228 = vmatprep.subr.mxu0 0.0
        %1229 = vmatpush1.xpose.msra.mxu0 0.0
        %1230 = vmatprep.subr.mxu0 0.0
        %1231 = vmatpush1.xpose.msra.mxu0 0.0
        %1232 = vmatprep.mubr.f32.mxu0 %v675
        %1233 = vmatmul.mubr.f32.gmra.mrb[0].mxu0 %v674
        %v1234 = vpop.f32.mrb[0].mxu0
        %v1235 = vadd.f32 %v1130, %v1234
        %v1236 = vpop.f32.mrb[0].mxu0
        %1237 = vmatprep.mubr.f32.mxu0 %v683
        %1238 = vmatmul.mubr.f32.gmra.mrb[0].mxu0 %v682
        %v1239 = vpop.f32.mrb[0].mxu0
        %v1240 = vadd.f32 %v1135, %v1239
        %v1241 = vpop.f32.mrb[0].mxu0
        %1242 = vmatprep.mubr.f32.mxu0 %v691
        %1243 = vmatmul.mubr.f32.gmra.mrb[0].mxu0 %v690
        %v1244 = vpop.f32.mrb[0].mxu0
        %v1245 = vadd.f32 %v1140, %v1244
        %v1246 = vpop.f32.mrb[0].mxu0
        %1247 = vmatprep.mubr.f32.mxu0 %v699
        %1248 = vmatmul.mubr.f32.gmra.mrb[0].mxu0 %v698
        %v1249 = vpop.f32.mrb[0].mxu0
        %v1250 = vadd.f32 %v1145, %v1249
        %v1251 = vpop.f32.mrb[0].mxu0
        %1252 = vmatprep.mubr.f32.mxu0 %v707
        %1253 = vmatmul.mubr.f32.gmra.mrb[0].mxu0 %v706
        %v1254 = vpop.f32.mrb[0].mxu0
        %v1255 = vadd.f32 %v1150, %v1254
        %v1256 = vpop.f32.mrb[0].mxu0
        %1257 = vmatprep.mubr.f32.mxu0 %v715
        %1258 = vmatmul.mubr.f32.gmra.mrb[0].mxu0 %v714
        %v1259 = vpop.f32.mrb[0].mxu0
        %v1260 = vadd.f32 %v1155, %v1259
        %v1261 = vpop.f32.mrb[0].mxu0
        %1262 = vmatprep.mubr.f32.mxu0 %v723
        %1263 = vmatmul.mubr.f32.gmra.mrb[0].mxu0 %v722
        %v1264 = vpop.f32.mrb[0].mxu0
        %v1265 = vadd.f32 %v1160, %v1264
        %v1266 = vpop.f32.mrb[0].mxu0
        %1267 = vmatprep.mubr.f32.mxu0 %v731
        %1268 = vmatmul.mubr.f32.gmra.mrb[0].mxu0 %v730
        %v1269 = vpop.f32.mrb[0].mxu0
        %v1270 = vadd.f32 %v1165, %v1269
        %v1271 = vpop.f32.mrb[0].mxu0
        %1272 = vdwg.mxu0
        %1273 = vmatprep.subr.mxu0 %v901
        %1274 = vmatpush1.xpose.msra.mxu0 %v900
        %1275 = vmatprep.subr.mxu0 %v909
        %1276 = vmatpush1.xpose.msra.mxu0 %v908
        %1277 = vmatprep.subr.mxu0 %v917
        %1278 = vmatpush1.xpose.msra.mxu0 %v916
        %1279 = vmatprep.subr.mxu0 %v925
        %1280 = vmatpush1.xpose.msra.mxu0 %v924
        %1281 = vmatprep.subr.mxu0 %v933
        %1282 = vmatpush1.xpose.msra.mxu0 %v932
        %1283 = vmatprep.subr.mxu0 %v941
        %1284 = vmatpush1.xpose.msra.mxu0 %v940
        %1285 = vmatprep.subr.mxu0 %v949
        %1286 = vmatpush1.xpose.msra.mxu0 %v948
        %1287 = vmatprep.subr.mxu0 %v957
        %1288 = vmatpush1.xpose.msra.mxu0 %v956
        %1289 = vmatprep.subr.mxu0 0.0
        %1290 = vmatpush1.xpose.msra.mxu0 0.0
        %1291 = vmatprep.subr.mxu0 0.0
        %1292 = vmatpush1.xpose.msra.mxu0 0.0
        %1293 = vmatprep.subr.mxu0 0.0
        %1294 = vmatpush1.xpose.msra.mxu0 0.0
        %1295 = vmatprep.subr.mxu0 0.0
        %1296 = vmatpush1.xpose.msra.mxu0 0.0
        %1297 = vmatprep.subr.mxu0 0.0
        %1298 = vmatpush1.xpose.msra.mxu0 0.0
        %1299 = vmatprep.subr.mxu0 0.0
        %1300 = vmatpush1.xpose.msra.mxu0 0.0
        %1301 = vmatprep.subr.mxu0 0.0
        %1302 = vmatpush1.xpose.msra.mxu0 0.0
        %1303 = vmatprep.subr.mxu0 0.0
        %1304 = vmatpush1.xpose.msra.mxu0 0.0
        %1305 = vmatprep.subr.mxu0 0.0
        %1306 = vmatpush1.xpose.msra.mxu0 0.0
        %1307 = vmatprep.subr.mxu0 0.0
        %1308 = vmatpush1.xpose.msra.mxu0 0.0
        %1309 = vmatprep.subr.mxu0 0.0
        %1310 = vmatpush1.xpose.msra.mxu0 0.0
        %1311 = vmatprep.subr.mxu0 0.0
        %1312 = vmatpush1.xpose.msra.mxu0 0.0
        %1313 = vmatprep.subr.mxu0 0.0
        %1314 = vmatpush1.xpose.msra.mxu0 0.0
        %1315 = vmatprep.subr.mxu0 0.0
        %1316 = vmatpush1.xpose.msra.mxu0 0.0
        %1317 = vmatprep.subr.mxu0 0.0
        %1318 = vmatpush1.xpose.msra.mxu0 0.0
        %1319 = vmatprep.subr.mxu0 0.0
        %1320 = vmatpush1.xpose.msra.mxu0 0.0
        %1321 = vmatprep.subr.mxu0 0.0
        %1322 = vmatpush1.xpose.msra.mxu0 0.0
        %1323 = vmatprep.subr.mxu0 0.0
        %1324 = vmatpush1.xpose.msra.mxu0 0.0
        %1325 = vmatprep.subr.mxu0 0.0
        %1326 = vmatpush1.xpose.msra.mxu0 0.0
        %1327 = vmatprep.subr.mxu0 0.0
        %1328 = vmatpush1.xpose.msra.mxu0 0.0
        %1329 = vmatprep.subr.mxu0 0.0
        %1330 = vmatpush1.xpose.msra.mxu0 0.0
        %1331 = vmatprep.subr.mxu0 0.0
        %1332 = vmatpush1.xpose.msra.mxu0 0.0
        %1333 = vmatprep.subr.mxu0 0.0
        %1334 = vmatpush1.xpose.msra.mxu0 0.0
        %1335 = vmatprep.subr.mxu0 0.0
        %1336 = vmatpush1.xpose.msra.mxu0 0.0
        %1337 = vmatprep.mubr.f32.mxu0 %v677
        %1338 = vmatmul.mubr.f32.gmra.mrb[0].mxu0 %v676
        %v1339 = vpop.f32.mrb[0].mxu0
        %v1340 = vadd.f32 %v1235, %v1339
        %v1341 = vpop.f32.mrb[0].mxu0
        %1342 = vmatprep.mubr.f32.mxu0 %v685
        %1343 = vmatmul.mubr.f32.gmra.mrb[0].mxu0 %v684
        %v1344 = vpop.f32.mrb[0].mxu0
        %v1345 = vadd.f32 %v1240, %v1344
        %v1346 = vpop.f32.mrb[0].mxu0
        %1347 = vmatprep.mubr.f32.mxu0 %v693
        %1348 = vmatmul.mubr.f32.gmra.mrb[0].mxu0 %v692
        %v1349 = vpop.f32.mrb[0].mxu0
        %v1350 = vadd.f32 %v1245, %v1349
        %v1351 = vpop.f32.mrb[0].mxu0
        %1352 = vmatprep.mubr.f32.mxu0 %v701
        %1353 = vmatmul.mubr.f32.gmra.mrb[0].mxu0 %v700
        %v1354 = vpop.f32.mrb[0].mxu0
        %v1355 = vadd.f32 %v1250, %v1354
        %v1356 = vpop.f32.mrb[0].mxu0
        %1357 = vmatprep.mubr.f32.mxu0 %v709
        %1358 = vmatmul.mubr.f32.gmra.mrb[0].mxu0 %v708
        %v1359 = vpop.f32.mrb[0].mxu0
        %v1360 = vadd.f32 %v1255, %v1359
        %v1361 = vpop.f32.mrb[0].mxu0
        %1362 = vmatprep.mubr.f32.mxu0 %v717
        %1363 = vmatmul.mubr.f32.gmra.mrb[0].mxu0 %v716
        %v1364 = vpop.f32.mrb[0].mxu0
        %v1365 = vadd.f32 %v1260, %v1364
        %v1366 = vpop.f32.mrb[0].mxu0
        %1367 = vmatprep.mubr.f32.mxu0 %v725
        %1368 = vmatmul.mubr.f32.gmra.mrb[0].mxu0 %v724
        %v1369 = vpop.f32.mrb[0].mxu0
        %v1370 = vadd.f32 %v1265, %v1369
        %v1371 = vpop.f32.mrb[0].mxu0
        %1372 = vmatprep.mubr.f32.mxu0 %v733
        %1373 = vmatmul.mubr.f32.gmra.mrb[0].mxu0 %v732
        %v1374 = vpop.f32.mrb[0].mxu0
        %v1375 = vadd.f32 %v1270, %v1374
        %v1376 = vpop.f32.mrb[0].mxu0
        %1377 = vdwg.mxu0
        %vm1378 = vcmask 523264
        %v1379 = vsel %vm1378, %v1340, 0.0
        %1380 = vadd.xlane.f32.xlu0 %v1379
        %v1381 = vpop.xlane.xlu0 %1380
        %v1382 = vsel %vm1378, %v1345, 0.0
        %1383 = vadd.xlane.f32.xlu0 %v1382
        %v1384 = vpop.xlane.xlu0 %1383
        %v1385 = vsel %vm1378, %v1350, 0.0
        %1386 = vadd.xlane.f32.xlu0 %v1385
        %v1387 = vpop.xlane.xlu0 %1386
        %v1388 = vsel %vm1378, %v1355, 0.0
        %1389 = vadd.xlane.f32.xlu0 %v1388
        %v1390 = vpop.xlane.xlu0 %1389
        %v1391 = vsel %vm1378, %v1360, 0.0
        %1392 = vadd.xlane.f32.xlu0 %v1391
        %v1393 = vpop.xlane.xlu0 %1392
        %v1394 = vsel %vm1378, %v1365, 0.0
        %1395 = vadd.xlane.f32.xlu0 %v1394
        %v1396 = vpop.xlane.xlu0 %1395
        %v1397 = vsel %vm1378, %v1370, 0.0
        %1398 = vadd.xlane.f32.xlu0 %v1397
        %v1399 = vpop.xlane.xlu0 %1398
        %v1400 = vsel %vm1378, %v1375, 0.0
        %1401 = vadd.xlane.f32.xlu0 %v1400
        %v1402 = vpop.xlane.xlu0 %1401
        %vm1403 = vcmp.gt.f32.partialorder %v1381, 0.0
        %vm1404 = vcmp.gt.f32.partialorder %v1384, 0.0
        %vm1405 = vcmp.gt.f32.partialorder %v1387, 0.0
        %vm1406 = vcmp.gt.f32.partialorder %v1390, 0.0
        %vm1407 = vcmp.gt.f32.partialorder %v1393, 0.0
        %vm1408 = vcmp.gt.f32.partialorder %v1396, 0.0
        %vm1409 = vcmp.gt.f32.partialorder %v1399, 0.0
        %vm1410 = vcmp.gt.f32.partialorder %v1402, 0.0
        %v1411 = vrsqrt.pop %v1381
        %v1412 = vrsqrt.pop %v1384
        %v1413 = vrsqrt.pop %v1387
        %v1414 = vrsqrt.pop %v1390
        %v1415 = vrsqrt.pop %v1393
        %v1416 = vrsqrt.pop %v1396
        %v1417 = vrsqrt.pop %v1399
        %v1418 = vrsqrt.pop %v1402
        %v1419 = vsel %vm1403, %v1411, 0.0
        %v1420 = vsel %vm1404, %v1412, 0.0
        %v1421 = vsel %vm1405, %v1413, 0.0
        %v1422 = vsel %vm1406, %v1414, 0.0
        %v1423 = vsel %vm1407, %v1415, 0.0
        %v1424 = vsel %vm1408, %v1416, 0.0
        %v1425 = vsel %vm1409, %v1417, 0.0
        %v1426 = vsel %vm1410, %v1418, 0.0
        %v1427 = vld [vmem:[%s517] sm:$0xff]
        %v1428 = vld [vmem:[%s517 + $0x8] sm:$0xff]
        %v1429 = vld [vmem:[%s517 + $0x10] sm:$0xff]
        %v1430 = vld [vmem:[%s517 + $0x18] sm:$0xff]
        %v1431 = vld [vmem:[%s517 + $0x20] sm:$0xff]
        %v1432 = vld [vmem:[%s517 + $0x28] sm:$0xff]
        %v1433 = vld [vmem:[%s517 + $0x30] sm:$0xff]
        %v1434 = vld [vmem:[%s517 + $0x38] sm:$0xff]
        %v1435 = vpack.c.bf16 %v1428, %v1427
        %v1436 = vpack.c.bf16 %v1430, %v1429
        %v1437 = vpack.c.bf16 %v1432, %v1431
        %v1438 = vpack.c.bf16 %v1434, %v1433
        %v1439 = vld [vmem:[%s4] sm:$0xf]
        %v1440 = vld [vmem:[%s4 + $0x4] sm:$0xf]
        %v1443 = vunpack.c.l.b16 %v1439
        %v1444 = vunpack.c.l.b16 %v1440
        %v1445 = vpack.c.b16 %v1444, %v1443
        %vm1447 = vcmask 130048
        %v1449 = vsel %vm1447, %v1435, 0
        %v1452 = vsel %vm1447, %v1436, 0
        %v1455 = vsel %vm1447, %v1437, 0
        %v1458 = vsel %vm1447, %v1438, 0
        %1460 = vmatprep.subr.bf16.mxu0 0
        %1461 = vmatpush1.bf16.msra.mxu0 %v1445
        %1462 = vmatprep.subr.bf16.mxu0 0
        %1463 = vmatpush1.bf16.msra.mxu0 0
        %1464 = vmatprep.subr.bf16.mxu0 0
        %1465 = vmatpush1.bf16.msra.mxu0 0
        %1466 = vmatprep.subr.bf16.mxu0 0
        %1467 = vmatpush1.bf16.msra.mxu0 0
        %1468 = vmatprep.subr.bf16.mxu0 0
        %1469 = vmatpush1.bf16.msra.mxu0 0
        %1470 = vmatprep.subr.bf16.mxu0 0
        %1471 = vmatpush1.bf16.msra.mxu0 0
        %1472 = vmatprep.subr.bf16.mxu0 0
        %1473 = vmatpush1.bf16.msra.mxu0 0
        %1474 = vmatprep.subr.bf16.mxu0 0
        %1475 = vmatpush1.bf16.msra.mxu0 0
        %1476 = vmatprep.subr.bf16.mxu0 0
        %1477 = vmatpush1.bf16.msra.mxu0 0
        %1478 = vmatprep.subr.bf16.mxu0 0
        %1479 = vmatpush1.bf16.msra.mxu0 0
        %1480 = vmatprep.subr.bf16.mxu0 0
        %1481 = vmatpush1.bf16.msra.mxu0 0
        %1482 = vmatprep.subr.bf16.mxu0 0
        %1483 = vmatpush1.bf16.msra.mxu0 0
        %1484 = vmatprep.subr.bf16.mxu0 0
        %1485 = vmatpush1.bf16.msra.mxu0 0
        %1486 = vmatprep.subr.bf16.mxu0 0
        %1487 = vmatpush1.bf16.msra.mxu0 0
        %1488 = vmatprep.subr.bf16.mxu0 0
        %1489 = vmatpush1.bf16.msra.mxu0 0
        %1490 = vmatprep.subr.bf16.mxu0 0
        %1491 = vmatpush1.bf16.msra.mxu0 0
        %1492 = vmatprep.mubr.bf16.mxu0 0
        %1493 = vmatmul.mubr.bf16.gmra.mrb[0].mxu0 %v1449
        %v1494 = vpop.f32.mrb[0].mxu0
        %v1495 = vadd.f32 0.0, %v1494
        %v1496 = vpop.f32.mrb[0].mxu0
        %v1497 = vpop.f32.mrb[0].mxu0
        %v1498 = vadd.f32 0.0, %v1497
        %v1499 = vpop.f32.mrb[0].mxu0
        %1500 = vmatprep.mubr.bf16.mxu0 0
        %1501 = vmatmul.mubr.bf16.gmra.mrb[0].mxu0 %v1452
        %v1502 = vpop.f32.mrb[0].mxu0
        %v1503 = vadd.f32 0.0, %v1502
        %v1504 = vpop.f32.mrb[0].mxu0
        %v1505 = vpop.f32.mrb[0].mxu0
        %v1506 = vadd.f32 0.0, %v1505
        %v1507 = vpop.f32.mrb[0].mxu0
        %1508 = vmatprep.mubr.bf16.mxu0 0
        %1509 = vmatmul.mubr.bf16.gmra.mrb[0].mxu0 %v1455
        %v1510 = vpop.f32.mrb[0].mxu0
        %v1511 = vadd.f32 0.0, %v1510
        %v1512 = vpop.f32.mrb[0].mxu0
        %v1513 = vpop.f32.mrb[0].mxu0
        %v1514 = vadd.f32 0.0, %v1513
        %v1515 = vpop.f32.mrb[0].mxu0
        %1516 = vmatprep.mubr.bf16.mxu0 0
        %1517 = vmatmul.mubr.bf16.gmra.mrb[0].mxu0 %v1458
        %v1518 = vpop.f32.mrb[0].mxu0
        %v1519 = vadd.f32 0.0, %v1518
        %v1520 = vpop.f32.mrb[0].mxu0
        %v1521 = vpop.f32.mrb[0].mxu0
        %v1522 = vadd.f32 0.0, %v1521
        %v1523 = vpop.f32.mrb[0].mxu0
        %1524 = vdwg.mxu0
        %v1525 = vmul.f32 %v1419, %v1495
        %v1526 = vmul.f32 %v1420, %v1498
        %v1527 = vmul.f32 %v1421, %v1503
        %v1528 = vmul.f32 %v1422, %v1506
        %v1529 = vmul.f32 %v1423, %v1511
        %v1530 = vmul.f32 %v1424, %v1514
        %v1531 = vmul.f32 %v1425, %v1519
        %v1532 = vmul.f32 %v1426, %v1522
        %v1534 = vsel %vm1378, %v1340, 0
        %v1537 = vsel %vm1378, %v1345, 0
        %v1540 = vsel %vm1378, %v1350, 0
        %v1543 = vsel %vm1378, %v1355, 0
        %v1546 = vsel %vm1378, %v1360, 0
        %v1549 = vsel %vm1378, %v1365, 0
        %v1552 = vsel %vm1378, %v1370, 0
        %v1555 = vsel %vm1378, %v1375, 0
        %1557 = vmatprep.subr.mxu0 0.0
        %1558 = vmatpush1.msra.mxu0 %v1525
        %1559 = vmatprep.subr.mxu0 0.0
        %1560 = vmatpush1.msra.mxu0 %v1526
        %1561 = vmatprep.subr.mxu0 0.0
        %1562 = vmatpush1.msra.mxu0 %v1527
        %1563 = vmatprep.subr.mxu0 0.0
        %1564 = vmatpush1.msra.mxu0 %v1528
        %1565 = vmatprep.subr.mxu0 0.0
        %1566 = vmatpush1.msra.mxu0 %v1529
        %1567 = vmatprep.subr.mxu0 0.0
        %1568 = vmatpush1.msra.mxu0 %v1530
        %1569 = vmatprep.subr.mxu0 0.0
        %1570 = vmatpush1.msra.mxu0 %v1531
        %1571 = vmatprep.subr.mxu0 0.0
        %1572 = vmatpush1.msra.mxu0 %v1532
        %1573 = vmatprep.subr.mxu0 0.0
        %1574 = vmatpush1.msra.mxu0 0.0
        %1575 = vmatprep.subr.mxu0 0.0
        %1576 = vmatpush1.msra.mxu0 0.0
        %1577 = vmatprep.subr.mxu0 0.0
        %1578 = vmatpush1.msra.mxu0 0.0
        %1579 = vmatprep.subr.mxu0 0.0
        %1580 = vmatpush1.msra.mxu0 0.0
        %1581 = vmatprep.subr.mxu0 0.0
        %1582 = vmatpush1.msra.mxu0 0.0
        %1583 = vmatprep.subr.mxu0 0.0
        %1584 = vmatpush1.msra.mxu0 0.0
        %1585 = vmatprep.subr.mxu0 0.0
        %1586 = vmatpush1.msra.mxu0 0.0
        %1587 = vmatprep.subr.mxu0 0.0
        %1588 = vmatpush1.msra.mxu0 0.0
        %1589 = vmatprep.subr.mxu0 0.0
        %1590 = vmatpush1.msra.mxu0 0.0
        %1591 = vmatprep.subr.mxu0 0.0
        %1592 = vmatpush1.msra.mxu0 0.0
        %1593 = vmatprep.subr.mxu0 0.0
        %1594 = vmatpush1.msra.mxu0 0.0
        %1595 = vmatprep.subr.mxu0 0.0
        %1596 = vmatpush1.msra.mxu0 0.0
        %1597 = vmatprep.subr.mxu0 0.0
        %1598 = vmatpush1.msra.mxu0 0.0
        %1599 = vmatprep.subr.mxu0 0.0
        %1600 = vmatpush1.msra.mxu0 0.0
        %1601 = vmatprep.subr.mxu0 0.0
        %1602 = vmatpush1.msra.mxu0 0.0
        %1603 = vmatprep.subr.mxu0 0.0
        %1604 = vmatpush1.msra.mxu0 0.0
        %1605 = vmatprep.subr.mxu0 0.0
        %1606 = vmatpush1.msra.mxu0 0.0
        %1607 = vmatprep.subr.mxu0 0.0
        %1608 = vmatpush1.msra.mxu0 0.0
        %1609 = vmatprep.subr.mxu0 0.0
        %1610 = vmatpush1.msra.mxu0 0.0
        %1611 = vmatprep.subr.mxu0 0.0
        %1612 = vmatpush1.msra.mxu0 0.0
        %1613 = vmatprep.subr.mxu0 0.0
        %1614 = vmatpush1.msra.mxu0 0.0
        %1615 = vmatprep.subr.mxu0 0.0
        %1616 = vmatpush1.msra.mxu0 0.0
        %1617 = vmatprep.subr.mxu0 0.0
        %1618 = vmatpush1.msra.mxu0 0.0
        %1619 = vmatprep.subr.mxu0 0.0
        %1620 = vmatpush1.msra.mxu0 0.0
        %1621 = vmatprep.mubr.f32.mxu0 0.0
        %1622 = vmatmul.mubr.f32.gmra.mrb[0].mxu0 %v1534
        %v1623 = vpop.f32.mrb[0].mxu0
        %v1624 = vadd.f32 0.0, %v1623
        %v1625 = vpop.f32.mrb[0].mxu0
        %1626 = vmatprep.mubr.f32.mxu0 0.0
        %1627 = vmatmul.mubr.f32.gmra.mrb[0].mxu0 %v1537
        %v1628 = vpop.f32.mrb[0].mxu0
        %v1629 = vadd.f32 0.0, %v1628
        %v1630 = vpop.f32.mrb[0].mxu0
        %1631 = vmatprep.mubr.f32.mxu0 0.0
        %1632 = vmatmul.mubr.f32.gmra.mrb[0].mxu0 %v1540
        %v1633 = vpop.f32.mrb[0].mxu0
        %v1634 = vadd.f32 0.0, %v1633
        %v1635 = vpop.f32.mrb[0].mxu0
        %1636 = vmatprep.mubr.f32.mxu0 0.0
        %1637 = vmatmul.mubr.f32.gmra.mrb[0].mxu0 %v1543
        %v1638 = vpop.f32.mrb[0].mxu0
        %v1639 = vadd.f32 0.0, %v1638
        %v1640 = vpop.f32.mrb[0].mxu0
        %1641 = vmatprep.mubr.f32.mxu0 0.0
        %1642 = vmatmul.mubr.f32.gmra.mrb[0].mxu0 %v1546
        %v1643 = vpop.f32.mrb[0].mxu0
        %v1644 = vadd.f32 0.0, %v1643
        %v1645 = vpop.f32.mrb[0].mxu0
        %1646 = vmatprep.mubr.f32.mxu0 0.0
        %1647 = vmatmul.mubr.f32.gmra.mrb[0].mxu0 %v1549
        %v1648 = vpop.f32.mrb[0].mxu0
        %v1649 = vadd.f32 0.0, %v1648
        %v1650 = vpop.f32.mrb[0].mxu0
        %1651 = vmatprep.mubr.f32.mxu0 0.0
        %1652 = vmatmul.mubr.f32.gmra.mrb[0].mxu0 %v1552
        %v1653 = vpop.f32.mrb[0].mxu0
        %v1654 = vadd.f32 0.0, %v1653
        %v1655 = vpop.f32.mrb[0].mxu0
        %1656 = vmatprep.mubr.f32.mxu0 0.0
        %1657 = vmatmul.mubr.f32.gmra.mrb[0].mxu0 %v1555
        %v1658 = vpop.f32.mrb[0].mxu0
        %v1659 = vadd.f32 0.0, %v1658
        %v1660 = vpop.f32.mrb[0].mxu0
        %1661 = vdwg.mxu0
        %v1662 = vmul.f32 %v1419, %v1624
        %v1663 = vmul.f32 %v1420, %v1629
        %v1664 = vmul.f32 %v1421, %v1634
        %v1665 = vmul.f32 %v1422, %v1639
        %v1666 = vmul.f32 %v1423, %v1644
        %v1667 = vmul.f32 %v1424, %v1649
        %v1668 = vmul.f32 %v1425, %v1654
        %v1669 = vmul.f32 %v1426, %v1659
        %v1670 = vpack.c.bf16 %v1663, %v1662
        %v1671 = vpack.c.bf16 %v1665, %v1664
        %v1672 = vpack.c.bf16 %v1667, %v1666
        %v1673 = vpack.c.bf16 %v1669, %v1668
        %v1674 = vld [vmem:[%s5] sm:$0xf]
        %v1675 = vld [vmem:[%s5 + $0x4] sm:$0xf]
        %v1676 = vld [vmem:[%s5 + $0x8] sm:$0xf]
        %v1677 = vld [vmem:[%s5 + $0xc] sm:$0xf]
        %v1678 = vld [vmem:[%s12] sm:$0x1]
        %v1679 = vlaneseq
        %v1680 = vshrl.u32 %v1679, 7
        %v1681 = vsub.s32 0, %v1680
        %v1682 = vrot.slane %v1678, %v1681
        %v1687 = vunpack.c.l.b16 %v1674
        %v1688 = vunpack.c.l.b16 %v1675
        %v1689 = vunpack.c.l.b16 %v1676
        %v1690 = vunpack.c.l.b16 %v1677
        %v1691 = vpack.c.b16 %v1688, %v1687
        %v1692 = vpack.c.b16 %v1690, %v1689
        %vm1695 = vcmask 261120
        %v1697 = vsel %vm1695, %v1670, 0
        %v1700 = vsel %vm1695, %v1671, 0
        %v1703 = vsel %vm1695, %v1672, 0
        %v1706 = vsel %vm1695, %v1673, 0
        %1708 = vmatprep.subr.bf16.mxu0 0
        %1709 = vmatpush1.bf16.msra.mxu0 %v1691
        %1710 = vmatprep.subr.bf16.mxu0 0
        %1711 = vmatpush1.bf16.msra.mxu0 %v1692
        %1712 = vmatprep.subr.bf16.mxu0 0
        %1713 = vmatpush1.bf16.msra.mxu0 0
        %1714 = vmatprep.subr.bf16.mxu0 0
        %1715 = vmatpush1.bf16.msra.mxu0 0
        %1716 = vmatprep.subr.bf16.mxu0 0
        %1717 = vmatpush1.bf16.msra.mxu0 0
        %1718 = vmatprep.subr.bf16.mxu0 0
        %1719 = vmatpush1.bf16.msra.mxu0 0
        %1720 = vmatprep.subr.bf16.mxu0 0
        %1721 = vmatpush1.bf16.msra.mxu0 0
        %1722 = vmatprep.subr.bf16.mxu0 0
        %1723 = vmatpush1.bf16.msra.mxu0 0
        %1724 = vmatprep.subr.bf16.mxu0 0
        %1725 = vmatpush1.bf16.msra.mxu0 0
        %1726 = vmatprep.subr.bf16.mxu0 0
        %1727 = vmatpush1.bf16.msra.mxu0 0
        %1728 = vmatprep.subr.bf16.mxu0 0
        %1729 = vmatpush1.bf16.msra.mxu0 0
        %1730 = vmatprep.subr.bf16.mxu0 0
        %1731 = vmatpush1.bf16.msra.mxu0 0
        %1732 = vmatprep.subr.bf16.mxu0 0
        %1733 = vmatpush1.bf16.msra.mxu0 0
        %1734 = vmatprep.subr.bf16.mxu0 0
        %1735 = vmatpush1.bf16.msra.mxu0 0
        %1736 = vmatprep.subr.bf16.mxu0 0
        %1737 = vmatpush1.bf16.msra.mxu0 0
        %1738 = vmatprep.subr.bf16.mxu0 0
        %1739 = vmatpush1.bf16.msra.mxu0 0
        %1740 = vmatprep.mubr.bf16.mxu0 0
        %1741 = vmatmul.mubr.bf16.gmra.mrb[0].mxu0 %v1697
        %v1742 = vpop.f32.mrb[0].mxu0
        %v1743 = vadd.f32 %v1682, %v1742
        %v1744 = vpop.f32.mrb[0].mxu0
        %v1745 = vpop.f32.mrb[0].mxu0
        %v1746 = vadd.f32 %v1682, %v1745
        %v1747 = vpop.f32.mrb[0].mxu0
        %1748 = vmatprep.mubr.bf16.mxu0 0
        %1749 = vmatmul.mubr.bf16.gmra.mrb[0].mxu0 %v1700
        %v1750 = vpop.f32.mrb[0].mxu0
        %v1751 = vadd.f32 %v1682, %v1750
        %v1752 = vpop.f32.mrb[0].mxu0
        %v1753 = vpop.f32.mrb[0].mxu0
        %v1754 = vadd.f32 %v1682, %v1753
        %v1755 = vpop.f32.mrb[0].mxu0
        %1756 = vmatprep.mubr.bf16.mxu0 0
        %1757 = vmatmul.mubr.bf16.gmra.mrb[0].mxu0 %v1703
        %v1758 = vpop.f32.mrb[0].mxu0
        %v1759 = vadd.f32 %v1682, %v1758
        %v1760 = vpop.f32.mrb[0].mxu0
        %v1761 = vpop.f32.mrb[0].mxu0
        %v1762 = vadd.f32 %v1682, %v1761
        %v1763 = vpop.f32.mrb[0].mxu0
        %1764 = vmatprep.mubr.bf16.mxu0 0
        %1765 = vmatmul.mubr.bf16.gmra.mrb[0].mxu0 %v1706
        %v1766 = vpop.f32.mrb[0].mxu0
        %v1767 = vadd.f32 %v1682, %v1766
        %v1768 = vpop.f32.mrb[0].mxu0
        %v1769 = vpop.f32.mrb[0].mxu0
        %v1770 = vadd.f32 %v1682, %v1769
        %v1771 = vpop.f32.mrb[0].mxu0
        %1772 = vdwg.mxu0
        %vm1773 = vcmp.gt.f32.partialorder %v1743, 0.0
        %vm1774 = vcmp.gt.f32.partialorder %v1746, 0.0
        %vm1775 = vcmp.gt.f32.partialorder %v1751, 0.0
        %vm1776 = vcmp.gt.f32.partialorder %v1754, 0.0
        %vm1777 = vcmp.gt.f32.partialorder %v1759, 0.0
        %vm1778 = vcmp.gt.f32.partialorder %v1762, 0.0
        %vm1779 = vcmp.gt.f32.partialorder %v1767, 0.0
        %vm1780 = vcmp.gt.f32.partialorder %v1770, 0.0
        %v1781 = vmul.f32 %v1743, 0.1
        %v1782 = vmul.f32 %v1746, 0.1
        %v1783 = vmul.f32 %v1751, 0.1
        %v1784 = vmul.f32 %v1754, 0.1
        %v1785 = vmul.f32 %v1759, 0.1
        %v1786 = vmul.f32 %v1762, 0.1
        %v1787 = vmul.f32 %v1767, 0.1
        %v1788 = vmul.f32 %v1770, 0.1
        %v1789 = vsel %vm1773, %v1743, %v1781
        %v1790 = vsel %vm1774, %v1746, %v1782
        %v1791 = vsel %vm1775, %v1751, %v1783
        %v1792 = vsel %vm1776, %v1754, %v1784
        %v1793 = vsel %vm1777, %v1759, %v1785
        %v1794 = vsel %vm1778, %v1762, %v1786
        %v1795 = vsel %vm1779, %v1767, %v1787
        %v1796 = vsel %vm1780, %v1770, %v1788
        %v1797 = vld [vmem:[%s12 + $0x1] sm:$0x1]
        %v1798 = vlaneseq
        %v1799 = vshrl.u32 %v1798, 7
        %v1800 = vsub.s32 0, %v1799
        %v1801 = vrot.slane %v1797, %v1800
        %v1802 = vmul.f32 %v1789, %v1801
        %v1803 = vmul.f32 %v1790, %v1801
        %v1804 = vmul.f32 %v1791, %v1801
        %v1805 = vmul.f32 %v1792, %v1801
        %v1806 = vmul.f32 %v1793, %v1801
        %v1807 = vmul.f32 %v1794, %v1801
        %v1808 = vmul.f32 %v1795, %v1801
        %v1809 = vmul.f32 %v1796, %v1801
        %v1810 = vld [vmem:[%s12 + $0x2] sm:$0x1]
        %v1811 = vlaneseq
        %v1812 = vshrl.u32 %v1811, 7
        %v1813 = vsub.s32 0, %v1812
        %v1814 = vrot.slane %v1810, %v1813
        %v1815 = vadd.f32 %v1802, %v1814
        %v1816 = vadd.f32 %v1803, %v1814
        %v1817 = vadd.f32 %v1804, %v1814
        %v1818 = vadd.f32 %v1805, %v1814
        %v1819 = vadd.f32 %v1806, %v1814
        %v1820 = vadd.f32 %v1807, %v1814
        %v1821 = vadd.f32 %v1808, %v1814
        %v1822 = vadd.f32 %v1809, %v1814
        %v1823 = vpack.c.bf16 %v1816, %v1815
        %v1824 = vpack.c.bf16 %v1818, %v1817
        %v1825 = vpack.c.bf16 %v1820, %v1819
        %v1826 = vpack.c.bf16 %v1822, %v1821
        %v1827 = vld [vmem:[%s6] sm:$0xf]
        %v1828 = vld [vmem:[%s6 + $0x4] sm:$0xf]
        %v1829 = vld [vmem:[%s6 + $0x8] sm:$0xf]
        %v1830 = vld [vmem:[%s6 + $0xc] sm:$0xf]
        %v1835 = vunpack.c.l.b16 %v1827
        %v1836 = vunpack.c.l.b16 %v1828
        %v1837 = vunpack.c.l.b16 %v1829
        %v1838 = vunpack.c.l.b16 %v1830
        %v1839 = vpack.c.b16 %v1836, %v1835
        %v1840 = vpack.c.b16 %v1838, %v1837
        %v1844 = vsel %vm1695, %v1823, 0
        %v1847 = vsel %vm1695, %v1824, 0
        %v1850 = vsel %vm1695, %v1825, 0
        %v1853 = vsel %vm1695, %v1826, 0
        %1855 = vmatprep.subr.bf16.mxu0 0
        %1856 = vmatpush1.bf16.msra.mxu0 %v1839
        %1857 = vmatprep.subr.bf16.mxu0 0
        %1858 = vmatpush1.bf16.msra.mxu0 %v1840
        %1859 = vmatprep.subr.bf16.mxu0 0
        %1860 = vmatpush1.bf16.msra.mxu0 0
        %1861 = vmatprep.subr.bf16.mxu0 0
        %1862 = vmatpush1.bf16.msra.mxu0 0
        %1863 = vmatprep.subr.bf16.mxu0 0
        %1864 = vmatpush1.bf16.msra.mxu0 0
        %1865 = vmatprep.subr.bf16.mxu0 0
        %1866 = vmatpush1.bf16.msra.mxu0 0
        %1867 = vmatprep.subr.bf16.mxu0 0
        %1868 = vmatpush1.bf16.msra.mxu0 0
        %1869 = vmatprep.subr.bf16.mxu0 0
        %1870 = vmatpush1.bf16.msra.mxu0 0
        %1871 = vmatprep.subr.bf16.mxu0 0
        %1872 = vmatpush1.bf16.msra.mxu0 0
        %1873 = vmatprep.subr.bf16.mxu0 0
        %1874 = vmatpush1.bf16.msra.mxu0 0
        %1875 = vmatprep.subr.bf16.mxu0 0
        %1876 = vmatpush1.bf16.msra.mxu0 0
        %1877 = vmatprep.subr.bf16.mxu0 0
        %1878 = vmatpush1.bf16.msra.mxu0 0
        %1879 = vmatprep.subr.bf16.mxu0 0
        %1880 = vmatpush1.bf16.msra.mxu0 0
        %1881 = vmatprep.subr.bf16.mxu0 0
        %1882 = vmatpush1.bf16.msra.mxu0 0
        %1883 = vmatprep.subr.bf16.mxu0 0
        %1884 = vmatpush1.bf16.msra.mxu0 0
        %1885 = vmatprep.subr.bf16.mxu0 0
        %1886 = vmatpush1.bf16.msra.mxu0 0
        %1887 = vmatprep.mubr.bf16.mxu0 0
        %1888 = vmatmul.mubr.bf16.gmra.mrb[0].mxu0 %v1844
        %v1889 = vpop.f32.mrb[0].mxu0
        %v1890 = vadd.f32 0.0, %v1889
        %v1891 = vpop.f32.mrb[0].mxu0
        %v1892 = vpop.f32.mrb[0].mxu0
        %v1893 = vadd.f32 0.0, %v1892
        %v1894 = vpop.f32.mrb[0].mxu0
        %1895 = vmatprep.mubr.bf16.mxu0 0
        %1896 = vmatmul.mubr.bf16.gmra.mrb[0].mxu0 %v1847
        %v1897 = vpop.f32.mrb[0].mxu0
        %v1898 = vadd.f32 0.0, %v1897
        %v1899 = vpop.f32.mrb[0].mxu0
        %v1900 = vpop.f32.mrb[0].mxu0
        %v1901 = vadd.f32 0.0, %v1900
        %v1902 = vpop.f32.mrb[0].mxu0
        %1903 = vmatprep.mubr.bf16.mxu0 0
        %1904 = vmatmul.mubr.bf16.gmra.mrb[0].mxu0 %v1850
        %v1905 = vpop.f32.mrb[0].mxu0
        %v1906 = vadd.f32 0.0, %v1905
        %v1907 = vpop.f32.mrb[0].mxu0
        %v1908 = vpop.f32.mrb[0].mxu0
        %v1909 = vadd.f32 0.0, %v1908
        %v1910 = vpop.f32.mrb[0].mxu0
        %1911 = vmatprep.mubr.bf16.mxu0 0
        %1912 = vmatmul.mubr.bf16.gmra.mrb[0].mxu0 %v1853
        %v1913 = vpop.f32.mrb[0].mxu0
        %v1914 = vadd.f32 0.0, %v1913
        %v1915 = vpop.f32.mrb[0].mxu0
        %v1916 = vpop.f32.mrb[0].mxu0
        %v1917 = vadd.f32 0.0, %v1916
        %v1918 = vpop.f32.mrb[0].mxu0
        %1919 = vdwg.mxu0
        %v1920 = vmul.f32 %v1419, %v1890
        %v1921 = vmul.f32 %v1420, %v1893
        %v1922 = vmul.f32 %v1421, %v1898
        %v1923 = vmul.f32 %v1422, %v1901
        %v1924 = vmul.f32 %v1423, %v1906
        %v1925 = vmul.f32 %v1424, %v1909
        %v1926 = vmul.f32 %v1425, %v1914
        %v1927 = vmul.f32 %v1426, %v1917
        %1928 = vmatprep.subr.mxu0 0.0
        %1929 = vmatpush1.msra.mxu0 %v1920
        %1930 = vmatprep.subr.mxu0 0.0
        %1931 = vmatpush1.msra.mxu0 %v1921
        %1932 = vmatprep.subr.mxu0 0.0
        %1933 = vmatpush1.msra.mxu0 %v1922
        %1934 = vmatprep.subr.mxu0 0.0
        %1935 = vmatpush1.msra.mxu0 %v1923
        %1936 = vmatprep.subr.mxu0 0.0
        %1937 = vmatpush1.msra.mxu0 %v1924
        %1938 = vmatprep.subr.mxu0 0.0
        %1939 = vmatpush1.msra.mxu0 %v1925
        %1940 = vmatprep.subr.mxu0 0.0
        %1941 = vmatpush1.msra.mxu0 %v1926
        %1942 = vmatprep.subr.mxu0 0.0
        %1943 = vmatpush1.msra.mxu0 %v1927
        %1944 = vmatprep.subr.mxu0 0.0
        %1945 = vmatpush1.msra.mxu0 0.0
        %1946 = vmatprep.subr.mxu0 0.0
        %1947 = vmatpush1.msra.mxu0 0.0
        %1948 = vmatprep.subr.mxu0 0.0
        %1949 = vmatpush1.msra.mxu0 0.0
        %1950 = vmatprep.subr.mxu0 0.0
        %1951 = vmatpush1.msra.mxu0 0.0
        %1952 = vmatprep.subr.mxu0 0.0
        %1953 = vmatpush1.msra.mxu0 0.0
        %1954 = vmatprep.subr.mxu0 0.0
        %1955 = vmatpush1.msra.mxu0 0.0
        %1956 = vmatprep.subr.mxu0 0.0
        %1957 = vmatpush1.msra.mxu0 0.0
        %1958 = vmatprep.subr.mxu0 0.0
        %1959 = vmatpush1.msra.mxu0 0.0
        %1960 = vmatprep.subr.mxu0 0.0
        %1961 = vmatpush1.msra.mxu0 0.0
        %1962 = vmatprep.subr.mxu0 0.0
        %1963 = vmatpush1.msra.mxu0 0.0
        %1964 = vmatprep.subr.mxu0 0.0
        %1965 = vmatpush1.msra.mxu0 0.0
        %1966 = vmatprep.subr.mxu0 0.0
        %1967 = vmatpush1.msra.mxu0 0.0
        %1968 = vmatprep.subr.mxu0 0.0
        %1969 = vmatpush1.msra.mxu0 0.0
        %1970 = vmatprep.subr.mxu0 0.0
        %1971 = vmatpush1.msra.mxu0 0.0
        %1972 = vmatprep.subr.mxu0 0.0
        %1973 = vmatpush1.msra.mxu0 0.0
        %1974 = vmatprep.subr.mxu0 0.0
        %1975 = vmatpush1.msra.mxu0 0.0
        %1976 = vmatprep.subr.mxu0 0.0
        %1977 = vmatpush1.msra.mxu0 0.0
        %1978 = vmatprep.subr.mxu0 0.0
        %1979 = vmatpush1.msra.mxu0 0.0
        %1980 = vmatprep.subr.mxu0 0.0
        %1981 = vmatpush1.msra.mxu0 0.0
        %1982 = vmatprep.subr.mxu0 0.0
        %1983 = vmatpush1.msra.mxu0 0.0
        %1984 = vmatprep.subr.mxu0 0.0
        %1985 = vmatpush1.msra.mxu0 0.0
        %1986 = vmatprep.subr.mxu0 0.0
        %1987 = vmatpush1.msra.mxu0 0.0
        %1988 = vmatprep.subr.mxu0 0.0
        %1989 = vmatpush1.msra.mxu0 0.0
        %1990 = vmatprep.subr.mxu0 0.0
        %1991 = vmatpush1.msra.mxu0 0.0
        %1992 = vmatprep.mubr.f32.mxu0 0.0
        %1993 = vmatmul.mubr.f32.gmra.mrb[0].mxu0 %v1534
        %v1994 = vpop.f32.mrb[0].mxu0
        %v1995 = vadd.f32 0.0, %v1994
        %v1996 = vpop.f32.mrb[0].mxu0
        %1997 = vmatprep.mubr.f32.mxu0 0.0
        %1998 = vmatmul.mubr.f32.gmra.mrb[0].mxu0 %v1537
        %v1999 = vpop.f32.mrb[0].mxu0
        %v2000 = vadd.f32 0.0, %v1999
        %v2001 = vpop.f32.mrb[0].mxu0
        %2002 = vmatprep.mubr.f32.mxu0 0.0
        %2003 = vmatmul.mubr.f32.gmra.mrb[0].mxu0 %v1540
        %v2004 = vpop.f32.mrb[0].mxu0
        %v2005 = vadd.f32 0.0, %v2004
        %v2006 = vpop.f32.mrb[0].mxu0
        %2007 = vmatprep.mubr.f32.mxu0 0.0
        %2008 = vmatmul.mubr.f32.gmra.mrb[0].mxu0 %v1543
        %v2009 = vpop.f32.mrb[0].mxu0
        %v2010 = vadd.f32 0.0, %v2009
        %v2011 = vpop.f32.mrb[0].mxu0
        %2012 = vmatprep.mubr.f32.mxu0 0.0
        %2013 = vmatmul.mubr.f32.gmra.mrb[0].mxu0 %v1546
        %v2014 = vpop.f32.mrb[0].mxu0
        %v2015 = vadd.f32 0.0, %v2014
        %v2016 = vpop.f32.mrb[0].mxu0
        %2017 = vmatprep.mubr.f32.mxu0 0.0
        %2018 = vmatmul.mubr.f32.gmra.mrb[0].mxu0 %v1549
        %v2019 = vpop.f32.mrb[0].mxu0
        %v2020 = vadd.f32 0.0, %v2019
        %v2021 = vpop.f32.mrb[0].mxu0
        %2022 = vmatprep.mubr.f32.mxu0 0.0
        %2023 = vmatmul.mubr.f32.gmra.mrb[0].mxu0 %v1552
        %v2024 = vpop.f32.mrb[0].mxu0
        %v2025 = vadd.f32 0.0, %v2024
        %v2026 = vpop.f32.mrb[0].mxu0
        %2027 = vmatprep.mubr.f32.mxu0 0.0
        %2028 = vmatmul.mubr.f32.gmra.mrb[0].mxu0 %v1555
        %v2029 = vpop.f32.mrb[0].mxu0
        %v2030 = vadd.f32 0.0, %v2029
        %v2031 = vpop.f32.mrb[0].mxu0
        %2032 = vdwg.mxu0
        %v2033 = vmul.f32 %v1419, %v1995
        %v2034 = vmul.f32 %v1420, %v2000
        %v2035 = vmul.f32 %v1421, %v2005
        %v2036 = vmul.f32 %v1422, %v2010
        %v2037 = vmul.f32 %v1423, %v2015
        %v2038 = vmul.f32 %v1424, %v2020
        %v2039 = vmul.f32 %v1425, %v2025
        %v2040 = vmul.f32 %v1426, %v2030
        %v2041 = vpack.c.bf16 %v2034, %v2033
        %v2042 = vpack.c.bf16 %v2036, %v2035
        %v2043 = vpack.c.bf16 %v2038, %v2037
        %v2044 = vpack.c.bf16 %v2040, %v2039
        %v2045 = vld [vmem:[%s7] sm:$0xf]
        %v2046 = vld [vmem:[%s7 + $0x4] sm:$0xf]
        %v2047 = vld [vmem:[%s7 + $0x8] sm:$0xf]
        %v2048 = vld [vmem:[%s7 + $0xc] sm:$0xf]
        %v2049 = vld [vmem:[%s12 + $0x3] sm:$0x1]
        %v2050 = vlaneseq
        %v2051 = vshrl.u32 %v2050, 7
        %v2052 = vsub.s32 0, %v2051
        %v2053 = vrot.slane %v2049, %v2052
        %v2058 = vunpack.c.l.b16 %v2045
        %v2059 = vunpack.c.l.b16 %v2046
        %v2060 = vunpack.c.l.b16 %v2047
        %v2061 = vunpack.c.l.b16 %v2048
        %v2062 = vpack.c.b16 %v2059, %v2058
        %v2063 = vpack.c.b16 %v2061, %v2060
        %v2067 = vsel %vm1695, %v2041, 0
        %v2070 = vsel %vm1695, %v2042, 0
        %v2073 = vsel %vm1695, %v2043, 0
        %v2076 = vsel %vm1695, %v2044, 0
        %2078 = vmatprep.subr.bf16.mxu0 0
        %2079 = vmatpush1.bf16.msra.mxu0 %v2062
        %2080 = vmatprep.subr.bf16.mxu0 0
        %2081 = vmatpush1.bf16.msra.mxu0 %v2063
        %2082 = vmatprep.subr.bf16.mxu0 0
        %2083 = vmatpush1.bf16.msra.mxu0 0
        %2084 = vmatprep.subr.bf16.mxu0 0
        %2085 = vmatpush1.bf16.msra.mxu0 0
        %2086 = vmatprep.subr.bf16.mxu0 0
        %2087 = vmatpush1.bf16.msra.mxu0 0
        %2088 = vmatprep.subr.bf16.mxu0 0
        %2089 = vmatpush1.bf16.msra.mxu0 0
        %2090 = vmatprep.subr.bf16.mxu0 0
        %2091 = vmatpush1.bf16.msra.mxu0 0
        %2092 = vmatprep.subr.bf16.mxu0 0
        %2093 = vmatpush1.bf16.msra.mxu0 0
        %2094 = vmatprep.subr.bf16.mxu0 0
        %2095 = vmatpush1.bf16.msra.mxu0 0
        %2096 = vmatprep.subr.bf16.mxu0 0
        %2097 = vmatpush1.bf16.msra.mxu0 0
        %2098 = vmatprep.subr.bf16.mxu0 0
        %2099 = vmatpush1.bf16.msra.mxu0 0
        %2100 = vmatprep.subr.bf16.mxu0 0
        %2101 = vmatpush1.bf16.msra.mxu0 0
        %2102 = vmatprep.subr.bf16.mxu0 0
        %2103 = vmatpush1.bf16.msra.mxu0 0
        %2104 = vmatprep.subr.bf16.mxu0 0
        %2105 = vmatpush1.bf16.msra.mxu0 0
        %2106 = vmatprep.subr.bf16.mxu0 0
        %2107 = vmatpush1.bf16.msra.mxu0 0
        %2108 = vmatprep.subr.bf16.mxu0 0
        %2109 = vmatpush1.bf16.msra.mxu0 0
        %2110 = vmatprep.mubr.bf16.mxu0 0
        %2111 = vmatmul.mubr.bf16.gmra.mrb[0].mxu0 %v2067
        %v2112 = vpop.f32.mrb[0].mxu0
        %v2113 = vadd.f32 %v2053, %v2112
        %v2114 = vpop.f32.mrb[0].mxu0
        %v2115 = vpop.f32.mrb[0].mxu0
        %v2116 = vadd.f32 %v2053, %v2115
        %v2117 = vpop.f32.mrb[0].mxu0
        %2118 = vmatprep.mubr.bf16.mxu0 0
        %2119 = vmatmul.mubr.bf16.gmra.mrb[0].mxu0 %v2070
        %v2120 = vpop.f32.mrb[0].mxu0
        %v2121 = vadd.f32 %v2053, %v2120
        %v2122 = vpop.f32.mrb[0].mxu0
        %v2123 = vpop.f32.mrb[0].mxu0
        %v2124 = vadd.f32 %v2053, %v2123
        %v2125 = vpop.f32.mrb[0].mxu0
        %2126 = vmatprep.mubr.bf16.mxu0 0
        %2127 = vmatmul.mubr.bf16.gmra.mrb[0].mxu0 %v2073
        %v2128 = vpop.f32.mrb[0].mxu0
        %v2129 = vadd.f32 %v2053, %v2128
        %v2130 = vpop.f32.mrb[0].mxu0
        %v2131 = vpop.f32.mrb[0].mxu0
        %v2132 = vadd.f32 %v2053, %v2131
        %v2133 = vpop.f32.mrb[0].mxu0
        %2134 = vmatprep.mubr.bf16.mxu0 0
        %2135 = vmatmul.mubr.bf16.gmra.mrb[0].mxu0 %v2076
        %v2136 = vpop.f32.mrb[0].mxu0
        %v2137 = vadd.f32 %v2053, %v2136
        %v2138 = vpop.f32.mrb[0].mxu0
        %v2139 = vpop.f32.mrb[0].mxu0
        %v2140 = vadd.f32 %v2053, %v2139
        %v2141 = vpop.f32.mrb[0].mxu0
        %2142 = vdwg.mxu0
        %vm2143 = vcmp.gt.f32.partialorder %v2113, 0.0
        %vm2144 = vcmp.gt.f32.partialorder %v2116, 0.0
        %vm2145 = vcmp.gt.f32.partialorder %v2121, 0.0
        %vm2146 = vcmp.gt.f32.partialorder %v2124, 0.0
        %vm2147 = vcmp.gt.f32.partialorder %v2129, 0.0
        %vm2148 = vcmp.gt.f32.partialorder %v2132, 0.0
        %vm2149 = vcmp.gt.f32.partialorder %v2137, 0.0
        %vm2150 = vcmp.gt.f32.partialorder %v2140, 0.0
        %v2151 = vmul.f32 %v2113, 0.1
        %v2152 = vmul.f32 %v2116, 0.1
        %v2153 = vmul.f32 %v2121, 0.1
        %v2154 = vmul.f32 %v2124, 0.1
        %v2155 = vmul.f32 %v2129, 0.1
        %v2156 = vmul.f32 %v2132, 0.1
        %v2157 = vmul.f32 %v2137, 0.1
        %v2158 = vmul.f32 %v2140, 0.1
        %v2159 = vsel %vm2143, %v2113, %v2151
        %v2160 = vsel %vm2144, %v2116, %v2152
        %v2161 = vsel %vm2145, %v2121, %v2153
        %v2162 = vsel %vm2146, %v2124, %v2154
        %v2163 = vsel %vm2147, %v2129, %v2155
        %v2164 = vsel %vm2148, %v2132, %v2156
        %v2165 = vsel %vm2149, %v2137, %v2157
        %v2166 = vsel %vm2150, %v2140, %v2158
        %v2167 = vpack.c.bf16 %v2160, %v2159
        %v2168 = vpack.c.bf16 %v2162, %v2161
        %v2169 = vpack.c.bf16 %v2164, %v2163
        %v2170 = vpack.c.bf16 %v2166, %v2165
        %v2171 = vld [vmem:[%s8] sm:$0xf]
        %v2172 = vld [vmem:[%s8 + $0x4] sm:$0xf]
        %v2173 = vld [vmem:[%s12 + $0x4] sm:$0x1]
        %v2174 = vlaneseq
        %v2175 = vshrl.u32 %v2174, 7
        %v2176 = vsub.s32 0, %v2175
        %v2177 = vrot.slane %v2173, %v2176
        %v2180 = vunpack.c.l.b16 %v2171
        %v2181 = vunpack.c.l.b16 %v2172
        %v2182 = vpack.c.b16 %v2181, %v2180
        %v2185 = vsel %vm1447, %v2167, 0
        %v2188 = vsel %vm1447, %v2168, 0
        %v2191 = vsel %vm1447, %v2169, 0
        %v2194 = vsel %vm1447, %v2170, 0
        %2196 = vmatprep.subr.bf16.mxu0 0
        %2197 = vmatpush1.bf16.msra.mxu0 %v2182
        %2198 = vmatprep.subr.bf16.mxu0 0
        %2199 = vmatpush1.bf16.msra.mxu0 0
        %2200 = vmatprep.subr.bf16.mxu0 0
        %2201 = vmatpush1.bf16.msra.mxu0 0
        %2202 = vmatprep.subr.bf16.mxu0 0
        %2203 = vmatpush1.bf16.msra.mxu0 0
        %2204 = vmatprep.subr.bf16.mxu0 0
        %2205 = vmatpush1.bf16.msra.mxu0 0
        %2206 = vmatprep.subr.bf16.mxu0 0
        %2207 = vmatpush1.bf16.msra.mxu0 0
        %2208 = vmatprep.subr.bf16.mxu0 0
        %2209 = vmatpush1.bf16.msra.mxu0 0
        %2210 = vmatprep.subr.bf16.mxu0 0
        %2211 = vmatpush1.bf16.msra.mxu0 0
        %2212 = vmatprep.subr.bf16.mxu0 0
        %2213 = vmatpush1.bf16.msra.mxu0 0
        %2214 = vmatprep.subr.bf16.mxu0 0
        %2215 = vmatpush1.bf16.msra.mxu0 0
        %2216 = vmatprep.subr.bf16.mxu0 0
        %2217 = vmatpush1.bf16.msra.mxu0 0
        %2218 = vmatprep.subr.bf16.mxu0 0
        %2219 = vmatpush1.bf16.msra.mxu0 0
        %2220 = vmatprep.subr.bf16.mxu0 0
        %2221 = vmatpush1.bf16.msra.mxu0 0
        %2222 = vmatprep.subr.bf16.mxu0 0
        %2223 = vmatpush1.bf16.msra.mxu0 0
        %2224 = vmatprep.subr.bf16.mxu0 0
        %2225 = vmatpush1.bf16.msra.mxu0 0
        %2226 = vmatprep.subr.bf16.mxu0 0
        %2227 = vmatpush1.bf16.msra.mxu0 0
        %2228 = vmatprep.mubr.bf16.mxu0 0
        %2229 = vmatmul.mubr.bf16.gmra.mrb[0].mxu0 %v2185
        %v2230 = vpop.f32.mrb[0].mxu0
        %v2231 = vadd.f32 %v2177, %v2230
        %v2232 = vpop.f32.mrb[0].mxu0
        %v2233 = vpop.f32.mrb[0].mxu0
        %v2234 = vadd.f32 %v2177, %v2233
        %v2235 = vpop.f32.mrb[0].mxu0
        %2236 = vmatprep.mubr.bf16.mxu0 0
        %2237 = vmatmul.mubr.bf16.gmra.mrb[0].mxu0 %v2188
        %v2238 = vpop.f32.mrb[0].mxu0
        %v2239 = vadd.f32 %v2177, %v2238
        %v2240 = vpop.f32.mrb[0].mxu0
        %v2241 = vpop.f32.mrb[0].mxu0
        %v2242 = vadd.f32 %v2177, %v2241
        %v2243 = vpop.f32.mrb[0].mxu0
        %2244 = vmatprep.mubr.bf16.mxu0 0
        %2245 = vmatmul.mubr.bf16.gmra.mrb[0].mxu0 %v2191
        %v2246 = vpop.f32.mrb[0].mxu0
        %v2247 = vadd.f32 %v2177, %v2246
        %v2248 = vpop.f32.mrb[0].mxu0
        %v2249 = vpop.f32.mrb[0].mxu0
        %v2250 = vadd.f32 %v2177, %v2249
        %v2251 = vpop.f32.mrb[0].mxu0
        %2252 = vmatprep.mubr.bf16.mxu0 0
        %2253 = vmatmul.mubr.bf16.gmra.mrb[0].mxu0 %v2194
        %v2254 = vpop.f32.mrb[0].mxu0
        %v2255 = vadd.f32 %v2177, %v2254
        %v2256 = vpop.f32.mrb[0].mxu0
        %v2257 = vpop.f32.mrb[0].mxu0
        %v2258 = vadd.f32 %v2177, %v2257
        %v2259 = vpop.f32.mrb[0].mxu0
        %2260 = vdwg.mxu0
        %vm2261 = vcmp.gt.f32.partialorder %v2231, 0.0
        %vm2262 = vcmp.gt.f32.partialorder %v2234, 0.0
        %vm2263 = vcmp.gt.f32.partialorder %v2239, 0.0
        %vm2264 = vcmp.gt.f32.partialorder %v2242, 0.0
        %vm2265 = vcmp.gt.f32.partialorder %v2247, 0.0
        %vm2266 = vcmp.gt.f32.partialorder %v2250, 0.0
        %vm2267 = vcmp.gt.f32.partialorder %v2255, 0.0
        %vm2268 = vcmp.gt.f32.partialorder %v2258, 0.0
        %v2269 = vmul.f32 %v2231, 0.1
        %v2270 = vmul.f32 %v2234, 0.1
        %v2271 = vmul.f32 %v2239, 0.1
        %v2272 = vmul.f32 %v2242, 0.1
        %v2273 = vmul.f32 %v2247, 0.1
        %v2274 = vmul.f32 %v2250, 0.1
        %v2275 = vmul.f32 %v2255, 0.1
        %v2276 = vmul.f32 %v2258, 0.1
        %v2277 = vsel %vm2261, %v2231, %v2269
        %v2278 = vsel %vm2262, %v2234, %v2270
        %v2279 = vsel %vm2263, %v2239, %v2271
        %v2280 = vsel %vm2264, %v2242, %v2272
        %v2281 = vsel %vm2265, %v2247, %v2273
        %v2282 = vsel %vm2266, %v2250, %v2274
        %v2283 = vsel %vm2267, %v2255, %v2275
        %v2284 = vsel %vm2268, %v2258, %v2276
        %v2285 = vld [vmem:[%s12 + $0x5] sm:$0x1]
        %v2286 = vlaneseq
        %v2287 = vshrl.u32 %v2286, 7
        %v2288 = vsub.s32 0, %v2287
        %v2289 = vrot.slane %v2285, %v2288
        %v2290 = vmul.f32 %v2277, %v2289
        %v2291 = vmul.f32 %v2278, %v2289
        %v2292 = vmul.f32 %v2279, %v2289
        %v2293 = vmul.f32 %v2280, %v2289
        %v2294 = vmul.f32 %v2281, %v2289
        %v2295 = vmul.f32 %v2282, %v2289
        %v2296 = vmul.f32 %v2283, %v2289
        %v2297 = vmul.f32 %v2284, %v2289
        %v2298 = vld [vmem:[%s12 + $0x6] sm:$0x1]
        %v2299 = vlaneseq
        %v2300 = vshrl.u32 %v2299, 7
        %v2301 = vsub.s32 0, %v2300
        %v2302 = vrot.slane %v2298, %v2301
        %v2303 = vadd.f32 %v2290, %v2302
        %v2304 = vadd.f32 %v2291, %v2302
        %v2305 = vadd.f32 %v2292, %v2302
        %v2306 = vadd.f32 %v2293, %v2302
        %v2307 = vadd.f32 %v2294, %v2302
        %v2308 = vadd.f32 %v2295, %v2302
        %v2309 = vadd.f32 %v2296, %v2302
        %v2310 = vadd.f32 %v2297, %v2302
        %2311 = vxpose.xlu0.b32.start [1/16] %v2303, 128
        %2312 = vxpose.xlu0.b32.cont [2/16] %v2304, 128
        %2313 = vxpose.xlu0.b32.cont [3/16] %v2305, 128
        %2314 = vxpose.xlu0.b32.cont [4/16] %v2306, 128
        %2315 = vxpose.xlu0.b32.cont [5/16] %v2307, 128
        %2316 = vxpose.xlu0.b32.cont [6/16] %v2308, 128
        %2317 = vxpose.xlu0.b32.cont [7/16] %v2309, 128
        %2318 = vxpose.xlu0.b32.cont [8/16] %v2310, 128
        %2319 = vxpose.xlu0.b32.cont [9/16] 0.0, 128
        %2320 = vxpose.xlu0.b32.cont [10/16] 0.0, 128
        %2321 = vxpose.xlu0.b32.cont [11/16] 0.0, 128
        %2322 = vxpose.xlu0.b32.cont [12/16] 0.0, 128
        %2323 = vxpose.xlu0.b32.cont [13/16] 0.0, 128
        %2324 = vxpose.xlu0.b32.cont [14/16] 0.0, 128
        %2325 = vxpose.xlu0.b32.cont [15/16] 0.0, 128
        %2326 = vxpose.xlu0.b32.end [16/16] 0.0, 128
        %v2327 = vpop.trf.xlu0
        %v2328 = vpop.trf.xlu0
        %v2329 = vpop.trf.xlu0
        %v2330 = vpop.trf.xlu0
        %v2331 = vpop.trf.xlu0
        %v2332 = vpop.trf.xlu0
        %v2333 = vpop.trf.xlu0
        %v2334 = vpop.trf.xlu0
        %v2335 = vpop.trf.xlu0
        %v2336 = vpop.trf.xlu0
        %v2337 = vpop.trf.xlu0
        %v2338 = vpop.trf.xlu0
        %v2339 = vpop.trf.xlu0
        %v2340 = vpop.trf.xlu0
        %v2341 = vpop.trf.xlu0
        %v2342 = vpop.trf.xlu0
        %v2343 = vld [vmem:[%s13] sm:$0xf]
        %v2344 = vlaneseq
        %v2345 = vshrl.u32 %v2344, 7
        %v2346 = vsub.s32 0, %v2345
        %v2347 = vrot.slane %v2327, %v2346
        %v2348 = vmul.f32 %v2343, %v2347
        %v2349 = vpack.c.bf16 %v2348, %v2348
        %v2350 = vld [vmem:[%s9] sm:$0xf]
        %v2351 = vld [vmem:[%s9 + $0x4] sm:$0xf]
        %v2352 = vld [vmem:[%s9 + $0x8] sm:$0xf]
        %v2353 = vld [vmem:[%s9 + $0xc] sm:$0xf]
        %v2354 = vld [vmem:[%s9 + $0x10] sm:$0xf]
        %v2355 = vld [vmem:[%s9 + $0x14] sm:$0xf]
        %v2356 = vld [vmem:[%s9 + $0x18] sm:$0xf]
        %v2357 = vld [vmem:[%s9 + $0x1c] sm:$0xf]
        %v2358 = vlaneseq
        %v2359 = vshrl.u32 %v2358, 7
        %v2360 = vsub.s32 1, %v2359
        %v2361 = vrot.slane %v2327, %v2360
        %v2362 = vmul.f32 %v2343, %v2361
        %v2363 = vpack.c.bf16 %v2362, %v2362
        %v2364 = vld [vmem:[%s9 + $0x20] sm:$0xf]
        %v2365 = vld [vmem:[%s9 + $0x24] sm:$0xf]
        %v2366 = vld [vmem:[%s9 + $0x28] sm:$0xf]
        %v2367 = vld [vmem:[%s9 + $0x2c] sm:$0xf]
        %v2368 = vld [vmem:[%s9 + $0x30] sm:$0xf]
        %v2369 = vld [vmem:[%s9 + $0x34] sm:$0xf]
        %v2370 = vld [vmem:[%s9 + $0x38] sm:$0xf]
        %v2371 = vld [vmem:[%s9 + $0x3c] sm:$0xf]
        %v2380 = vunpack.c.l.b16 %v2364
        %v2381 = vunpack.c.l.b16 %v2365
        %v2382 = vunpack.c.l.b16 %v2366
        %v2383 = vunpack.c.l.b16 %v2367
        %v2384 = vunpack.c.l.b16 %v2368
        %v2385 = vunpack.c.l.b16 %v2369
        %v2386 = vunpack.c.l.b16 %v2370
        %v2387 = vunpack.c.l.b16 %v2371
        %v2388 = vpack.c.b16 %v2381, %v2380
        %v2389 = vpack.c.b16 %v2383, %v2382
        %v2390 = vpack.c.b16 %v2385, %v2384
        %v2391 = vpack.c.b16 %v2387, %v2386
        %v2397 = vsel %vm1378, %v2363, 0
        %2399 = vmatprep.subr.bf16.mxu0 0
        %2400 = vmatpush1.bf16.msra.mxu0 %v2388
        %2401 = vmatprep.subr.bf16.mxu0 0
        %2402 = vmatpush1.bf16.msra.mxu0 %v2389
        %2403 = vmatprep.subr.bf16.mxu0 0
        %2404 = vmatpush1.bf16.msra.mxu0 %v2390
        %2405 = vmatprep.subr.bf16.mxu0 0
        %2406 = vmatpush1.bf16.msra.mxu0 %v2391
        %2407 = vmatprep.subr.bf16.mxu0 0
        %2408 = vmatpush1.bf16.msra.mxu0 0
        %2409 = vmatprep.subr.bf16.mxu0 0
        %2410 = vmatpush1.bf16.msra.mxu0 0
        %2411 = vmatprep.subr.bf16.mxu0 0
        %2412 = vmatpush1.bf16.msra.mxu0 0
        %2413 = vmatprep.subr.bf16.mxu0 0
        %2414 = vmatpush1.bf16.msra.mxu0 0
        %2415 = vmatprep.subr.bf16.mxu0 0
        %2416 = vmatpush1.bf16.msra.mxu0 0
        %2417 = vmatprep.subr.bf16.mxu0 0
        %2418 = vmatpush1.bf16.msra.mxu0 0
        %2419 = vmatprep.subr.bf16.mxu0 0
        %2420 = vmatpush1.bf16.msra.mxu0 0
        %2421 = vmatprep.subr.bf16.mxu0 0
        %2422 = vmatpush1.bf16.msra.mxu0 0
        %2423 = vmatprep.subr.bf16.mxu0 0
        %2424 = vmatpush1.bf16.msra.mxu0 0
        %2425 = vmatprep.subr.bf16.mxu0 0
        %2426 = vmatpush1.bf16.msra.mxu0 0
        %2427 = vmatprep.subr.bf16.mxu0 0
        %2428 = vmatpush1.bf16.msra.mxu0 0
        %2429 = vmatprep.subr.bf16.mxu0 0
        %2430 = vmatpush1.bf16.msra.mxu0 0
        %2431 = vmatprep.mubr.bf16.mxu0 0
        %2432 = vmatmul.mubr.bf16.gmra.mrb[0].mxu0 %v2397
        %v2433 = vpop.f32.mrb[0].mxu0
        %v2434 = vadd.f32 0.0, %v2433
        %v2435 = vpop.f32.mrb[0].mxu0
        %v2436 = vpop.f32.mrb[0].mxu0
        %v2437 = vpop.f32.mrb[0].mxu0
        %2438 = vdwg.mxu0
        %v2447 = vunpack.c.l.b16 %v2350
        %v2448 = vunpack.c.l.b16 %v2351
        %v2449 = vunpack.c.l.b16 %v2352
        %v2450 = vunpack.c.l.b16 %v2353
        %v2451 = vunpack.c.l.b16 %v2354
        %v2452 = vunpack.c.l.b16 %v2355
        %v2453 = vunpack.c.l.b16 %v2356
        %v2454 = vunpack.c.l.b16 %v2357
        %v2455 = vpack.c.b16 %v2448, %v2447
        %v2456 = vpack.c.b16 %v2450, %v2449
        %v2457 = vpack.c.b16 %v2452, %v2451
        %v2458 = vpack.c.b16 %v2454, %v2453
        %v2464 = vsel %vm1378, %v2349, 0
        %2466 = vmatprep.subr.bf16.mxu0 0
        %2467 = vmatpush1.bf16.msra.mxu0 %v2455
        %2468 = vmatprep.subr.bf16.mxu0 0
        %2469 = vmatpush1.bf16.msra.mxu0 %v2456
        %2470 = vmatprep.subr.bf16.mxu0 0
        %2471 = vmatpush1.bf16.msra.mxu0 %v2457
        %2472 = vmatprep.subr.bf16.mxu0 0
        %2473 = vmatpush1.bf16.msra.mxu0 %v2458
        %2474 = vmatprep.subr.bf16.mxu0 0
        %2475 = vmatpush1.bf16.msra.mxu0 0
        %2476 = vmatprep.subr.bf16.mxu0 0
        %2477 = vmatpush1.bf16.msra.mxu0 0
        %2478 = vmatprep.subr.bf16.mxu0 0
        %2479 = vmatpush1.bf16.msra.mxu0 0
        %2480 = vmatprep.subr.bf16.mxu0 0
        %2481 = vmatpush1.bf16.msra.mxu0 0
        %2482 = vmatprep.subr.bf16.mxu0 0
        %2483 = vmatpush1.bf16.msra.mxu0 0
        %2484 = vmatprep.subr.bf16.mxu0 0
        %2485 = vmatpush1.bf16.msra.mxu0 0
        %2486 = vmatprep.subr.bf16.mxu0 0
        %2487 = vmatpush1.bf16.msra.mxu0 0
        %2488 = vmatprep.subr.bf16.mxu0 0
        %2489 = vmatpush1.bf16.msra.mxu0 0
        %2490 = vmatprep.subr.bf16.mxu0 0
        %2491 = vmatpush1.bf16.msra.mxu0 0
        %2492 = vmatprep.subr.bf16.mxu0 0
        %2493 = vmatpush1.bf16.msra.mxu0 0
        %2494 = vmatprep.subr.bf16.mxu0 0
        %2495 = vmatpush1.bf16.msra.mxu0 0
        %2496 = vmatprep.subr.bf16.mxu0 0
        %2497 = vmatpush1.bf16.msra.mxu0 0
        %2498 = vmatprep.mubr.bf16.mxu0 0
        %2499 = vmatmul.mubr.bf16.gmra.mrb[0].mxu0 %v2464
        %v2500 = vpop.f32.mrb[0].mxu0
        %v2501 = vadd.f32 %v2434, %v2500
        %v2502 = vpop.f32.mrb[0].mxu0
        %v2503 = vpop.f32.mrb[0].mxu0
        %v2504 = vpop.f32.mrb[0].mxu0
        %2505 = vdwg.mxu0
        %v2506 = vlaneseq
        %v2507 = vshrl.u32 %v2506, 7
        %v2508 = vsub.s32 2, %v2507
        %v2509 = vrot.slane %v2327, %v2508
        %v2510 = vmul.f32 %v2343, %v2509
        %v2511 = vpack.c.bf16 %v2510, %v2510
        %v2512 = vld [vmem:[%s9 + $0x40] sm:$0xf]
        %v2513 = vld [vmem:[%s9 + $0x44] sm:$0xf]
        %v2514 = vld [vmem:[%s9 + $0x48] sm:$0xf]
        %v2515 = vld [vmem:[%s9 + $0x4c] sm:$0xf]
        %v2516 = vld [vmem:[%s9 + $0x50] sm:$0xf]
        %v2517 = vld [vmem:[%s9 + $0x54] sm:$0xf]
        %v2518 = vld [vmem:[%s9 + $0x58] sm:$0xf]
        %v2519 = vld [vmem:[%s9 + $0x5c] sm:$0xf]
        %v2528 = vunpack.c.l.b16 %v2512
        %v2529 = vunpack.c.l.b16 %v2513
        %v2530 = vunpack.c.l.b16 %v2514
        %v2531 = vunpack.c.l.b16 %v2515
        %v2532 = vunpack.c.l.b16 %v2516
        %v2533 = vunpack.c.l.b16 %v2517
        %v2534 = vunpack.c.l.b16 %v2518
        %v2535 = vunpack.c.l.b16 %v2519
        %v2536 = vpack.c.b16 %v2529, %v2528
        %v2537 = vpack.c.b16 %v2531, %v2530
        %v2538 = vpack.c.b16 %v2533, %v2532
        %v2539 = vpack.c.b16 %v2535, %v2534
        %v2545 = vsel %vm1378, %v2511, 0
        %2547 = vmatprep.subr.bf16.mxu0 0
        %2548 = vmatpush1.bf16.msra.mxu0 %v2536
        %2549 = vmatprep.subr.bf16.mxu0 0
        %2550 = vmatpush1.bf16.msra.mxu0 %v2537
        %2551 = vmatprep.subr.bf16.mxu0 0
        %2552 = vmatpush1.bf16.msra.mxu0 %v2538
        %2553 = vmatprep.subr.bf16.mxu0 0
        %2554 = vmatpush1.bf16.msra.mxu0 %v2539
        %2555 = vmatprep.subr.bf16.mxu0 0
        %2556 = vmatpush1.bf16.msra.mxu0 0
        %2557 = vmatprep.subr.bf16.mxu0 0
        %2558 = vmatpush1.bf16.msra.mxu0 0
        %2559 = vmatprep.subr.bf16.mxu0 0
        %2560 = vmatpush1.bf16.msra.mxu0 0
        %2561 = vmatprep.subr.bf16.mxu0 0
        %2562 = vmatpush1.bf16.msra.mxu0 0
        %2563 = vmatprep.subr.bf16.mxu0 0
        %2564 = vmatpush1.bf16.msra.mxu0 0
        %2565 = vmatprep.subr.bf16.mxu0 0
        %2566 = vmatpush1.bf16.msra.mxu0 0
        %2567 = vmatprep.subr.bf16.mxu0 0
        %2568 = vmatpush1.bf16.msra.mxu0 0
        %2569 = vmatprep.subr.bf16.mxu0 0
        %2570 = vmatpush1.bf16.msra.mxu0 0
        %2571 = vmatprep.subr.bf16.mxu0 0
        %2572 = vmatpush1.bf16.msra.mxu0 0
        %2573 = vmatprep.subr.bf16.mxu0 0
        %2574 = vmatpush1.bf16.msra.mxu0 0
        %2575 = vmatprep.subr.bf16.mxu0 0
        %2576 = vmatpush1.bf16.msra.mxu0 0
        %2577 = vmatprep.subr.bf16.mxu0 0
        %2578 = vmatpush1.bf16.msra.mxu0 0
        %2579 = vmatprep.mubr.bf16.mxu0 0
        %2580 = vmatmul.mubr.bf16.gmra.mrb[0].mxu0 %v2545
        %v2581 = vpop.f32.mrb[0].mxu0
        %v2582 = vadd.f32 0.0, %v2581
        %v2583 = vpop.f32.mrb[0].mxu0
        %v2584 = vpop.f32.mrb[0].mxu0
        %v2585 = vpop.f32.mrb[0].mxu0
        %2586 = vdwg.mxu0
        %v2587 = vadd.f32 %v2501, %v2582
        %v2588 = vlaneseq
        %v2589 = vshrl.u32 %v2588, 7
        %v2590 = vsub.s32 3, %v2589
        %v2591 = vrot.slane %v2327, %v2590
        %v2592 = vmul.f32 %v2343, %v2591
        %v2593 = vpack.c.bf16 %v2592, %v2592
        %v2594 = vld [vmem:[%s9 + $0x60] sm:$0xf]
        %v2595 = vld [vmem:[%s9 + $0x64] sm:$0xf]
        %v2596 = vld [vmem:[%s9 + $0x68] sm:$0xf]
        %v2597 = vld [vmem:[%s9 + $0x6c] sm:$0xf]
        %v2598 = vld [vmem:[%s9 + $0x70] sm:$0xf]
        %v2599 = vld [vmem:[%s9 + $0x74] sm:$0xf]
        %v2600 = vld [vmem:[%s9 + $0x78] sm:$0xf]
        %v2601 = vld [vmem:[%s9 + $0x7c] sm:$0xf]
        %v2610 = vunpack.c.l.b16 %v2594
        %v2611 = vunpack.c.l.b16 %v2595
        %v2612 = vunpack.c.l.b16 %v2596
        %v2613 = vunpack.c.l.b16 %v2597
        %v2614 = vunpack.c.l.b16 %v2598
        %v2615 = vunpack.c.l.b16 %v2599
        %v2616 = vunpack.c.l.b16 %v2600
        %v2617 = vunpack.c.l.b16 %v2601
        %v2618 = vpack.c.b16 %v2611, %v2610
        %v2619 = vpack.c.b16 %v2613, %v2612
        %v2620 = vpack.c.b16 %v2615, %v2614
        %v2621 = vpack.c.b16 %v2617, %v2616
        %v2627 = vsel %vm1378, %v2593, 0
        %2629 = vmatprep.subr.bf16.mxu0 0
        %2630 = vmatpush1.bf16.msra.mxu0 %v2618
        %2631 = vmatprep.subr.bf16.mxu0 0
        %2632 = vmatpush1.bf16.msra.mxu0 %v2619
        %2633 = vmatprep.subr.bf16.mxu0 0
        %2634 = vmatpush1.bf16.msra.mxu0 %v2620
        %2635 = vmatprep.subr.bf16.mxu0 0
        %2636 = vmatpush1.bf16.msra.mxu0 %v2621
        %2637 = vmatprep.subr.bf16.mxu0 0
        %2638 = vmatpush1.bf16.msra.mxu0 0
        %2639 = vmatprep.subr.bf16.mxu0 0
        %2640 = vmatpush1.bf16.msra.mxu0 0
        %2641 = vmatprep.subr.bf16.mxu0 0
        %2642 = vmatpush1.bf16.msra.mxu0 0
        %2643 = vmatprep.subr.bf16.mxu0 0
        %2644 = vmatpush1.bf16.msra.mxu0 0
        %2645 = vmatprep.subr.bf16.mxu0 0
        %2646 = vmatpush1.bf16.msra.mxu0 0
        %2647 = vmatprep.subr.bf16.mxu0 0
        %2648 = vmatpush1.bf16.msra.mxu0 0
        %2649 = vmatprep.subr.bf16.mxu0 0
        %2650 = vmatpush1.bf16.msra.mxu0 0
        %2651 = vmatprep.subr.bf16.mxu0 0
        %2652 = vmatpush1.bf16.msra.mxu0 0
        %2653 = vmatprep.subr.bf16.mxu0 0
        %2654 = vmatpush1.bf16.msra.mxu0 0
        %2655 = vmatprep.subr.bf16.mxu0 0
        %2656 = vmatpush1.bf16.msra.mxu0 0
        %2657 = vmatprep.subr.bf16.mxu0 0
        %2658 = vmatpush1.bf16.msra.mxu0 0
        %2659 = vmatprep.subr.bf16.mxu0 0
        %2660 = vmatpush1.bf16.msra.mxu0 0
        %2661 = vmatprep.mubr.bf16.mxu0 0
        %2662 = vmatmul.mubr.bf16.gmra.mrb[0].mxu0 %v2627
        %v2663 = vpop.f32.mrb[0].mxu0
        %v2664 = vadd.f32 0.0, %v2663
        %v2665 = vpop.f32.mrb[0].mxu0
        %v2666 = vpop.f32.mrb[0].mxu0
        %v2667 = vpop.f32.mrb[0].mxu0
        %2668 = vdwg.mxu0
        %v2669 = vadd.f32 %v2587, %v2664
        %v2670 = vlaneseq
        %v2671 = vshrl.u32 %v2670, 7
        %v2672 = vsub.s32 4, %v2671
        %v2673 = vrot.slane %v2327, %v2672
        %v2674 = vmul.f32 %v2343, %v2673
        %v2675 = vpack.c.bf16 %v2674, %v2674
        %v2676 = vld [vmem:[%s9 + $0x80] sm:$0xf]
        %v2677 = vld [vmem:[%s9 + $0x84] sm:$0xf]
        %v2678 = vld [vmem:[%s9 + $0x88] sm:$0xf]
        %v2679 = vld [vmem:[%s9 + $0x8c] sm:$0xf]
        %v2680 = vld [vmem:[%s9 + $0x90] sm:$0xf]
        %v2681 = vld [vmem:[%s9 + $0x94] sm:$0xf]
        %v2682 = vld [vmem:[%s9 + $0x98] sm:$0xf]
        %v2683 = vld [vmem:[%s9 + $0x9c] sm:$0xf]
        %v2692 = vunpack.c.l.b16 %v2676
        %v2693 = vunpack.c.l.b16 %v2677
        %v2694 = vunpack.c.l.b16 %v2678
        %v2695 = vunpack.c.l.b16 %v2679
        %v2696 = vunpack.c.l.b16 %v2680
        %v2697 = vunpack.c.l.b16 %v2681
        %v2698 = vunpack.c.l.b16 %v2682
        %v2699 = vunpack.c.l.b16 %v2683
        %v2700 = vpack.c.b16 %v2693, %v2692
        %v2701 = vpack.c.b16 %v2695, %v2694
        %v2702 = vpack.c.b16 %v2697, %v2696
        %v2703 = vpack.c.b16 %v2699, %v2698
        %v2709 = vsel %vm1378, %v2675, 0
        %2711 = vmatprep.subr.bf16.mxu0 0
        %2712 = vmatpush1.bf16.msra.mxu0 %v2700
        %2713 = vmatprep.subr.bf16.mxu0 0
        %2714 = vmatpush1.bf16.msra.mxu0 %v2701
        %2715 = vmatprep.subr.bf16.mxu0 0
        %2716 = vmatpush1.bf16.msra.mxu0 %v2702
        %2717 = vmatprep.subr.bf16.mxu0 0
        %2718 = vmatpush1.bf16.msra.mxu0 %v2703
        %2719 = vmatprep.subr.bf16.mxu0 0
        %2720 = vmatpush1.bf16.msra.mxu0 0
        %2721 = vmatprep.subr.bf16.mxu0 0
        %2722 = vmatpush1.bf16.msra.mxu0 0
        %2723 = vmatprep.subr.bf16.mxu0 0
        %2724 = vmatpush1.bf16.msra.mxu0 0
        %2725 = vmatprep.subr.bf16.mxu0 0
        %2726 = vmatpush1.bf16.msra.mxu0 0
        %2727 = vmatprep.subr.bf16.mxu0 0
        %2728 = vmatpush1.bf16.msra.mxu0 0
        %2729 = vmatprep.subr.bf16.mxu0 0
        %2730 = vmatpush1.bf16.msra.mxu0 0
        %2731 = vmatprep.subr.bf16.mxu0 0
        %2732 = vmatpush1.bf16.msra.mxu0 0
        %2733 = vmatprep.subr.bf16.mxu0 0
        %2734 = vmatpush1.bf16.msra.mxu0 0
        %2735 = vmatprep.subr.bf16.mxu0 0
        %2736 = vmatpush1.bf16.msra.mxu0 0
        %2737 = vmatprep.subr.bf16.mxu0 0
        %2738 = vmatpush1.bf16.msra.mxu0 0
        %2739 = vmatprep.subr.bf16.mxu0 0
        %2740 = vmatpush1.bf16.msra.mxu0 0
        %2741 = vmatprep.subr.bf16.mxu0 0
        %2742 = vmatpush1.bf16.msra.mxu0 0
        %2743 = vmatprep.mubr.bf16.mxu0 0
        %2744 = vmatmul.mubr.bf16.gmra.mrb[0].mxu0 %v2709
        %v2745 = vpop.f32.mrb[0].mxu0
        %v2746 = vadd.f32 0.0, %v2745
        %v2747 = vpop.f32.mrb[0].mxu0
        %v2748 = vpop.f32.mrb[0].mxu0
        %v2749 = vpop.f32.mrb[0].mxu0
        %2750 = vdwg.mxu0
        %v2751 = vadd.f32 %v2669, %v2746
        %v2752 = vlaneseq
        %v2753 = vshrl.u32 %v2752, 7
        %v2754 = vsub.s32 5, %v2753
        %v2755 = vrot.slane %v2327, %v2754
        %v2756 = vmul.f32 %v2343, %v2755
        %v2757 = vpack.c.bf16 %v2756, %v2756
        %v2758 = vld [vmem:[%s9 + $0xa0] sm:$0xf]
        %v2759 = vld [vmem:[%s9 + $0xa4] sm:$0xf]
        %v2760 = vld [vmem:[%s9 + $0xa8] sm:$0xf]
        %v2761 = vld [vmem:[%s9 + $0xac] sm:$0xf]
        %v2762 = vld [vmem:[%s9 + $0xb0] sm:$0xf]
        %v2763 = vld [vmem:[%s9 + $0xb4] sm:$0xf]
        %v2764 = vld [vmem:[%s9 + $0xb8] sm:$0xf]
        %v2765 = vld [vmem:[%s9 + $0xbc] sm:$0xf]
        %v2774 = vunpack.c.l.b16 %v2758
        %v2775 = vunpack.c.l.b16 %v2759
        %v2776 = vunpack.c.l.b16 %v2760
        %v2777 = vunpack.c.l.b16 %v2761
        %v2778 = vunpack.c.l.b16 %v2762
        %v2779 = vunpack.c.l.b16 %v2763
        %v2780 = vunpack.c.l.b16 %v2764
        %v2781 = vunpack.c.l.b16 %v2765
        %v2782 = vpack.c.b16 %v2775, %v2774
        %v2783 = vpack.c.b16 %v2777, %v2776
        %v2784 = vpack.c.b16 %v2779, %v2778
        %v2785 = vpack.c.b16 %v2781, %v2780
        %v2791 = vsel %vm1378, %v2757, 0
        %2793 = vmatprep.subr.bf16.mxu0 0
        %2794 = vmatpush1.bf16.msra.mxu0 %v2782
        %2795 = vmatprep.subr.bf16.mxu0 0
        %2796 = vmatpush1.bf16.msra.mxu0 %v2783
        %2797 = vmatprep.subr.bf16.mxu0 0
        %2798 = vmatpush1.bf16.msra.mxu0 %v2784
        %2799 = vmatprep.subr.bf16.mxu0 0
        %2800 = vmatpush1.bf16.msra.mxu0 %v2785
        %2801 = vmatprep.subr.bf16.mxu0 0
        %2802 = vmatpush1.bf16.msra.mxu0 0
        %2803 = vmatprep.subr.bf16.mxu0 0
        %2804 = vmatpush1.bf16.msra.mxu0 0
        %2805 = vmatprep.subr.bf16.mxu0 0
        %2806 = vmatpush1.bf16.msra.mxu0 0
        %2807 = vmatprep.subr.bf16.mxu0 0
        %2808 = vmatpush1.bf16.msra.mxu0 0
        %2809 = vmatprep.subr.bf16.mxu0 0
        %2810 = vmatpush1.bf16.msra.mxu0 0
        %2811 = vmatprep.subr.bf16.mxu0 0
        %2812 = vmatpush1.bf16.msra.mxu0 0
        %2813 = vmatprep.subr.bf16.mxu0 0
        %2814 = vmatpush1.bf16.msra.mxu0 0
        %2815 = vmatprep.subr.bf16.mxu0 0
        %2816 = vmatpush1.bf16.msra.mxu0 0
        %2817 = vmatprep.subr.bf16.mxu0 0
        %2818 = vmatpush1.bf16.msra.mxu0 0
        %2819 = vmatprep.subr.bf16.mxu0 0
        %2820 = vmatpush1.bf16.msra.mxu0 0
        %2821 = vmatprep.subr.bf16.mxu0 0
        %2822 = vmatpush1.bf16.msra.mxu0 0
        %2823 = vmatprep.subr.bf16.mxu0 0
        %2824 = vmatpush1.bf16.msra.mxu0 0
        %2825 = vmatprep.mubr.bf16.mxu0 0
        %2826 = vmatmul.mubr.bf16.gmra.mrb[0].mxu0 %v2791
        %v2827 = vpop.f32.mrb[0].mxu0
        %v2828 = vadd.f32 0.0, %v2827
        %v2829 = vpop.f32.mrb[0].mxu0
        %v2830 = vpop.f32.mrb[0].mxu0
        %v2831 = vpop.f32.mrb[0].mxu0
        %2832 = vdwg.mxu0
        %v2833 = vadd.f32 %v2751, %v2828
        %v2834 = vlaneseq
        %v2835 = vshrl.u32 %v2834, 7
        %v2836 = vsub.s32 6, %v2835
        %v2837 = vrot.slane %v2327, %v2836
        %v2838 = vmul.f32 %v2343, %v2837
        %v2839 = vpack.c.bf16 %v2838, %v2838
        %v2840 = vld [vmem:[%s9 + $0xc0] sm:$0xf]
        %v2841 = vld [vmem:[%s9 + $0xc4] sm:$0xf]
        %v2842 = vld [vmem:[%s9 + $0xc8] sm:$0xf]
        %v2843 = vld [vmem:[%s9 + $0xcc] sm:$0xf]
        %v2844 = vld [vmem:[%s9 + $0xd0] sm:$0xf]
        %v2845 = vld [vmem:[%s9 + $0xd4] sm:$0xf]
        %v2846 = vld [vmem:[%s9 + $0xd8] sm:$0xf]
        %v2847 = vld [vmem:[%s9 + $0xdc] sm:$0xf]
        %v2856 = vunpack.c.l.b16 %v2840
        %v2857 = vunpack.c.l.b16 %v2841
        %v2858 = vunpack.c.l.b16 %v2842
        %v2859 = vunpack.c.l.b16 %v2843
        %v2860 = vunpack.c.l.b16 %v2844
        %v2861 = vunpack.c.l.b16 %v2845
        %v2862 = vunpack.c.l.b16 %v2846
        %v2863 = vunpack.c.l.b16 %v2847
        %v2864 = vpack.c.b16 %v2857, %v2856
        %v2865 = vpack.c.b16 %v2859, %v2858
        %v2866 = vpack.c.b16 %v2861, %v2860
        %v2867 = vpack.c.b16 %v2863, %v2862
        %v2873 = vsel %vm1378, %v2839, 0
        %2875 = vmatprep.subr.bf16.mxu0 0
        %2876 = vmatpush1.bf16.msra.mxu0 %v2864
        %2877 = vmatprep.subr.bf16.mxu0 0
        %2878 = vmatpush1.bf16.msra.mxu0 %v2865
        %2879 = vmatprep.subr.bf16.mxu0 0
        %2880 = vmatpush1.bf16.msra.mxu0 %v2866
        %2881 = vmatprep.subr.bf16.mxu0 0
        %2882 = vmatpush1.bf16.msra.mxu0 %v2867
        %2883 = vmatprep.subr.bf16.mxu0 0
        %2884 = vmatpush1.bf16.msra.mxu0 0
        %2885 = vmatprep.subr.bf16.mxu0 0
        %2886 = vmatpush1.bf16.msra.mxu0 0
        %2887 = vmatprep.subr.bf16.mxu0 0
        %2888 = vmatpush1.bf16.msra.mxu0 0
        %2889 = vmatprep.subr.bf16.mxu0 0
        %2890 = vmatpush1.bf16.msra.mxu0 0
        %2891 = vmatprep.subr.bf16.mxu0 0
        %2892 = vmatpush1.bf16.msra.mxu0 0
        %2893 = vmatprep.subr.bf16.mxu0 0
        %2894 = vmatpush1.bf16.msra.mxu0 0
        %2895 = vmatprep.subr.bf16.mxu0 0
        %2896 = vmatpush1.bf16.msra.mxu0 0
        %2897 = vmatprep.subr.bf16.mxu0 0
        %2898 = vmatpush1.bf16.msra.mxu0 0
        %2899 = vmatprep.subr.bf16.mxu0 0
        %2900 = vmatpush1.bf16.msra.mxu0 0
        %2901 = vmatprep.subr.bf16.mxu0 0
        %2902 = vmatpush1.bf16.msra.mxu0 0
        %2903 = vmatprep.subr.bf16.mxu0 0
        %2904 = vmatpush1.bf16.msra.mxu0 0
        %2905 = vmatprep.subr.bf16.mxu0 0
        %2906 = vmatpush1.bf16.msra.mxu0 0
        %2907 = vmatprep.mubr.bf16.mxu0 0
        %2908 = vmatmul.mubr.bf16.gmra.mrb[0].mxu0 %v2873
        %v2909 = vpop.f32.mrb[0].mxu0
        %v2910 = vadd.f32 0.0, %v2909
        %v2911 = vpop.f32.mrb[0].mxu0
        %v2912 = vpop.f32.mrb[0].mxu0
        %v2913 = vpop.f32.mrb[0].mxu0
        %2914 = vdwg.mxu0
        %v2915 = vadd.f32 %v2833, %v2910
        %v2916 = vlaneseq
        %v2917 = vshrl.u32 %v2916, 7
        %v2918 = vsub.s32 7, %v2917
        %v2919 = vrot.slane %v2327, %v2918
        %v2920 = vmul.f32 %v2343, %v2919
        %v2921 = vpack.c.bf16 %v2920, %v2920
        %v2922 = vld [vmem:[%s9 + $0xe0] sm:$0xf]
        %v2923 = vld [vmem:[%s9 + $0xe4] sm:$0xf]
        %v2924 = vld [vmem:[%s9 + $0xe8] sm:$0xf]
        %v2925 = vld [vmem:[%s9 + $0xec] sm:$0xf]
        %v2926 = vld [vmem:[%s9 + $0xf0] sm:$0xf]
        %v2927 = vld [vmem:[%s9 + $0xf4] sm:$0xf]
        %v2928 = vld [vmem:[%s9 + $0xf8] sm:$0xf]
        %v2929 = vld [vmem:[%s9 + $0xfc] sm:$0xf]
        %v2938 = vunpack.c.l.b16 %v2922
        %v2939 = vunpack.c.l.b16 %v2923
        %v2940 = vunpack.c.l.b16 %v2924
        %v2941 = vunpack.c.l.b16 %v2925
        %v2942 = vunpack.c.l.b16 %v2926
        %v2943 = vunpack.c.l.b16 %v2927
        %v2944 = vunpack.c.l.b16 %v2928
        %v2945 = vunpack.c.l.b16 %v2929
        %v2946 = vpack.c.b16 %v2939, %v2938
        %v2947 = vpack.c.b16 %v2941, %v2940
        %v2948 = vpack.c.b16 %v2943, %v2942
        %v2949 = vpack.c.b16 %v2945, %v2944
        %v2955 = vsel %vm1378, %v2921, 0
        %2957 = vmatprep.subr.bf16.mxu0 0
        %2958 = vmatpush1.bf16.msra.mxu0 %v2946
        %2959 = vmatprep.subr.bf16.mxu0 0
        %2960 = vmatpush1.bf16.msra.mxu0 %v2947
        %2961 = vmatprep.subr.bf16.mxu0 0
        %2962 = vmatpush1.bf16.msra.mxu0 %v2948
        %2963 = vmatprep.subr.bf16.mxu0 0
        %2964 = vmatpush1.bf16.msra.mxu0 %v2949
        %2965 = vmatprep.subr.bf16.mxu0 0
        %2966 = vmatpush1.bf16.msra.mxu0 0
        %2967 = vmatprep.subr.bf16.mxu0 0
        %2968 = vmatpush1.bf16.msra.mxu0 0
        %2969 = vmatprep.subr.bf16.mxu0 0
        %2970 = vmatpush1.bf16.msra.mxu0 0
        %2971 = vmatprep.subr.bf16.mxu0 0
        %2972 = vmatpush1.bf16.msra.mxu0 0
        %2973 = vmatprep.subr.bf16.mxu0 0
        %2974 = vmatpush1.bf16.msra.mxu0 0
        %2975 = vmatprep.subr.bf16.mxu0 0
        %2976 = vmatpush1.bf16.msra.mxu0 0
        %2977 = vmatprep.subr.bf16.mxu0 0
        %2978 = vmatpush1.bf16.msra.mxu0 0
        %2979 = vmatprep.subr.bf16.mxu0 0
        %2980 = vmatpush1.bf16.msra.mxu0 0
        %2981 = vmatprep.subr.bf16.mxu0 0
        %2982 = vmatpush1.bf16.msra.mxu0 0
        %2983 = vmatprep.subr.bf16.mxu0 0
        %2984 = vmatpush1.bf16.msra.mxu0 0
        %2985 = vmatprep.subr.bf16.mxu0 0
        %2986 = vmatpush1.bf16.msra.mxu0 0
        %2987 = vmatprep.subr.bf16.mxu0 0
        %2988 = vmatpush1.bf16.msra.mxu0 0
        %2989 = vmatprep.mubr.bf16.mxu0 0
        %2990 = vmatmul.mubr.bf16.gmra.mrb[0].mxu0 %v2955
        %v2991 = vpop.f32.mrb[0].mxu0
        %v2992 = vadd.f32 0.0, %v2991
        %v2993 = vpop.f32.mrb[0].mxu0
        %v2994 = vpop.f32.mrb[0].mxu0
        %v2995 = vpop.f32.mrb[0].mxu0
        %2996 = vdwg.mxu0
        %v2997 = vadd.f32 %v2915, %v2992
        %v2998 = vld [vmem:[%s12 + $0x7] sm:$0x1]
        %v2999 = vlaneseq
        %v3000 = vshrl.u32 %v2999, 7
        %v3001 = vsub.s32 0, %v3000
        %v3002 = vrot.slane %v2998, %v3001
        %v3003 = vadd.f32 %v2997, %v3002
        %v3004 = vpack.c.bf16 %v3003, %v3003
        %v3005 = vld [vmem:[%s10] sm:$0xf]
        %v3006 = vld [vmem:[%s10 + $0x4] sm:$0xf]
        %v3007 = vld [vmem:[%s10 + $0x8] sm:$0xf]
        %v3008 = vld [vmem:[%s10 + $0xc] sm:$0xf]
        %v3009 = vld [vmem:[%s12 + $0x8] sm:$0x1]
        %v3010 = vlaneseq
        %v3011 = vshrl.u32 %v3010, 7
        %v3012 = vsub.s32 0, %v3011
        %v3013 = vrot.slane %v3009, %v3012
        %v3018 = vunpack.c.l.b16 %v3005
        %v3019 = vunpack.c.l.b16 %v3006
        %v3020 = vunpack.c.l.b16 %v3007
        %v3021 = vunpack.c.l.b16 %v3008
        %v3022 = vpack.c.b16 %v3019, %v3018
        %v3023 = vpack.c.b16 %v3021, %v3020
        %v3027 = vsel %vm1695, %v3004, 0
        %3029 = vmatprep.subr.bf16.mxu0 0
        %3030 = vmatpush1.bf16.msra.mxu0 %v3022
        %3031 = vmatprep.subr.bf16.mxu0 0
        %3032 = vmatpush1.bf16.msra.mxu0 %v3023
        %3033 = vmatprep.subr.bf16.mxu0 0
        %3034 = vmatpush1.bf16.msra.mxu0 0
        %3035 = vmatprep.subr.bf16.mxu0 0
        %3036 = vmatpush1.bf16.msra.mxu0 0
        %3037 = vmatprep.subr.bf16.mxu0 0
        %3038 = vmatpush1.bf16.msra.mxu0 0
        %3039 = vmatprep.subr.bf16.mxu0 0
        %3040 = vmatpush1.bf16.msra.mxu0 0
        %3041 = vmatprep.subr.bf16.mxu0 0
        %3042 = vmatpush1.bf16.msra.mxu0 0
        %3043 = vmatprep.subr.bf16.mxu0 0
        %3044 = vmatpush1.bf16.msra.mxu0 0
        %3045 = vmatprep.subr.bf16.mxu0 0
        %3046 = vmatpush1.bf16.msra.mxu0 0
        %3047 = vmatprep.subr.bf16.mxu0 0
        %3048 = vmatpush1.bf16.msra.mxu0 0
        %3049 = vmatprep.subr.bf16.mxu0 0
        %3050 = vmatpush1.bf16.msra.mxu0 0
        %3051 = vmatprep.subr.bf16.mxu0 0
        %3052 = vmatpush1.bf16.msra.mxu0 0
        %3053 = vmatprep.subr.bf16.mxu0 0
        %3054 = vmatpush1.bf16.msra.mxu0 0
        %3055 = vmatprep.subr.bf16.mxu0 0
        %3056 = vmatpush1.bf16.msra.mxu0 0
        %3057 = vmatprep.subr.bf16.mxu0 0
        %3058 = vmatpush1.bf16.msra.mxu0 0
        %3059 = vmatprep.subr.bf16.mxu0 0
        %3060 = vmatpush1.bf16.msra.mxu0 0
        %3061 = vmatprep.mubr.bf16.mxu0 0
        %3062 = vmatmul.mubr.bf16.gmra.mrb[0].mxu0 %v3027
        %v3063 = vpop.f32.mrb[0].mxu0
        %v3064 = vadd.f32 %v3013, %v3063
        %v3065 = vpop.f32.mrb[0].mxu0
        %v3066 = vpop.f32.mrb[0].mxu0
        %v3067 = vpop.f32.mrb[0].mxu0
        %3068 = vdwg.mxu0
        %v3069 = vpack.c.bf16 %v3064, %v3064
        %v3070 = vld [vmem:[%s11] sm:$0xf]
        %v3071 = vld [vmem:[%s11 + $0x4] sm:$0xf]
        %v3072 = vld [vmem:[%s11 + $0x8] sm:$0xf]
        %v3073 = vld [vmem:[%s11 + $0xc] sm:$0xf]
        %v3074 = vld [vmem:[%s12 + $0x9] sm:$0x1]
        %v3075 = vlaneseq
        %v3076 = vshrl.u32 %v3075, 7
        %v3077 = vsub.s32 0, %v3076
        %v3078 = vrot.slane %v3074, %v3077
        %v3083 = vunpack.c.l.b16 %v3070
        %v3084 = vunpack.c.l.b16 %v3071
        %v3085 = vunpack.c.l.b16 %v3072
        %v3086 = vunpack.c.l.b16 %v3073
        %v3087 = vpack.c.b16 %v3084, %v3083
        %v3088 = vpack.c.b16 %v3086, %v3085
        %v3092 = vsel %vm1695, %v3069, 0
        %3094 = vmatprep.subr.bf16.mxu0 0
        %3095 = vmatpush1.bf16.msra.mxu0 %v3087
        %3096 = vmatprep.subr.bf16.mxu0 0
        %3097 = vmatpush1.bf16.msra.mxu0 %v3088
        %3098 = vmatprep.subr.bf16.mxu0 0
        %3099 = vmatpush1.bf16.msra.mxu0 0
        %3100 = vmatprep.subr.bf16.mxu0 0
        %3101 = vmatpush1.bf16.msra.mxu0 0
        %3102 = vmatprep.subr.bf16.mxu0 0
        %3103 = vmatpush1.bf16.msra.mxu0 0
        %3104 = vmatprep.subr.bf16.mxu0 0
        %3105 = vmatpush1.bf16.msra.mxu0 0
        %3106 = vmatprep.subr.bf16.mxu0 0
        %3107 = vmatpush1.bf16.msra.mxu0 0
        %3108 = vmatprep.subr.bf16.mxu0 0
        %3109 = vmatpush1.bf16.msra.mxu0 0
        %3110 = vmatprep.subr.bf16.mxu0 0
        %3111 = vmatpush1.bf16.msra.mxu0 0
        %3112 = vmatprep.subr.bf16.mxu0 0
        %3113 = vmatpush1.bf16.msra.mxu0 0
        %3114 = vmatprep.subr.bf16.mxu0 0
        %3115 = vmatpush1.bf16.msra.mxu0 0
        %3116 = vmatprep.subr.bf16.mxu0 0
        %3117 = vmatpush1.bf16.msra.mxu0 0
        %3118 = vmatprep.subr.bf16.mxu0 0
        %3119 = vmatpush1.bf16.msra.mxu0 0
        %3120 = vmatprep.subr.bf16.mxu0 0
        %3121 = vmatpush1.bf16.msra.mxu0 0
        %3122 = vmatprep.subr.bf16.mxu0 0
        %3123 = vmatpush1.bf16.msra.mxu0 0
        %3124 = vmatprep.subr.bf16.mxu0 0
        %3125 = vmatpush1.bf16.msra.mxu0 0
        %3126 = vmatprep.mubr.bf16.mxu0 0
        %3127 = vmatmul.mubr.bf16.gmra.mrb[0].mxu0 %v3092
        %v3128 = vpop.f32.mrb[0].mxu0
        %v3129 = vadd.f32 %v3078, %v3128
        %v3130 = vpop.f32.mrb[0].mxu0
        %v3131 = vpop.f32.mrb[0].mxu0
        %v3132 = vpop.f32.mrb[0].mxu0
        %3133 = vdwg.mxu0
        %3134 = vst [vmem:[%s500] sm:$0xf] %v3129
        %s3135 = sand.u32 %s350, 1
        %s3136 = scalar_lea.sflag [#allocation3], %s3135
        %s3137 = sand.u32 %s350, 1
        %s3138 = smul.addr %s3137, 4
        %s3139 = scalar_lea.vmem [#allocation2], %s3138
        // Predicated region
        $region77: #{tpu_custom_call.1} parent=75 // pred_check
          %p3140 = pneg %p360
        $region78: #{tpu_custom_call.1} parent=75 // pred_check_branch
          %3142 = sbr.rel (%p3140) target = $region80
        $region79: #{tpu_custom_call.1} parent=75 // pred_region
          %s3144 = ssub.s32 64, 64
          %3145 = vsyncadd %s3136, %s3144
          %s3146 = smul.addr %s28, 64
          %s3147 = scalar_lea.hbm %s14, %s3146
          %s3149 = sshll.u32 %s3139, 4
          %s3150 = int_to_ptr.vmem [resolvable:$true] %s3149
          %3152 = dma.vmem_to_hbm [thread:$0]  %s3150, 64, %s3147, %s3136
        $region80: #{tpu_custom_call.1} parent=75 // pred_fallthru
          _
      $region76: #{tpu_custom_call.1} parent=5 // pred_fallthru
        _
      %p3153 = scmp.le.s32.totalorder 2, %s23
      // Predicated region
      $region81: #{tpu_custom_call.1} parent=5 // pred_check
        %p3154 = pneg %p3153
      $region82: #{tpu_custom_call.1} parent=5 // pred_check_branch
        %3156 = sbr.rel (%p3154) target = $region84
      $region83: #{tpu_custom_call.1} parent=5 // pred_region
        %s3157 = ssub.s32 %s23, 2
        // Predicated region
        $region85: #{tpu_custom_call.1} parent=83 // pred_check
          %p3158 = pneg %p366
        $region86: #{tpu_custom_call.1} parent=83 // pred_check_branch
          %3160 = sbr.rel (%p3158) target = $region88
        $region87: #{tpu_custom_call.1} parent=83 // pred_region
          %s3161 = sand.u32 %s351, 1
          %s3162 = scalar_lea.sflag [#allocation3], %s3161
          %s3163 = sand.u32 %s351, 1
          %s3164 = smul.addr %s3163, 4
          %s3165 = scalar_lea.vmem [#allocation2], %s3164
          %3166 = dma.done %s3162, 64
        $region88: #{tpu_custom_call.1} parent=83 // pred_fallthru
          _
      $region84: #{tpu_custom_call.1} parent=5 // pred_fallthru
        _
    $region6: #{tpu_custom_call.1} parent=1 // loop_footer
      %s27 = sadd.s32 1, %s23
    $region7: #{tpu_custom_call.1} parent=1 // loop_footer_branch
      %22 = sbr.rel target = $region3
    $region8: #{tpu_custom_call.1} parent=1 // loop_exit
      _
    %3167 = vsyncpa [#allocation3], 1
    %s3168 = scalar_lea.sflag [#allocation3], 1
    %3169 = vsyncpa %s3168, 1

</llo_original>
